<compile_context>
chip_gen: v7x
topology: tpu7x:2x2x1
jax: 0.10.0
libtpu: 0.0.40
codegen_flags: <defaults>
</compile_context>

<pallas_src>
import functools
import math

import jax
import jax.numpy as jnp
from jax.experimental import pallas as pl
from jax.experimental.pallas import tpu as pltpu


_NEG = -1e30   # large finite negative instead of -inf (avoids -inf - -inf = NaN)


# ----------------------------- in-kernel helpers -----------------------------

def _layernorm(x, g, b, eps=1e-5):
    mu = jnp.mean(x, axis=-1, keepdims=True)
    var = jnp.mean((x - mu) ** 2, axis=-1, keepdims=True)
    return (x - mu) * jax.lax.rsqrt(var + eps) * g + b


def _erf(x):
    # Abramowitz & Stegun 7.1.26 polynomial; max abs err ~1.5e-7 (f32-exact for GELU).
    a1, a2, a3, a4, a5 = 0.254829592, -0.284496736, 1.421413741, -1.453152027, 1.061405429
    p = 0.3275911
    s = jnp.where(x >= 0.0, 1.0, -1.0)
    z = jnp.abs(x)
    t = 1.0 / (1.0 + p * z)
    poly = ((((a5 * t + a4) * t + a3) * t + a2) * t + a1) * t
    return s * (1.0 - poly * jnp.exp(-z * z))


def _gelu_exact(x):
    # PyTorch nn.GELU() default is the exact (erf) GELU.
    return 0.5 * x * (1.0 + _erf(x * 0.7071067811865476))


def _recip(x, approx):
    # EUP approximate reciprocal in the fast path (frees VPU slots), exact divide otherwise.
    return pl.reciprocal(x, approx=True) if approx else 1.0 / x


def _mhsa_flat(x, wqkv, wo, bo, add_mask, *, num_heads, cdt, approx):
    """Multi-head self-attention over flat (S, D) rows.

    Sequence grouping and causality are enforced purely by the additive mask `add_mask`
    (0 where allowed, -1e30 elsewhere): masked logits underflow to exactly 0 after the row
    softmax, which is bit-equivalent to running the attention per sequence — so slots never
    leave the flat layout and no in-kernel transposes are needed.
    head_dim**-0.5 is pre-folded into the q columns of `wqkv`.
    """
    S, D = x.shape
    dh = D // num_heads
    qkv = jnp.dot(x.astype(cdt), wqkv, preferred_element_type=jnp.float32)   # (S, 3D) f32
    qkv_c = qkv.astype(cdt)                       # cast ONCE; per-head operands are slices
    heads = []
    for h in range(num_heads):                    # tiny static loop (num_heads = 4)
        lo = h * dh
        qh = qkv_c[:, lo:lo + dh]
        kh = qkv_c[:, D + lo:D + lo + dh]
        vh = qkv_c[:, 2 * D + lo:2 * D + lo + dh]
        a = jnp.einsum('sd,td->st', qh, kh, preferred_element_type=jnp.float32)  # (S, S)
        a = a + add_mask
        a = a - jnp.max(a, axis=-1, keepdims=True)
        a = jnp.exp(a)
        a = a * _recip(jnp.sum(a, axis=-1, keepdims=True), approx)
        heads.append(jnp.dot(a.astype(cdt), vh, preferred_element_type=jnp.float32))
    # fused epilogue: concat the head outputs and run ONE (S,D)@(D,D) projection
    # (an MXU push with K=8 costs the same as K=32: 1 dot instead of 4 dots + 3 adds).
    o = jnp.concatenate(heads, axis=-1).astype(cdt)                          # (S, D)
    return jnp.dot(o, wo, preferred_element_type=jnp.float32) + bo


# ----------------------------- fused PSBBlock kernel --------------------------

def _psb_fused_kernel(slots_ref, x_ref, mp_ref, vec_ref, cw_ref, w2_ref, o_ref,
                      *, time_nh, obj_nh, cdt, approx):
    S, D = slots_ref.shape[1], slots_ref.shape[2]
    Kx = x_ref.shape[1]
    F = w2_ref.shape[0]

    # ---- unpack the fused parameter slabs (static ref slices) --------------------
    # f32 masks+pos slab: [inv_mask | time_mask | obj_mask | pos]
    inv_mask  = mp_ref[:, 0:Kx]
    time_mask = mp_ref[:, Kx:Kx + S]
    obj_mask  = mp_ref[:, Kx + S:Kx + 2 * S]
    pos       = mp_ref[:, Kx + 2 * S:Kx + 2 * S + D]
    # f32 vector slab: one row per LN gain/bias or bias vector (order == _VEC_ROWS)
    lnq_g, lnq_b   = vec_ref[0:1, :D], vec_ref[1:2, :D]
    lnkv_g, lnkv_b = vec_ref[2:3, :D], vec_ref[3:4, :D]
    lnt_g, lnt_b   = vec_ref[4:5, :D], vec_ref[5:6, :D]
    t_bo           = vec_ref[6:7, :D]
    lno_g, lno_b   = vec_ref[7:8, :D], vec_ref[8:9, :D]
    o_bo           = vec_ref[9:10, :D]
    lnf_g, lnf_b   = vec_ref[10:11, :D], vec_ref[11:12, :D]
    b2             = vec_ref[12:13, :D]
    b1             = vec_ref[13:14, :F]
    # compute-dtype weight slab: [wq*D^-.5 | wk | wv | wo_inv | t_wqkv | t_wo | o_wqkv | o_wo | w1]
    wq     = cw_ref[:, 0 * D:1 * D]
    wk     = cw_ref[:, 1 * D:2 * D]
    wv     = cw_ref[:, 2 * D:3 * D]
    wo_inv = cw_ref[:, 3 * D:4 * D]
    t_wqkv = cw_ref[:, 4 * D:7 * D]
    t_wo   = cw_ref[:, 7 * D:8 * D]
    o_wqkv = cw_ref[:, 8 * D:11 * D]
    o_wo   = cw_ref[:, 11 * D:12 * D]
    w1     = cw_ref[:, 12 * D:12 * D + F]
    w2     = w2_ref[...]

    # -------- stage 1: ln_q / ln_kv + rel-pos + inverted cross-attention (1 head) --
    slots = _layernorm(slots_ref[0], lnq_g, lnq_b) + pos                     # (S, D) f32
    xkv   = _layernorm(x_ref[0], lnkv_g, lnkv_b)                             # (Kx, D) f32

    q = jnp.dot(slots.astype(cdt), wq, preferred_element_type=jnp.float32)   # D**-0.5 folded in
    xk_c = xkv.astype(cdt)
    k = jnp.dot(xk_c, wk, preferred_element_type=jnp.float32)
    v = jnp.dot(xk_c, wv, preferred_element_type=jnp.float32)

    attn = jnp.einsum('nd,ld->nl', q.astype(cdt), k.astype(cdt),
                      preferred_element_type=jnp.float32) + inv_mask         # (S, Kx)
    # Inverted attention: softmax over the slot/query axis (dim=-2). Masked logits (-1e30)
    # underflow to exactly 0, so cross-batch / slot-causal-masked entries vanish.
    # NOTE: every row/column of the masks keeps >=1 unmasked entry for these semantics; if
    # the mask semantics change, an all-masked row would silently give a near-uniform softmax.
    attn = jnp.exp(attn - jnp.max(attn, axis=0, keepdims=True))
    attn = attn * _recip(jnp.sum(attn, axis=0, keepdims=True), approx)
    # ... then per-slot key-sum renorm (attn / sum(attn + 1e-10, dim=-1)), all in f32.
    attn = attn * _recip(jnp.sum(attn + 1e-10, axis=1, keepdims=True), approx)

    upd = jnp.dot(attn.astype(cdt), v.astype(cdt), preferred_element_type=jnp.float32)
    upd = jnp.dot(upd.astype(cdt), wo_inv, preferred_element_type=jnp.float32)
    slots = slots + upd                                  # residual on (LN'd + pos) slots

    # -------- stage 2: LayerNorm + causal time attention (block-diag mask == permute)
    xt = _layernorm(slots, lnt_g, lnt_b)
    slots = xt + _mhsa_flat(xt, t_wqkv, t_wo, t_bo, time_mask,
                            num_heads=time_nh, cdt=cdt, approx=approx)

    # -------- stage 3: LayerNorm + object attention
    xo = _layernorm(slots, lno_g, lno_b)
    slots = xo + _mhsa_flat(xo, o_wqkv, o_wo, o_bo, obj_mask,
                            num_heads=obj_nh, cdt=cdt, approx=approx)

    # -------- stage 4: proj FFN (LayerNorm -> Linear -> GELU -> Linear) + residual
    xn = _layernorm(slots, lnf_g, lnf_b)
    h = jnp.dot(xn.astype(cdt), w1, preferred_element_type=jnp.float32) + b1
    h = _gelu_exact(h)
    y = jnp.dot(h.astype(cdt), w2, preferred_element_type=jnp.float32) + b2

    o_ref[0] = slots + y


# ----------------------------- host-side packing helpers ----------------------

_VEC_ROWS = ('ln_q_g', 'ln_q_b', 'ln_kv_g', 'ln_kv_b', 'ln_time_g', 'ln_time_b', 'time_bo',
             'ln_obj_g', 'ln_obj_b', 'obj_bo', 'ffn_ln_g', 'ffn_ln_b', 'b2', 'b1')


def _pack_params(params, D, F, cdt):
    """Pack the ~24 tiny parameter tensors into 3 slabs so the kernel prologue issues a
    handful of DMAs instead of ~24 serialized tiny ones."""
    W = max(D, F)
    rows = []
    for name in _VEC_ROWS:
        v = params[name].reshape(1, -1).astype(jnp.float32)
        rows.append(jnp.pad(v, ((0, 0), (0, W - v.shape[1]))))
    vec_slab = jnp.concatenate(rows, axis=0)                                 # (14, max(D,F)) f32

    # fold the attention scales into the q projection weights (free at pack time).
    dh_t = D // params['time_nh']
    dh_o = D // params['obj_nh']
    t_wqkv = params['time_wqkv_t'].at[:, :D].multiply(dh_t ** -0.5)
    o_wqkv = params['obj_wqkv_t'].at[:, :D].multiply(dh_o ** -0.5)
    cw_slab = jnp.concatenate(
        [params['wq_t'] * (D ** -0.5), params['wk_t'], params['wv_t'], params['wo_inv_t'],
         t_wqkv, params['time_wo_t'], o_wqkv, params['obj_wo_t'], params['w1_t']],
        axis=1).astype(cdt)                                                  # (D, 12D + F)
    w2_slab = params['w2_t'].astype(cdt)                                     # (F, D)
    return vec_slab, cw_slab, w2_slab


def _build_mask_pos_slab(params, GB, T, N, L, D):
    """Additive masks (0 allowed / -1e30 masked) + tiled relative-position rows, precomputed
    host-side (integer index math, no float floor-div) and shipped as ONE f32 slab."""
    TN, TL = T * N, T * L
    S, Kx = GB * TN, GB * TL
    neg = jnp.float32(_NEG)
    bs, isl = jnp.arange(S) // TN, jnp.arange(S) % TN        # slot-row batch / in-batch index
    bx, jx = jnp.arange(Kx) // TL, jnp.arange(Kx) % TL       # token-col batch / in-batch index
    # inverse cross-attention mask == torch.triu(ones(T,T),1).repeat(B,N,L):
    # element (i, j) is masked iff (j % T) > (i % T); batch-block-diagonal when GB > 1.
    inv_m = jnp.where((bs[:, None] != bx[None, :]) | ((jx[None, :] % T) > (isl[:, None] % T)),
                      neg, 0.0)
    t_i, n_i = isl // N, isl % N
    same_b = bs[:, None] == bs[None, :]
    # time attention: same batch, same slot id, causal over time  (== '(b n) t d' permute)
    time_m = jnp.where(same_b & (n_i[:, None] == n_i[None, :]) & (t_i[None, :] <= t_i[:, None]),
                       0.0, neg)
    # object attention: same batch, same time step                (== '(b t) n d' permute)
    obj_m = jnp.where(same_b & (t_i[:, None] == t_i[None, :]), 0.0, neg)

    # RelativePosition(T, N): tiny host-side table gather (glue), tiled over the batch group.
    dist = jnp.arange(N)[None, :] - jnp.arange(T)[:, None]
    idx = jnp.clip(dist, -params['max_rel'], params['max_rel']) + params['max_rel']
    pos = jnp.tile(params['pos_table'][idx].reshape(TN, D), (GB, 1))         # (S, D)
    return jnp.concatenate([inv_m, time_m, obj_m, pos], axis=1).astype(jnp.float32)


def _auto_config(batch):
    """Pick (compute_dtype, batch_group) for the current TPU generation:
       - single-TensorCore chips (v5e / v6e): fuse the whole batch into one program
         (the grid is a sequential loop there); f32 compute on v5e (no bf16 VPU/EUP).
       - multi-core chips (v4/v5p megacore, v7x): one batch element per grid step so
         dimension_semantics=("parallel",) spreads the batch across the TensorCores."""
    try:
        kind = jax.devices()[0].device_kind.lower()
    except Exception:
        kind = ""
    is_v5e = any(s in kind for s in ('v5e', 'v5 lite', 'v5lite'))
    is_v6e = any(s in kind for s in ('v6e', 'v6 lite', 'v6lite'))
    single_tc = is_v5e or is_v6e
    cdt = jnp.float32 if is_v5e else jnp.bfloat16
    gb = batch if single_tc else 1
    return cdt, gb


# ----------------------------- PSBBlock forward (wrapper) ---------------------

def psb_block_forward(params, in_dict, *, compute_dtype=None, approx_recip=True,
                      batch_group=None):
    features = in_dict['features']                 # (B, T, L, D)
    prev_slots = in_dict['prev_slots']
    B, T, L, D = features.shape
    N = params['num_slots']
    F = params['w1_t'].shape[1]
    TN, TL = T * N, T * L

    if compute_dtype is None or batch_group is None:
        auto_cdt, auto_gb = _auto_config(B)
        if compute_dtype is None:
            compute_dtype = auto_cdt
        if batch_group is None:
            batch_group = auto_gb
    cdt, GB = compute_dtype, batch_group
    assert B % GB == 0, "batch_group must divide the batch size"
    G = B // GB
    S, Kx = GB * TN, GB * TL

    if prev_slots is None:
        prev_slots = jnp.broadcast_to(params['init_slots'], (B, T, N, D))

    mp_slab = _build_mask_pos_slab(params, GB, T, N, L, D)      # (S, Kx + 2S + D) f32
    vec_slab, cw_slab, w2_slab = _pack_params(params, D, F, cdt)

    # GB batch elements stacked contiguously per program (row-major reshape, no copy semantics
    # change); each program sees (S, D) slots and (Kx, D) tokens.
    slots_in = prev_slots.reshape(G, S, D)
    x_in = features.reshape(G, Kx, D)

    kernel = functools.partial(_psb_fused_kernel, time_nh=params['time_nh'],
                               obj_nh=params['obj_nh'], cdt=cdt, approx=approx_recip)

    slots_out = pl.pallas_call(
        kernel,
        out_shape=jax.ShapeDtypeStruct((G, S, D), jnp.float32),
        grid=(G,),
        in_specs=[
            pl.BlockSpec((1, S, D), lambda g: (g, 0, 0)),
            pl.BlockSpec((1, Kx, D), lambda g: (g, 0, 0)),
            pl.BlockSpec(mp_slab.shape, lambda g: (0, 0)),
            pl.BlockSpec(vec_slab.shape, lambda g: (0, 0)),
            pl.BlockSpec(cw_slab.shape, lambda g: (0, 0)),
            pl.BlockSpec(w2_slab.shape, lambda g: (0, 0)),
        ],
        out_specs=pl.BlockSpec((1, S, D), lambda g: (g, 0, 0)),
        compiler_params=pltpu.CompilerParams(dimension_semantics=("parallel",)),
    )(slots_in, x_in, mp_slab, vec_slab, cw_slab, w2_slab)

    return {'features': features, 'prev_slots': slots_out.reshape(B, T, N, D), 'masks': None}


# ----------------------------- parameters (deterministic, in-script) ----------

def init_params(key, D, F, N, time_nh, obj_nh, max_rel=32):
    ks = jax.random.split(key, 16)

    def xavier_t(k, out_dim, in_dim):
        # xavier_uniform on the (out, in) PyTorch weight, stored pre-transposed (in, out)
        # so both kernel and reference use `x @ w_t` with no per-forward .T transpose.
        lim = math.sqrt(6.0 / (in_dim + out_dim))
        return jax.random.uniform(k, (out_dim, in_dim), jnp.float32, -lim, lim).T

    def bias(k, n, fan_in):
        lim = 1.0 / math.sqrt(fan_in)
        return jax.random.uniform(k, (1, n), jnp.float32, -lim, lim)

    p = dict(num_slots=N, max_rel=max_rel, time_nh=time_nh, obj_nh=obj_nh)
    # InverseCrossAttentionMH (num_heads=1, no biases)
    p['wq_t'] = xavier_t(ks[0], D, D); p['wk_t'] = xavier_t(ks[1], D, D)
    p['wv_t'] = xavier_t(ks[2], D, D); p['wo_inv_t'] = xavier_t(ks[3], D, D)
    # LayerNorms (PyTorch default init: ones / zeros)
    p['ln_q_g'] = jnp.ones((1, D)); p['ln_q_b'] = jnp.zeros((1, D))
    p['ln_kv_g'] = jnp.ones((1, D)); p['ln_kv_b'] = jnp.zeros((1, D))
    # RelativePosition table + init_slots
    lim_tbl = math.sqrt(6.0 / (2 * max_rel + 1 + D))
    p['pos_table'] = jax.random.uniform(ks[4], (2 * max_rel + 1, D), jnp.float32, -lim_tbl, lim_tbl)
    p['init_slots'] = jax.random.normal(ks[5], (1, 1, N, D), jnp.float32)
    # time attention
    p['ln_time_g'] = jnp.ones((1, D)); p['ln_time_b'] = jnp.zeros((1, D))
    p['time_wqkv_t'] = xavier_t(ks[6], 3 * D, D)
    p['time_wo_t'] = xavier_t(ks[7], D, D); p['time_bo'] = bias(ks[8], D, D)
    # object attention
    p['ln_obj_g'] = jnp.ones((1, D)); p['ln_obj_b'] = jnp.zeros((1, D))
    p['obj_wqkv_t'] = xavier_t(ks[9], 3 * D, D)
    p['obj_wo_t'] = xavier_t(ks[10], D, D); p['obj_bo'] = bias(ks[11], D, D)
    # proj FFN
    p['ffn_ln_g'] = jnp.ones((1, D)); p['ffn_ln_b'] = jnp.zeros((1, D))
    p['w1_t'] = xavier_t(ks[12], F, D); p['b1'] = bias(ks[13], F, D)
    p['w2_t'] = xavier_t(ks[14], D, F); p['b2'] = bias(ks[15], D, F)
    return p


# ----------------------------- pure-JAX reference (sanity check) --------------

def _ref_ln(x, g, b, eps=1e-5):
    mu = x.mean(-1, keepdims=True)
    var = ((x - mu) ** 2).mean(-1, keepdims=True)
    return (x - mu) / jnp.sqrt(var + eps) * g + b


def _ref_mha(x, wqkv_t, wo_t, bo, num_heads, causal):
    Bf, S, D = x.shape
    dh = D // num_heads
    qkv = (x @ wqkv_t).reshape(Bf, S, 3, num_heads, dh).transpose(2, 0, 3, 1, 4)
    q, k, v = qkv[0] * dh ** (-0.5), qkv[1], qkv[2]
    attn = jnp.einsum('bhsd,bhtd->bhst', q, k)
    if causal:
        m = jnp.triu(jnp.ones((S, S), bool), 1)
        attn = jnp.where(m, -jnp.inf, attn)
    attn = jax.nn.softmax(attn, axis=-1)
    out = jnp.einsum('bhst,bhtd->bhsd', attn, v).transpose(0, 2, 1, 3).reshape(Bf, S, D)
    return out @ wo_t + bo


def reference_forward(p, features):
    B, T, L, D = features.shape
    N = p['num_slots']
    prev_slots = jnp.broadcast_to(p['init_slots'], (B, T, N, D))
    slots = _ref_ln(prev_slots, p['ln_q_g'][0], p['ln_q_b'][0])
    x = _ref_ln(features, p['ln_kv_g'][0], p['ln_kv_b'][0])
    dist = jnp.arange(N)[None, :] - jnp.arange(T)[:, None]
    idx = jnp.clip(dist, -p['max_rel'], p['max_rel']) + p['max_rel']
    slots = slots + p['pos_table'][idx][None]
    slots = slots.reshape(B, T * N, D)
    x = x.reshape(B, T * L, D)
    mask = jnp.tile(jnp.triu(jnp.ones((T, T), bool), 1), (N, L))
    q = (slots @ p['wq_t']) * D ** (-0.5)
    k = x @ p['wk_t']
    v = x @ p['wv_t']
    attn = jnp.einsum('bnd,bld->bnl', q, k)
    attn = jnp.where(mask[None], -jnp.inf, attn)
    attn = jax.nn.softmax(attn, axis=-2)
    attn = attn / jnp.sum(attn + 1e-10, axis=-1, keepdims=True)
    slots = slots + (attn @ v) @ p['wo_inv_t']
    slots = slots.reshape(B, T, N, D).transpose(0, 2, 1, 3).reshape(B * N, T, D)
    slots = _ref_ln(slots, p['ln_time_g'][0], p['ln_time_b'][0])
    slots = slots + _ref_mha(slots, p['time_wqkv_t'], p['time_wo_t'], p['time_bo'][0], p['time_nh'], True)
    slots = slots.reshape(B, N, T, D).transpose(0, 2, 1, 3).reshape(B * T, N, D)
    slots = _ref_ln(slots, p['ln_obj_g'][0], p['ln_obj_b'][0])
    slots = slots + _ref_mha(slots, p['obj_wqkv_t'], p['obj_wo_t'], p['obj_bo'][0], p['obj_nh'], False)
    slots = slots.reshape(B, T, N, D)
    xn = _ref_ln(slots, p['ffn_ln_g'][0], p['ffn_ln_b'][0])
    h = jax.nn.gelu(xn @ p['w1_t'] + p['b1'][0], approximate=False)
    return slots + (h @ p['w2_t'] + p['b2'][0])


# ----------------------------- main -------------------------------------------

if __name__ == "__main__":
    # small shapes consistent with the module's forward: x is (B, T, L, D)
    B, T, L, D = 2, 4, 16, 32
    N, FFN_DIM = 8, 64
    time_nh, obj_nh = 4, 4

    key = jax.random.PRNGKey(0)
    pkey, fkey = jax.random.split(key)
    params = init_params(pkey, D, FFN_DIM, N, time_nh, obj_nh)
    features = jax.random.normal(fkey, (B, T, L, D), jnp.float32)
    in_dict = {'features': features, 'prev_slots': None}

    ref = reference_forward(params, features)

    # 1) exact-semantics validation of BOTH layouts: per-batch grid (v7x/megacore path)
    #    and fused-batch single program (v5e/v6e path), f32 operands + exact reciprocals.
    for gb in (1, B):
        out = psb_block_forward(params, in_dict, compute_dtype=jnp.float32,
                                approx_recip=False, batch_group=gb)
        slots_f32 = jax.block_until_ready(out['prev_slots'])
        assert slots_f32.shape == (B, T, N, D)
        err = float(jnp.max(jnp.abs(slots_f32 - ref)))
        assert err < 5e-3, f"f32 kernel (batch_group={gb}) mismatch vs reference: {err}"

    # 2) fast path with device-auto config (bf16 matmuls on v6e/v7x, f32 on v5e; fused batch
    #    on single-TC chips) + EUP approximate reciprocals.
    out_fast = psb_block_forward(params, in_dict)
    slots_fast = jax.block_until_ready(out_fast['prev_slots'])
    assert slots_fast.shape == (B, T, N, D)
    rel = float(jnp.linalg.norm(slots_fast - ref) / jnp.linalg.norm(ref))
    assert rel < 0.05, f"fast-path kernel relative error vs reference too large: {rel}"

    print("KERNEL_OK")
</pallas_src>

<mosaic_0001>
module attributes {stable_mosaic.version = 11 : i64} {
  func.func @_psb_fused_kernel(%arg0: i32, %arg1: memref<1x32x32xf32, #tpu.memory_space<vmem>>, %arg2: memref<1x64x32xf32, #tpu.memory_space<vmem>>, %arg3: memref<32x160xf32, #tpu.memory_space<vmem>>, %arg4: memref<14x64xf32, #tpu.memory_space<vmem>>, %arg5: memref<32x448xf32, #tpu.memory_space<vmem>>, %arg6: memref<64x32xf32, #tpu.memory_space<vmem>>, %arg7: memref<1x32x32xf32, #tpu.memory_space<vmem>>) attributes {dimension_semantics = [#tpu.dimension_semantics<parallel>], iteration_bounds = array<i64: 2>, scalar_prefetch = 0 : i64, scratch_operands = 0 : i64, tpu.core_type = #tpu.core_type<tc>, window_params = [{transform_indices = @transform_0, window_bounds = array<i64: 1, 32, 32>}, {transform_indices = @transform_1, window_bounds = array<i64: 1, 64, 32>}, {pipeline_mode = #tpu.pipeline_mode<synchronous>, transform_indices = @transform_2, window_bounds = array<i64: 32, 160>}, {pipeline_mode = #tpu.pipeline_mode<synchronous>, transform_indices = @transform_3, window_bounds = array<i64: 14, 64>}, {pipeline_mode = #tpu.pipeline_mode<synchronous>, transform_indices = @transform_4, window_bounds = array<i64: 32, 448>}, {pipeline_mode = #tpu.pipeline_mode<synchronous>, transform_indices = @transform_5, window_bounds = array<i64: 64, 32>}, {transform_indices = @transform_6, window_bounds = array<i64: 1, 32, 32>}]} {
    %c0 = arith.constant 0 : index
    %c0_0 = arith.constant 0 : index
    %0 = vector.load %arg3[%c0, %c0_0] : memref<32x160xf32, #tpu.memory_space<vmem>>, vector<32x64xf32>
    %c0_1 = arith.constant 0 : index
    %c64 = arith.constant 64 : index
    %1 = vector.load %arg3[%c0_1, %c64] : memref<32x160xf32, #tpu.memory_space<vmem>>, vector<32x32xf32>
    %c0_2 = arith.constant 0 : index
    %c96 = arith.constant 96 : index
    %2 = vector.load %arg3[%c0_2, %c96] : memref<32x160xf32, #tpu.memory_space<vmem>>, vector<32x32xf32>
    %c0_3 = arith.constant 0 : index
    %c128 = arith.constant 128 : index
    %3 = vector.load %arg3[%c0_3, %c128] : memref<32x160xf32, #tpu.memory_space<vmem>>, vector<32x32xf32>
    %c0_4 = arith.constant 0 : index
    %c0_5 = arith.constant 0 : index
    %4 = vector.load %arg4[%c0_4, %c0_5] : memref<14x64xf32, #tpu.memory_space<vmem>>, vector<1x32xf32>
    %c1 = arith.constant 1 : index
    %c0_6 = arith.constant 0 : index
    %5 = vector.load %arg4[%c1, %c0_6] : memref<14x64xf32, #tpu.memory_space<vmem>>, vector<1x32xf32>
    %c2 = arith.constant 2 : index
    %c0_7 = arith.constant 0 : index
    %6 = vector.load %arg4[%c2, %c0_7] : memref<14x64xf32, #tpu.memory_space<vmem>>, vector<1x32xf32>
    %c3 = arith.constant 3 : index
    %c0_8 = arith.constant 0 : index
    %7 = vector.load %arg4[%c3, %c0_8] : memref<14x64xf32, #tpu.memory_space<vmem>>, vector<1x32xf32>
    %c4 = arith.constant 4 : index
    %c0_9 = arith.constant 0 : index
    %8 = vector.load %arg4[%c4, %c0_9] : memref<14x64xf32, #tpu.memory_space<vmem>>, vector<1x32xf32>
    %c5 = arith.constant 5 : index
    %c0_10 = arith.constant 0 : index
    %9 = vector.load %arg4[%c5, %c0_10] : memref<14x64xf32, #tpu.memory_space<vmem>>, vector<1x32xf32>
    %c6 = arith.constant 6 : index
    %c0_11 = arith.constant 0 : index
    %10 = vector.load %arg4[%c6, %c0_11] : memref<14x64xf32, #tpu.memory_space<vmem>>, vector<1x32xf32>
    %c7 = arith.constant 7 : index
    %c0_12 = arith.constant 0 : index
    %11 = vector.load %arg4[%c7, %c0_12] : memref<14x64xf32, #tpu.memory_space<vmem>>, vector<1x32xf32>
    %c8 = arith.constant 8 : index
    %c0_13 = arith.constant 0 : index
    %12 = vector.load %arg4[%c8, %c0_13] : memref<14x64xf32, #tpu.memory_space<vmem>>, vector<1x32xf32>
    %c9 = arith.constant 9 : index
    %c0_14 = arith.constant 0 : index
    %13 = vector.load %arg4[%c9, %c0_14] : memref<14x64xf32, #tpu.memory_space<vmem>>, vector<1x32xf32>
    %c10 = arith.constant 10 : index
    %c0_15 = arith.constant 0 : index
    %14 = vector.load %arg4[%c10, %c0_15] : memref<14x64xf32, #tpu.memory_space<vmem>>, vector<1x32xf32>
    %c11 = arith.constant 11 : index
    %c0_16 = arith.constant 0 : index
    %15 = vector.load %arg4[%c11, %c0_16] : memref<14x64xf32, #tpu.memory_space<vmem>>, vector<1x32xf32>
    %c12 = arith.constant 12 : index
    %c0_17 = arith.constant 0 : index
    %16 = vector.load %arg4[%c12, %c0_17] : memref<14x64xf32, #tpu.memory_space<vmem>>, vector<1x32xf32>
    %c13 = arith.constant 13 : index
    %c0_18 = arith.constant 0 : index
    %17 = vector.load %arg4[%c13, %c0_18] : memref<14x64xf32, #tpu.memory_space<vmem>>, vector<1x64xf32>
    %c0_19 = arith.constant 0 : index
    %c0_20 = arith.constant 0 : index
    %18 = vector.load %arg5[%c0_19, %c0_20] : memref<32x448xf32, #tpu.memory_space<vmem>>, vector<32x32xf32>
    %c0_21 = arith.constant 0 : index
    %c32 = arith.constant 32 : index
    %19 = vector.load %arg5[%c0_21, %c32] : memref<32x448xf32, #tpu.memory_space<vmem>>, vector<32x32xf32>
    %c0_22 = arith.constant 0 : index
    %c64_23 = arith.constant 64 : index
    %20 = vector.load %arg5[%c0_22, %c64_23] : memref<32x448xf32, #tpu.memory_space<vmem>>, vector<32x32xf32>
    %c0_24 = arith.constant 0 : index
    %c96_25 = arith.constant 96 : index
    %21 = vector.load %arg5[%c0_24, %c96_25] : memref<32x448xf32, #tpu.memory_space<vmem>>, vector<32x32xf32>
    %c0_26 = arith.constant 0 : index
    %c128_27 = arith.constant 128 : index
    %22 = vector.load %arg5[%c0_26, %c128_27] : memref<32x448xf32, #tpu.memory_space<vmem>>, vector<32x96xf32>
    %c0_28 = arith.constant 0 : index
    %c224 = arith.constant 224 : index
    %23 = vector.load %arg5[%c0_28, %c224] : memref<32x448xf32, #tpu.memory_space<vmem>>, vector<32x32xf32>
    %c0_29 = arith.constant 0 : index
    %c256 = arith.constant 256 : index
    %24 = vector.load %arg5[%c0_29, %c256] : memref<32x448xf32, #tpu.memory_space<vmem>>, vector<32x96xf32>
    %c0_30 = arith.constant 0 : index
    %c352 = arith.constant 352 : index
    %25 = vector.load %arg5[%c0_30, %c352] : memref<32x448xf32, #tpu.memory_space<vmem>>, vector<32x32xf32>
    %c0_31 = arith.constant 0 : index
    %c384 = arith.constant 384 : index
    %26 = vector.load %arg5[%c0_31, %c384] : memref<32x448xf32, #tpu.memory_space<vmem>>, vector<32x64xf32>
    %c0_32 = arith.constant 0 : index
    %c0_33 = arith.constant 0 : index
    %27 = vector.load %arg6[%c0_32, %c0_33] : memref<64x32xf32, #tpu.memory_space<vmem>>, vector<64x32xf32>
    %c0_34 = arith.constant 0 : index
    %c0_35 = arith.constant 0 : index
    %c0_36 = arith.constant 0 : index
    %28 = vector.load %arg1[%c0_34, %c0_35, %c0_36] : memref<1x32x32xf32, #tpu.memory_space<vmem>>, vector<1x32x32xf32>
    %29 = vector.shape_cast %28 : vector<1x32x32xf32> to vector<32x32xf32>
    %cst = arith.constant dense<0.000000e+00> : vector<32xf32>
    %30 = vector.multi_reduction <add>, %29, %cst [1] : vector<32x32xf32> to vector<32xf32>
    %31 = vector.shape_cast %30 : vector<32xf32> to vector<32x1xf32>
    %cst_37 = arith.constant 3.200000e+01 : f32
    %32 = vector.broadcast %cst_37 : f32 to vector<32x1xf32>
    %33 = arith.divf %31, %32 : vector<32x1xf32>
    %34 = vector.broadcast %33 : vector<32x1xf32> to vector<32x32xf32>
    %35 = arith.subf %29, %34 : vector<32x32xf32>
    %36 = arith.mulf %35, %35 : vector<32x32xf32>
    %cst_38 = arith.constant dense<0.000000e+00> : vector<32xf32>
    %37 = vector.multi_reduction <add>, %36, %cst_38 [1] : vector<32x32xf32> to vector<32xf32>
    %38 = vector.shape_cast %37 : vector<32xf32> to vector<32x1xf32>
    %cst_39 = arith.constant 3.200000e+01 : f32
    %39 = vector.broadcast %cst_39 : f32 to vector<32x1xf32>
    %40 = arith.divf %38, %39 : vector<32x1xf32>
    %41 = vector.broadcast %33 : vector<32x1xf32> to vector<32x32xf32>
    %42 = arith.subf %29, %41 : vector<32x32xf32>
    %cst_40 = arith.constant 9.99999974E-6 : f32
    %43 = vector.broadcast %cst_40 : f32 to vector<32x1xf32>
    %44 = arith.addf %40, %43 : vector<32x1xf32>
    %45 = math.rsqrt %44 : vector<32x1xf32>
    %46 = vector.broadcast %45 : vector<32x1xf32> to vector<32x32xf32>
    %47 = arith.mulf %42, %46 : vector<32x32xf32>
    %48 = vector.broadcast %4 : vector<1x32xf32> to vector<32x32xf32>
    %49 = arith.mulf %47, %48 : vector<32x32xf32>
    %50 = vector.broadcast %5 : vector<1x32xf32> to vector<32x32xf32>
    %51 = arith.addf %49, %50 : vector<32x32xf32>
    %52 = arith.addf %51, %3 : vector<32x32xf32>
    %c0_41 = arith.constant 0 : index
    %c0_42 = arith.constant 0 : index
    %c0_43 = arith.constant 0 : index
    %53 = vector.load %arg2[%c0_41, %c0_42, %c0_43] : memref<1x64x32xf32, #tpu.memory_space<vmem>>, vector<1x64x32xf32>
    %54 = vector.shape_cast %53 : vector<1x64x32xf32> to vector<64x32xf32>
    %cst_44 = arith.constant dense<0.000000e+00> : vector<64xf32>
    %55 = vector.multi_reduction <add>, %54, %cst_44 [1] : vector<64x32xf32> to vector<64xf32>
    %56 = vector.shape_cast %55 : vector<64xf32> to vector<64x1xf32>
    %cst_45 = arith.constant 3.200000e+01 : f32
    %57 = vector.broadcast %cst_45 : f32 to vector<64x1xf32>
    %58 = arith.divf %56, %57 : vector<64x1xf32>
    %59 = vector.broadcast %58 : vector<64x1xf32> to vector<64x32xf32>
    %60 = arith.subf %54, %59 : vector<64x32xf32>
    %61 = arith.mulf %60, %60 : vector<64x32xf32>
    %cst_46 = arith.constant dense<0.000000e+00> : vector<64xf32>
    %62 = vector.multi_reduction <add>, %61, %cst_46 [1] : vector<64x32xf32> to vector<64xf32>
    %63 = vector.shape_cast %62 : vector<64xf32> to vector<64x1xf32>
    %cst_47 = arith.constant 3.200000e+01 : f32
    %64 = vector.broadcast %cst_47 : f32 to vector<64x1xf32>
    %65 = arith.divf %63, %64 : vector<64x1xf32>
    %66 = vector.broadcast %58 : vector<64x1xf32> to vector<64x32xf32>
    %67 = arith.subf %54, %66 : vector<64x32xf32>
    %cst_48 = arith.constant 9.99999974E-6 : f32
    %68 = vector.broadcast %cst_48 : f32 to vector<64x1xf32>
    %69 = arith.addf %65, %68 : vector<64x1xf32>
    %70 = math.rsqrt %69 : vector<64x1xf32>
    %71 = vector.broadcast %70 : vector<64x1xf32> to vector<64x32xf32>
    %72 = arith.mulf %67, %71 : vector<64x32xf32>
    %73 = vector.broadcast %6 : vector<1x32xf32> to vector<64x32xf32>
    %74 = arith.mulf %72, %73 : vector<64x32xf32>
    %75 = vector.broadcast %7 : vector<1x32xf32> to vector<64x32xf32>
    %76 = arith.addf %74, %75 : vector<64x32xf32>
    %cst_49 = arith.constant dense<0.000000e+00> : vector<32x32xf32>
    %77 = tpu.matmul %52, %18, %cst_49 {dimension_numbers = #tpu.dot_dimension_numbers<[1], [0], [0], [1], [0, 0, 1, 1], [], []>} : vector<32x32xf32>, vector<32x32xf32>, vector<32x32xf32> -> vector<32x32xf32>
    %cst_50 = arith.constant dense<0.000000e+00> : vector<64x32xf32>
    %78 = tpu.matmul %76, %19, %cst_50 {dimension_numbers = #tpu.dot_dimension_numbers<[1], [0], [0], [1], [0, 0, 1, 1], [], []>} : vector<64x32xf32>, vector<32x32xf32>, vector<64x32xf32> -> vector<64x32xf32>
    %cst_51 = arith.constant dense<0.000000e+00> : vector<64x32xf32>
    %79 = tpu.matmul %76, %20, %cst_51 {dimension_numbers = #tpu.dot_dimension_numbers<[1], [0], [0], [1], [0, 0, 1, 1], [], []>} : vector<64x32xf32>, vector<32x32xf32>, vector<64x32xf32> -> vector<64x32xf32>
    "tpu.trace_start"() <{level = 10 : i32, message = "nd,ld->nl"}> : () -> ()
    %cst_52 = arith.constant dense<0.000000e+00> : vector<32x64xf32>
    %80 = tpu.matmul %77, %78, %cst_52 {dimension_numbers = #tpu.dot_dimension_numbers<[1], [1], [0], [0], [0, 0, 1, 0], [], []>} : vector<32x32xf32>, vector<64x32xf32>, vector<32x64xf32> -> vector<32x64xf32>
    "tpu.trace_stop"() : () -> ()
    %81 = arith.addf %80, %0 : vector<32x64xf32>
    %cst_53 = arith.constant dense<0xFF800000> : vector<64xf32>
    %82 = vector.multi_reduction <maximumf>, %81, %cst_53 [0] : vector<32x64xf32> to vector<64xf32>
    %83 = vector.shape_cast %82 : vector<64xf32> to vector<1x64xf32>
    %84 = vector.broadcast %83 : vector<1x64xf32> to vector<32x64xf32>
    %85 = arith.subf %81, %84 : vector<32x64xf32>
    %86 = math.exp %85 : vector<32x64xf32>
    %cst_54 = arith.constant dense<0.000000e+00> : vector<64xf32>
    %87 = vector.multi_reduction <add>, %86, %cst_54 [0] : vector<32x64xf32> to vector<64xf32>
    %88 = vector.shape_cast %87 : vector<64xf32> to vector<1x64xf32>
    %cst_55 = arith.constant 1.000000e+00 : f32
    %89 = vector.broadcast %cst_55 : f32 to vector<1x64xf32>
    %90 = arith.divf %89, %88 : vector<1x64xf32>
    %91 = vector.broadcast %90 : vector<1x64xf32> to vector<32x64xf32>
    %92 = arith.mulf %86, %91 : vector<32x64xf32>
    %cst_56 = arith.constant 1.000000e-10 : f32
    %93 = vector.broadcast %cst_56 : f32 to vector<32x64xf32>
    %94 = arith.addf %92, %93 : vector<32x64xf32>
    %cst_57 = arith.constant dense<0.000000e+00> : vector<32xf32>
    %95 = vector.multi_reduction <add>, %94, %cst_57 [1] : vector<32x64xf32> to vector<32xf32>
    %96 = vector.shape_cast %95 : vector<32xf32> to vector<32x1xf32>
    %cst_58 = arith.constant 1.000000e+00 : f32
    %97 = vector.broadcast %cst_58 : f32 to vector<32x1xf32>
    %98 = arith.divf %97, %96 : vector<32x1xf32>
    %99 = vector.broadcast %98 : vector<32x1xf32> to vector<32x64xf32>
    %100 = arith.mulf %92, %99 : vector<32x64xf32>
    %cst_59 = arith.constant dense<0.000000e+00> : vector<32x32xf32>
    %101 = tpu.matmul %100, %79, %cst_59 {dimension_numbers = #tpu.dot_dimension_numbers<[1], [0], [0], [1], [0, 0, 1, 1], [], []>} : vector<32x64xf32>, vector<64x32xf32>, vector<32x32xf32> -> vector<32x32xf32>
    %cst_60 = arith.constant dense<0.000000e+00> : vector<32x32xf32>
    %102 = tpu.matmul %101, %21, %cst_60 {dimension_numbers = #tpu.dot_dimension_numbers<[1], [0], [0], [1], [0, 0, 1, 1], [], []>} : vector<32x32xf32>, vector<32x32xf32>, vector<32x32xf32> -> vector<32x32xf32>
    %103 = arith.addf %52, %102 : vector<32x32xf32>
    %cst_61 = arith.constant dense<0.000000e+00> : vector<32xf32>
    %104 = vector.multi_reduction <add>, %103, %cst_61 [1] : vector<32x32xf32> to vector<32xf32>
    %105 = vector.shape_cast %104 : vector<32xf32> to vector<32x1xf32>
    %cst_62 = arith.constant 3.200000e+01 : f32
    %106 = vector.broadcast %cst_62 : f32 to vector<32x1xf32>
    %107 = arith.divf %105, %106 : vector<32x1xf32>
    %108 = vector.broadcast %107 : vector<32x1xf32> to vector<32x32xf32>
    %109 = arith.subf %103, %108 : vector<32x32xf32>
    %110 = arith.mulf %109, %109 : vector<32x32xf32>
    %cst_63 = arith.constant dense<0.000000e+00> : vector<32xf32>
    %111 = vector.multi_reduction <add>, %110, %cst_63 [1] : vector<32x32xf32> to vector<32xf32>
    %112 = vector.shape_cast %111 : vector<32xf32> to vector<32x1xf32>
    %cst_64 = arith.constant 3.200000e+01 : f32
    %113 = vector.broadcast %cst_64 : f32 to vector<32x1xf32>
    %114 = arith.divf %112, %113 : vector<32x1xf32>
    %115 = vector.broadcast %107 : vector<32x1xf32> to vector<32x32xf32>
    %116 = arith.subf %103, %115 : vector<32x32xf32>
    %cst_65 = arith.constant 9.99999974E-6 : f32
    %117 = vector.broadcast %cst_65 : f32 to vector<32x1xf32>
    %118 = arith.addf %114, %117 : vector<32x1xf32>
    %119 = math.rsqrt %118 : vector<32x1xf32>
    %120 = vector.broadcast %119 : vector<32x1xf32> to vector<32x32xf32>
    %121 = arith.mulf %116, %120 : vector<32x32xf32>
    %122 = vector.broadcast %8 : vector<1x32xf32> to vector<32x32xf32>
    %123 = arith.mulf %121, %122 : vector<32x32xf32>
    %124 = vector.broadcast %9 : vector<1x32xf32> to vector<32x32xf32>
    %125 = arith.addf %123, %124 : vector<32x32xf32>
    %cst_66 = arith.constant dense<0.000000e+00> : vector<32x96xf32>
    %126 = tpu.matmul %125, %22, %cst_66 {dimension_numbers = #tpu.dot_dimension_numbers<[1], [0], [0], [1], [0, 0, 1, 1], [], []>} : vector<32x32xf32>, vector<32x96xf32>, vector<32x96xf32> -> vector<32x96xf32>
    %127 = vector.extract_strided_slice %126 {offsets = [0, 0], sizes = [32, 8], strides = [1, 1]} : vector<32x96xf32> to vector<32x8xf32>
    %128 = vector.extract_strided_slice %126 {offsets = [0, 32], sizes = [32, 8], strides = [1, 1]} : vector<32x96xf32> to vector<32x8xf32>
    %129 = vector.extract_strided_slice %126 {offsets = [0, 64], sizes = [32, 8], strides = [1, 1]} : vector<32x96xf32> to vector<32x8xf32>
    "tpu.trace_start"() <{level = 10 : i32, message = "sd,td->st"}> : () -> ()
    %cst_67 = arith.constant dense<0.000000e+00> : vector<32x32xf32>
    %130 = tpu.matmul %127, %128, %cst_67 {dimension_numbers = #tpu.dot_dimension_numbers<[1], [1], [0], [0], [0, 0, 1, 0], [], []>} : vector<32x8xf32>, vector<32x8xf32>, vector<32x32xf32> -> vector<32x32xf32>
    "tpu.trace_stop"() : () -> ()
    %131 = arith.addf %130, %1 : vector<32x32xf32>
    %cst_68 = arith.constant dense<0xFF800000> : vector<32xf32>
    %132 = vector.multi_reduction <maximumf>, %131, %cst_68 [1] : vector<32x32xf32> to vector<32xf32>
    %133 = vector.shape_cast %132 : vector<32xf32> to vector<32x1xf32>
    %134 = vector.broadcast %133 : vector<32x1xf32> to vector<32x32xf32>
    %135 = arith.subf %131, %134 : vector<32x32xf32>
    %136 = math.exp %135 : vector<32x32xf32>
    %cst_69 = arith.constant dense<0.000000e+00> : vector<32xf32>
    %137 = vector.multi_reduction <add>, %136, %cst_69 [1] : vector<32x32xf32> to vector<32xf32>
    %138 = vector.shape_cast %137 : vector<32xf32> to vector<32x1xf32>
    %cst_70 = arith.constant 1.000000e+00 : f32
    %139 = vector.broadcast %cst_70 : f32 to vector<32x1xf32>
    %140 = arith.divf %139, %138 : vector<32x1xf32>
    %141 = vector.broadcast %140 : vector<32x1xf32> to vector<32x32xf32>
    %142 = arith.mulf %136, %141 : vector<32x32xf32>
    %cst_71 = arith.constant dense<0.000000e+00> : vector<32x8xf32>
    %143 = tpu.matmul %142, %129, %cst_71 {dimension_numbers = #tpu.dot_dimension_numbers<[1], [0], [0], [1], [0, 0, 1, 1], [], []>} : vector<32x32xf32>, vector<32x8xf32>, vector<32x8xf32> -> vector<32x8xf32>
    %144 = vector.extract_strided_slice %126 {offsets = [0, 8], sizes = [32, 8], strides = [1, 1]} : vector<32x96xf32> to vector<32x8xf32>
    %145 = vector.extract_strided_slice %126 {offsets = [0, 40], sizes = [32, 8], strides = [1, 1]} : vector<32x96xf32> to vector<32x8xf32>
    %146 = vector.extract_strided_slice %126 {offsets = [0, 72], sizes = [32, 8], strides = [1, 1]} : vector<32x96xf32> to vector<32x8xf32>
    "tpu.trace_start"() <{level = 10 : i32, message = "sd,td->st"}> : () -> ()
    %cst_72 = arith.constant dense<0.000000e+00> : vector<32x32xf32>
    %147 = tpu.matmul %144, %145, %cst_72 {dimension_numbers = #tpu.dot_dimension_numbers<[1], [1], [0], [0], [0, 0, 1, 0], [], []>} : vector<32x8xf32>, vector<32x8xf32>, vector<32x32xf32> -> vector<32x32xf32>
    "tpu.trace_stop"() : () -> ()
    %148 = arith.addf %147, %1 : vector<32x32xf32>
    %cst_73 = arith.constant dense<0xFF800000> : vector<32xf32>
    %149 = vector.multi_reduction <maximumf>, %148, %cst_73 [1] : vector<32x32xf32> to vector<32xf32>
    %150 = vector.shape_cast %149 : vector<32xf32> to vector<32x1xf32>
    %151 = vector.broadcast %150 : vector<32x1xf32> to vector<32x32xf32>
    %152 = arith.subf %148, %151 : vector<32x32xf32>
    %153 = math.exp %152 : vector<32x32xf32>
    %cst_74 = arith.constant dense<0.000000e+00> : vector<32xf32>
    %154 = vector.multi_reduction <add>, %153, %cst_74 [1] : vector<32x32xf32> to vector<32xf32>
    %155 = vector.shape_cast %154 : vector<32xf32> to vector<32x1xf32>
    %cst_75 = arith.constant 1.000000e+00 : f32
    %156 = vector.broadcast %cst_75 : f32 to vector<32x1xf32>
    %157 = arith.divf %156, %155 : vector<32x1xf32>
    %158 = vector.broadcast %157 : vector<32x1xf32> to vector<32x32xf32>
    %159 = arith.mulf %153, %158 : vector<32x32xf32>
    %cst_76 = arith.constant dense<0.000000e+00> : vector<32x8xf32>
    %160 = tpu.matmul %159, %146, %cst_76 {dimension_numbers = #tpu.dot_dimension_numbers<[1], [0], [0], [1], [0, 0, 1, 1], [], []>} : vector<32x32xf32>, vector<32x8xf32>, vector<32x8xf32> -> vector<32x8xf32>
    %161 = vector.extract_strided_slice %126 {offsets = [0, 16], sizes = [32, 8], strides = [1, 1]} : vector<32x96xf32> to vector<32x8xf32>
    %162 = vector.extract_strided_slice %126 {offsets = [0, 48], sizes = [32, 8], strides = [1, 1]} : vector<32x96xf32> to vector<32x8xf32>
    %163 = vector.extract_strided_slice %126 {offsets = [0, 80], sizes = [32, 8], strides = [1, 1]} : vector<32x96xf32> to vector<32x8xf32>
    "tpu.trace_start"() <{level = 10 : i32, message = "sd,td->st"}> : () -> ()
    %cst_77 = arith.constant dense<0.000000e+00> : vector<32x32xf32>
    %164 = tpu.matmul %161, %162, %cst_77 {dimension_numbers = #tpu.dot_dimension_numbers<[1], [1], [0], [0], [0, 0, 1, 0], [], []>} : vector<32x8xf32>, vector<32x8xf32>, vector<32x32xf32> -> vector<32x32xf32>
    "tpu.trace_stop"() : () -> ()
    %165 = arith.addf %164, %1 : vector<32x32xf32>
    %cst_78 = arith.constant dense<0xFF800000> : vector<32xf32>
    %166 = vector.multi_reduction <maximumf>, %165, %cst_78 [1] : vector<32x32xf32> to vector<32xf32>
    %167 = vector.shape_cast %166 : vector<32xf32> to vector<32x1xf32>
    %168 = vector.broadcast %167 : vector<32x1xf32> to vector<32x32xf32>
    %169 = arith.subf %165, %168 : vector<32x32xf32>
    %170 = math.exp %169 : vector<32x32xf32>
    %cst_79 = arith.constant dense<0.000000e+00> : vector<32xf32>
    %171 = vector.multi_reduction <add>, %170, %cst_79 [1] : vector<32x32xf32> to vector<32xf32>
    %172 = vector.shape_cast %171 : vector<32xf32> to vector<32x1xf32>
    %cst_80 = arith.constant 1.000000e+00 : f32
    %173 = vector.broadcast %cst_80 : f32 to vector<32x1xf32>
    %174 = arith.divf %173, %172 : vector<32x1xf32>
    %175 = vector.broadcast %174 : vector<32x1xf32> to vector<32x32xf32>
    %176 = arith.mulf %170, %175 : vector<32x32xf32>
    %cst_81 = arith.constant dense<0.000000e+00> : vector<32x8xf32>
    %177 = tpu.matmul %176, %163, %cst_81 {dimension_numbers = #tpu.dot_dimension_numbers<[1], [0], [0], [1], [0, 0, 1, 1], [], []>} : vector<32x32xf32>, vector<32x8xf32>, vector<32x8xf32> -> vector<32x8xf32>
    %178 = vector.extract_strided_slice %126 {offsets = [0, 24], sizes = [32, 8], strides = [1, 1]} : vector<32x96xf32> to vector<32x8xf32>
    %179 = vector.extract_strided_slice %126 {offsets = [0, 56], sizes = [32, 8], strides = [1, 1]} : vector<32x96xf32> to vector<32x8xf32>
    %180 = vector.extract_strided_slice %126 {offsets = [0, 88], sizes = [32, 8], strides = [1, 1]} : vector<32x96xf32> to vector<32x8xf32>
    "tpu.trace_start"() <{level = 10 : i32, message = "sd,td->st"}> : () -> ()
    %cst_82 = arith.constant dense<0.000000e+00> : vector<32x32xf32>
    %181 = tpu.matmul %178, %179, %cst_82 {dimension_numbers = #tpu.dot_dimension_numbers<[1], [1], [0], [0], [0, 0, 1, 0], [], []>} : vector<32x8xf32>, vector<32x8xf32>, vector<32x32xf32> -> vector<32x32xf32>
    "tpu.trace_stop"() : () -> ()
    %182 = arith.addf %181, %1 : vector<32x32xf32>
    %cst_83 = arith.constant dense<0xFF800000> : vector<32xf32>
    %183 = vector.multi_reduction <maximumf>, %182, %cst_83 [1] : vector<32x32xf32> to vector<32xf32>
    %184 = vector.shape_cast %183 : vector<32xf32> to vector<32x1xf32>
    %185 = vector.broadcast %184 : vector<32x1xf32> to vector<32x32xf32>
    %186 = arith.subf %182, %185 : vector<32x32xf32>
    %187 = math.exp %186 : vector<32x32xf32>
    %cst_84 = arith.constant dense<0.000000e+00> : vector<32xf32>
    %188 = vector.multi_reduction <add>, %187, %cst_84 [1] : vector<32x32xf32> to vector<32xf32>
    %189 = vector.shape_cast %188 : vector<32xf32> to vector<32x1xf32>
    %cst_85 = arith.constant 1.000000e+00 : f32
    %190 = vector.broadcast %cst_85 : f32 to vector<32x1xf32>
    %191 = arith.divf %190, %189 : vector<32x1xf32>
    %192 = vector.broadcast %191 : vector<32x1xf32> to vector<32x32xf32>
    %193 = arith.mulf %187, %192 : vector<32x32xf32>
    %cst_86 = arith.constant dense<0.000000e+00> : vector<32x8xf32>
    %194 = tpu.matmul %193, %180, %cst_86 {dimension_numbers = #tpu.dot_dimension_numbers<[1], [0], [0], [1], [0, 0, 1, 1], [], []>} : vector<32x32xf32>, vector<32x8xf32>, vector<32x8xf32> -> vector<32x8xf32>
    %195 = tpu.concatenate %143, %160, %177, %194 in 1 : vector<32x8xf32>, vector<32x8xf32>, vector<32x8xf32>, vector<32x8xf32> -> vector<32x32xf32>
    %cst_87 = arith.constant dense<0.000000e+00> : vector<32x32xf32>
    %196 = tpu.matmul %195, %23, %cst_87 {dimension_numbers = #tpu.dot_dimension_numbers<[1], [0], [0], [1], [0, 0, 1, 1], [], []>} : vector<32x32xf32>, vector<32x32xf32>, vector<32x32xf32> -> vector<32x32xf32>
    %197 = vector.broadcast %10 : vector<1x32xf32> to vector<32x32xf32>
    %198 = arith.addf %196, %197 : vector<32x32xf32>
    %199 = arith.addf %125, %198 : vector<32x32xf32>
    %cst_88 = arith.constant dense<0.000000e+00> : vector<32xf32>
    %200 = vector.multi_reduction <add>, %199, %cst_88 [1] : vector<32x32xf32> to vector<32xf32>
    %201 = vector.shape_cast %200 : vector<32xf32> to vector<32x1xf32>
    %cst_89 = arith.constant 3.200000e+01 : f32
    %202 = vector.broadcast %cst_89 : f32 to vector<32x1xf32>
    %203 = arith.divf %201, %202 : vector<32x1xf32>
    %204 = vector.broadcast %203 : vector<32x1xf32> to vector<32x32xf32>
    %205 = arith.subf %199, %204 : vector<32x32xf32>
    %206 = arith.mulf %205, %205 : vector<32x32xf32>
    %cst_90 = arith.constant dense<0.000000e+00> : vector<32xf32>
    %207 = vector.multi_reduction <add>, %206, %cst_90 [1] : vector<32x32xf32> to vector<32xf32>
    %208 = vector.shape_cast %207 : vector<32xf32> to vector<32x1xf32>
    %cst_91 = arith.constant 3.200000e+01 : f32
    %209 = vector.broadcast %cst_91 : f32 to vector<32x1xf32>
    %210 = arith.divf %208, %209 : vector<32x1xf32>
    %211 = vector.broadcast %203 : vector<32x1xf32> to vector<32x32xf32>
    %212 = arith.subf %199, %211 : vector<32x32xf32>
    %cst_92 = arith.constant 9.99999974E-6 : f32
    %213 = vector.broadcast %cst_92 : f32 to vector<32x1xf32>
    %214 = arith.addf %210, %213 : vector<32x1xf32>
    %215 = math.rsqrt %214 : vector<32x1xf32>
    %216 = vector.broadcast %215 : vector<32x1xf32> to vector<32x32xf32>
    %217 = arith.mulf %212, %216 : vector<32x32xf32>
    %218 = vector.broadcast %11 : vector<1x32xf32> to vector<32x32xf32>
    %219 = arith.mulf %217, %218 : vector<32x32xf32>
    %220 = vector.broadcast %12 : vector<1x32xf32> to vector<32x32xf32>
    %221 = arith.addf %219, %220 : vector<32x32xf32>
    %cst_93 = arith.constant dense<0.000000e+00> : vector<32x96xf32>
    %222 = tpu.matmul %221, %24, %cst_93 {dimension_numbers = #tpu.dot_dimension_numbers<[1], [0], [0], [1], [0, 0, 1, 1], [], []>} : vector<32x32xf32>, vector<32x96xf32>, vector<32x96xf32> -> vector<32x96xf32>
    %223 = vector.extract_strided_slice %222 {offsets = [0, 0], sizes = [32, 8], strides = [1, 1]} : vector<32x96xf32> to vector<32x8xf32>
    %224 = vector.extract_strided_slice %222 {offsets = [0, 32], sizes = [32, 8], strides = [1, 1]} : vector<32x96xf32> to vector<32x8xf32>
    %225 = vector.extract_strided_slice %222 {offsets = [0, 64], sizes = [32, 8], strides = [1, 1]} : vector<32x96xf32> to vector<32x8xf32>
    "tpu.trace_start"() <{level = 10 : i32, message = "sd,td->st"}> : () -> ()
    %cst_94 = arith.constant dense<0.000000e+00> : vector<32x32xf32>
    %226 = tpu.matmul %223, %224, %cst_94 {dimension_numbers = #tpu.dot_dimension_numbers<[1], [1], [0], [0], [0, 0, 1, 0], [], []>} : vector<32x8xf32>, vector<32x8xf32>, vector<32x32xf32> -> vector<32x32xf32>
    "tpu.trace_stop"() : () -> ()
    %227 = arith.addf %226, %2 : vector<32x32xf32>
    %cst_95 = arith.constant dense<0xFF800000> : vector<32xf32>
    %228 = vector.multi_reduction <maximumf>, %227, %cst_95 [1] : vector<32x32xf32> to vector<32xf32>
    %229 = vector.shape_cast %228 : vector<32xf32> to vector<32x1xf32>
    %230 = vector.broadcast %229 : vector<32x1xf32> to vector<32x32xf32>
    %231 = arith.subf %227, %230 : vector<32x32xf32>
    %232 = math.exp %231 : vector<32x32xf32>
    %cst_96 = arith.constant dense<0.000000e+00> : vector<32xf32>
    %233 = vector.multi_reduction <add>, %232, %cst_96 [1] : vector<32x32xf32> to vector<32xf32>
    %234 = vector.shape_cast %233 : vector<32xf32> to vector<32x1xf32>
    %cst_97 = arith.constant 1.000000e+00 : f32
    %235 = vector.broadcast %cst_97 : f32 to vector<32x1xf32>
    %236 = arith.divf %235, %234 : vector<32x1xf32>
    %237 = vector.broadcast %236 : vector<32x1xf32> to vector<32x32xf32>
    %238 = arith.mulf %232, %237 : vector<32x32xf32>
    %cst_98 = arith.constant dense<0.000000e+00> : vector<32x8xf32>
    %239 = tpu.matmul %238, %225, %cst_98 {dimension_numbers = #tpu.dot_dimension_numbers<[1], [0], [0], [1], [0, 0, 1, 1], [], []>} : vector<32x32xf32>, vector<32x8xf32>, vector<32x8xf32> -> vector<32x8xf32>
    %240 = vector.extract_strided_slice %222 {offsets = [0, 8], sizes = [32, 8], strides = [1, 1]} : vector<32x96xf32> to vector<32x8xf32>
    %241 = vector.extract_strided_slice %222 {offsets = [0, 40], sizes = [32, 8], strides = [1, 1]} : vector<32x96xf32> to vector<32x8xf32>
    %242 = vector.extract_strided_slice %222 {offsets = [0, 72], sizes = [32, 8], strides = [1, 1]} : vector<32x96xf32> to vector<32x8xf32>
    "tpu.trace_start"() <{level = 10 : i32, message = "sd,td->st"}> : () -> ()
    %cst_99 = arith.constant dense<0.000000e+00> : vector<32x32xf32>
    %243 = tpu.matmul %240, %241, %cst_99 {dimension_numbers = #tpu.dot_dimension_numbers<[1], [1], [0], [0], [0, 0, 1, 0], [], []>} : vector<32x8xf32>, vector<32x8xf32>, vector<32x32xf32> -> vector<32x32xf32>
    "tpu.trace_stop"() : () -> ()
    %244 = arith.addf %243, %2 : vector<32x32xf32>
    %cst_100 = arith.constant dense<0xFF800000> : vector<32xf32>
    %245 = vector.multi_reduction <maximumf>, %244, %cst_100 [1] : vector<32x32xf32> to vector<32xf32>
    %246 = vector.shape_cast %245 : vector<32xf32> to vector<32x1xf32>
    %247 = vector.broadcast %246 : vector<32x1xf32> to vector<32x32xf32>
    %248 = arith.subf %244, %247 : vector<32x32xf32>
    %249 = math.exp %248 : vector<32x32xf32>
    %cst_101 = arith.constant dense<0.000000e+00> : vector<32xf32>
    %250 = vector.multi_reduction <add>, %249, %cst_101 [1] : vector<32x32xf32> to vector<32xf32>
    %251 = vector.shape_cast %250 : vector<32xf32> to vector<32x1xf32>
    %cst_102 = arith.constant 1.000000e+00 : f32
    %252 = vector.broadcast %cst_102 : f32 to vector<32x1xf32>
    %253 = arith.divf %252, %251 : vector<32x1xf32>
    %254 = vector.broadcast %253 : vector<32x1xf32> to vector<32x32xf32>
    %255 = arith.mulf %249, %254 : vector<32x32xf32>
    %cst_103 = arith.constant dense<0.000000e+00> : vector<32x8xf32>
    %256 = tpu.matmul %255, %242, %cst_103 {dimension_numbers = #tpu.dot_dimension_numbers<[1], [0], [0], [1], [0, 0, 1, 1], [], []>} : vector<32x32xf32>, vector<32x8xf32>, vector<32x8xf32> -> vector<32x8xf32>
    %257 = vector.extract_strided_slice %222 {offsets = [0, 16], sizes = [32, 8], strides = [1, 1]} : vector<32x96xf32> to vector<32x8xf32>
    %258 = vector.extract_strided_slice %222 {offsets = [0, 48], sizes = [32, 8], strides = [1, 1]} : vector<32x96xf32> to vector<32x8xf32>
    %259 = vector.extract_strided_slice %222 {offsets = [0, 80], sizes = [32, 8], strides = [1, 1]} : vector<32x96xf32> to vector<32x8xf32>
    "tpu.trace_start"() <{level = 10 : i32, message = "sd,td->st"}> : () -> ()
    %cst_104 = arith.constant dense<0.000000e+00> : vector<32x32xf32>
    %260 = tpu.matmul %257, %258, %cst_104 {dimension_numbers = #tpu.dot_dimension_numbers<[1], [1], [0], [0], [0, 0, 1, 0], [], []>} : vector<32x8xf32>, vector<32x8xf32>, vector<32x32xf32> -> vector<32x32xf32>
    "tpu.trace_stop"() : () -> ()
    %261 = arith.addf %260, %2 : vector<32x32xf32>
    %cst_105 = arith.constant dense<0xFF800000> : vector<32xf32>
    %262 = vector.multi_reduction <maximumf>, %261, %cst_105 [1] : vector<32x32xf32> to vector<32xf32>
    %263 = vector.shape_cast %262 : vector<32xf32> to vector<32x1xf32>
    %264 = vector.broadcast %263 : vector<32x1xf32> to vector<32x32xf32>
    %265 = arith.subf %261, %264 : vector<32x32xf32>
    %266 = math.exp %265 : vector<32x32xf32>
    %cst_106 = arith.constant dense<0.000000e+00> : vector<32xf32>
    %267 = vector.multi_reduction <add>, %266, %cst_106 [1] : vector<32x32xf32> to vector<32xf32>
    %268 = vector.shape_cast %267 : vector<32xf32> to vector<32x1xf32>
    %cst_107 = arith.constant 1.000000e+00 : f32
    %269 = vector.broadcast %cst_107 : f32 to vector<32x1xf32>
    %270 = arith.divf %269, %268 : vector<32x1xf32>
    %271 = vector.broadcast %270 : vector<32x1xf32> to vector<32x32xf32>
    %272 = arith.mulf %266, %271 : vector<32x32xf32>
    %cst_108 = arith.constant dense<0.000000e+00> : vector<32x8xf32>
    %273 = tpu.matmul %272, %259, %cst_108 {dimension_numbers = #tpu.dot_dimension_numbers<[1], [0], [0], [1], [0, 0, 1, 1], [], []>} : vector<32x32xf32>, vector<32x8xf32>, vector<32x8xf32> -> vector<32x8xf32>
    %274 = vector.extract_strided_slice %222 {offsets = [0, 24], sizes = [32, 8], strides = [1, 1]} : vector<32x96xf32> to vector<32x8xf32>
    %275 = vector.extract_strided_slice %222 {offsets = [0, 56], sizes = [32, 8], strides = [1, 1]} : vector<32x96xf32> to vector<32x8xf32>
    %276 = vector.extract_strided_slice %222 {offsets = [0, 88], sizes = [32, 8], strides = [1, 1]} : vector<32x96xf32> to vector<32x8xf32>
    "tpu.trace_start"() <{level = 10 : i32, message = "sd,td->st"}> : () -> ()
    %cst_109 = arith.constant dense<0.000000e+00> : vector<32x32xf32>
    %277 = tpu.matmul %274, %275, %cst_109 {dimension_numbers = #tpu.dot_dimension_numbers<[1], [1], [0], [0], [0, 0, 1, 0], [], []>} : vector<32x8xf32>, vector<32x8xf32>, vector<32x32xf32> -> vector<32x32xf32>
    "tpu.trace_stop"() : () -> ()
    %278 = arith.addf %277, %2 : vector<32x32xf32>
    %cst_110 = arith.constant dense<0xFF800000> : vector<32xf32>
    %279 = vector.multi_reduction <maximumf>, %278, %cst_110 [1] : vector<32x32xf32> to vector<32xf32>
    %280 = vector.shape_cast %279 : vector<32xf32> to vector<32x1xf32>
    %281 = vector.broadcast %280 : vector<32x1xf32> to vector<32x32xf32>
    %282 = arith.subf %278, %281 : vector<32x32xf32>
    %283 = math.exp %282 : vector<32x32xf32>
    %cst_111 = arith.constant dense<0.000000e+00> : vector<32xf32>
    %284 = vector.multi_reduction <add>, %283, %cst_111 [1] : vector<32x32xf32> to vector<32xf32>
    %285 = vector.shape_cast %284 : vector<32xf32> to vector<32x1xf32>
    %cst_112 = arith.constant 1.000000e+00 : f32
    %286 = vector.broadcast %cst_112 : f32 to vector<32x1xf32>
    %287 = arith.divf %286, %285 : vector<32x1xf32>
    %288 = vector.broadcast %287 : vector<32x1xf32> to vector<32x32xf32>
    %289 = arith.mulf %283, %288 : vector<32x32xf32>
    %cst_113 = arith.constant dense<0.000000e+00> : vector<32x8xf32>
    %290 = tpu.matmul %289, %276, %cst_113 {dimension_numbers = #tpu.dot_dimension_numbers<[1], [0], [0], [1], [0, 0, 1, 1], [], []>} : vector<32x32xf32>, vector<32x8xf32>, vector<32x8xf32> -> vector<32x8xf32>
    %291 = tpu.concatenate %239, %256, %273, %290 in 1 : vector<32x8xf32>, vector<32x8xf32>, vector<32x8xf32>, vector<32x8xf32> -> vector<32x32xf32>
    %cst_114 = arith.constant dense<0.000000e+00> : vector<32x32xf32>
    %292 = tpu.matmul %291, %25, %cst_114 {dimension_numbers = #tpu.dot_dimension_numbers<[1], [0], [0], [1], [0, 0, 1, 1], [], []>} : vector<32x32xf32>, vector<32x32xf32>, vector<32x32xf32> -> vector<32x32xf32>
    %293 = vector.broadcast %13 : vector<1x32xf32> to vector<32x32xf32>
    %294 = arith.addf %292, %293 : vector<32x32xf32>
    %295 = arith.addf %221, %294 : vector<32x32xf32>
    %cst_115 = arith.constant dense<0.000000e+00> : vector<32xf32>
    %296 = vector.multi_reduction <add>, %295, %cst_115 [1] : vector<32x32xf32> to vector<32xf32>
    %297 = vector.shape_cast %296 : vector<32xf32> to vector<32x1xf32>
    %cst_116 = arith.constant 3.200000e+01 : f32
    %298 = vector.broadcast %cst_116 : f32 to vector<32x1xf32>
    %299 = arith.divf %297, %298 : vector<32x1xf32>
    %300 = vector.broadcast %299 : vector<32x1xf32> to vector<32x32xf32>
    %301 = arith.subf %295, %300 : vector<32x32xf32>
    %302 = arith.mulf %301, %301 : vector<32x32xf32>
    %cst_117 = arith.constant dense<0.000000e+00> : vector<32xf32>
    %303 = vector.multi_reduction <add>, %302, %cst_117 [1] : vector<32x32xf32> to vector<32xf32>
    %304 = vector.shape_cast %303 : vector<32xf32> to vector<32x1xf32>
    %cst_118 = arith.constant 3.200000e+01 : f32
    %305 = vector.broadcast %cst_118 : f32 to vector<32x1xf32>
    %306 = arith.divf %304, %305 : vector<32x1xf32>
    %307 = vector.broadcast %299 : vector<32x1xf32> to vector<32x32xf32>
    %308 = arith.subf %295, %307 : vector<32x32xf32>
    %cst_119 = arith.constant 9.99999974E-6 : f32
    %309 = vector.broadcast %cst_119 : f32 to vector<32x1xf32>
    %310 = arith.addf %306, %309 : vector<32x1xf32>
    %311 = math.rsqrt %310 : vector<32x1xf32>
    %312 = vector.broadcast %311 : vector<32x1xf32> to vector<32x32xf32>
    %313 = arith.mulf %308, %312 : vector<32x32xf32>
    %314 = vector.broadcast %14 : vector<1x32xf32> to vector<32x32xf32>
    %315 = arith.mulf %313, %314 : vector<32x32xf32>
    %316 = vector.broadcast %15 : vector<1x32xf32> to vector<32x32xf32>
    %317 = arith.addf %315, %316 : vector<32x32xf32>
    %cst_120 = arith.constant dense<0.000000e+00> : vector<32x64xf32>
    %318 = tpu.matmul %317, %26, %cst_120 {dimension_numbers = #tpu.dot_dimension_numbers<[1], [0], [0], [1], [0, 0, 1, 1], [], []>} : vector<32x32xf32>, vector<32x64xf32>, vector<32x64xf32> -> vector<32x64xf32>
    %319 = vector.broadcast %17 : vector<1x64xf32> to vector<32x64xf32>
    %320 = arith.addf %318, %319 : vector<32x64xf32>
    %cst_121 = arith.constant 5.000000e-01 : f32
    %321 = vector.broadcast %cst_121 : f32 to vector<32x64xf32>
    %322 = arith.mulf %321, %320 : vector<32x64xf32>
    %cst_122 = arith.constant 0.707106769 : f32
    %323 = vector.broadcast %cst_122 : f32 to vector<32x64xf32>
    %324 = arith.mulf %320, %323 : vector<32x64xf32>
    %cst_123 = arith.constant 0.000000e+00 : f32
    %325 = vector.broadcast %cst_123 : f32 to vector<32x64xf32>
    %326 = arith.cmpf oge, %324, %325 : vector<32x64xf32>
    %cst_124 = arith.constant 1.000000e+00 : f32
    %cst_125 = arith.constant -1.000000e+00 : f32
    %327 = vector.broadcast %cst_124 : f32 to vector<32x64xf32>
    %328 = vector.broadcast %cst_125 : f32 to vector<32x64xf32>
    %329 = arith.select %326, %327, %328 : vector<32x64xi1>, vector<32x64xf32>
    %330 = math.absf %324 : vector<32x64xf32>
    %cst_126 = arith.constant 0.327591091 : f32
    %331 = vector.broadcast %cst_126 : f32 to vector<32x64xf32>
    %332 = arith.mulf %331, %330 : vector<32x64xf32>
    %cst_127 = arith.constant 1.000000e+00 : f32
    %333 = vector.broadcast %cst_127 : f32 to vector<32x64xf32>
    %334 = arith.addf %333, %332 : vector<32x64xf32>
    %cst_128 = arith.constant 1.000000e+00 : f32
    %335 = vector.broadcast %cst_128 : f32 to vector<32x64xf32>
    %336 = arith.divf %335, %334 : vector<32x64xf32>
    %cst_129 = arith.constant 1.06140542 : f32
    %337 = vector.broadcast %cst_129 : f32 to vector<32x64xf32>
    %338 = arith.mulf %337, %336 : vector<32x64xf32>
    %cst_130 = arith.constant -1.45315206 : f32
    %339 = vector.broadcast %cst_130 : f32 to vector<32x64xf32>
    %340 = arith.addf %338, %339 : vector<32x64xf32>
    %341 = arith.mulf %340, %336 : vector<32x64xf32>
    %cst_131 = arith.constant 1.42141378 : f32
    %342 = vector.broadcast %cst_131 : f32 to vector<32x64xf32>
    %343 = arith.addf %341, %342 : vector<32x64xf32>
    %344 = arith.mulf %343, %336 : vector<32x64xf32>
    %cst_132 = arith.constant -0.284496725 : f32
    %345 = vector.broadcast %cst_132 : f32 to vector<32x64xf32>
    %346 = arith.addf %344, %345 : vector<32x64xf32>
    %347 = arith.mulf %346, %336 : vector<32x64xf32>
    %cst_133 = arith.constant 0.254829586 : f32
    %348 = vector.broadcast %cst_133 : f32 to vector<32x64xf32>
    %349 = arith.addf %347, %348 : vector<32x64xf32>
    %350 = arith.mulf %349, %336 : vector<32x64xf32>
    %cst_134 = arith.constant 0.000000e+00 : f32
    %351 = vector.broadcast %cst_134 : f32 to vector<32x64xf32>
    %352 = arith.subf %351, %330 : vector<32x64xf32>
    %353 = arith.mulf %352, %330 : vector<32x64xf32>
    %354 = math.exp %353 : vector<32x64xf32>
    %355 = arith.mulf %350, %354 : vector<32x64xf32>
    %cst_135 = arith.constant 1.000000e+00 : f32
    %356 = vector.broadcast %cst_135 : f32 to vector<32x64xf32>
    %357 = arith.subf %356, %355 : vector<32x64xf32>
    %358 = arith.mulf %329, %357 : vector<32x64xf32>
    %cst_136 = arith.constant 1.000000e+00 : f32
    %359 = vector.broadcast %cst_136 : f32 to vector<32x64xf32>
    %360 = arith.addf %359, %358 : vector<32x64xf32>
    %361 = arith.mulf %322, %360 : vector<32x64xf32>
    %cst_137 = arith.constant dense<0.000000e+00> : vector<32x32xf32>
    %362 = tpu.matmul %361, %27, %cst_137 {dimension_numbers = #tpu.dot_dimension_numbers<[1], [0], [0], [1], [0, 0, 1, 1], [], []>} : vector<32x64xf32>, vector<64x32xf32>, vector<32x32xf32> -> vector<32x32xf32>
    %363 = vector.broadcast %16 : vector<1x32xf32> to vector<32x32xf32>
    %364 = arith.addf %362, %363 : vector<32x32xf32>
    %365 = arith.addf %295, %364 : vector<32x32xf32>
    %c0_138 = arith.constant 0 : index
    %c0_139 = arith.constant 0 : index
    %c0_140 = arith.constant 0 : index
    %366 = vector.load %arg7[%c0_138, %c0_139, %c0_140] : memref<1x32x32xf32, #tpu.memory_space<vmem>>, vector<1x32x32xf32>
    %367 = vector.shape_cast %366 : vector<1x32x32xf32> to vector<32x32xf32>
    %368 = vector.shape_cast %365 : vector<32x32xf32> to vector<1x32x32xf32>
    tpu.vector_store %arg7[%c0_138, %c0_139, %c0_140], %368 {strides = array<i32>} : memref<1x32x32xf32, #tpu.memory_space<vmem>>, vector<1x32x32xf32>,
    return
  }
  func.func @transform_0(%arg0: i32) -> (i32, i32, i32) {
    %c0_i32 = arith.constant 0 : i32
    %c0_i32_0 = arith.constant 0 : i32
    %c0_i32_1 = arith.constant 0 : i32
    return %arg0, %c0_i32, %c0_i32_0 : i32, i32, i32
  }
  func.func @transform_1(%arg0: i32) -> (i32, i32, i32) {
    %c0_i32 = arith.constant 0 : i32
    %c0_i32_0 = arith.constant 0 : i32
    %c0_i32_1 = arith.constant 0 : i32
    return %arg0, %c0_i32, %c0_i32_0 : i32, i32, i32
  }
  func.func @transform_2(%arg0: i32) -> (i32, i32) {
    %c0_i32 = arith.constant 0 : i32
    %c0_i32_0 = arith.constant 0 : i32
    %c0_i32_1 = arith.constant 0 : i32
    return %c0_i32, %c0_i32_0 : i32, i32
  }
  func.func @transform_3(%arg0: i32) -> (i32, i32) {
    %c0_i32 = arith.constant 0 : i32
    %c0_i32_0 = arith.constant 0 : i32
    %c0_i32_1 = arith.constant 0 : i32
    return %c0_i32, %c0_i32_0 : i32, i32
  }
  func.func @transform_4(%arg0: i32) -> (i32, i32) {
    %c0_i32 = arith.constant 0 : i32
    %c0_i32_0 = arith.constant 0 : i32
    %c0_i32_1 = arith.constant 0 : i32
    return %c0_i32, %c0_i32_0 : i32, i32
  }
  func.func @transform_5(%arg0: i32) -> (i32, i32) {
    %c0_i32 = arith.constant 0 : i32
    %c0_i32_0 = arith.constant 0 : i32
    %c0_i32_1 = arith.constant 0 : i32
    return %c0_i32, %c0_i32_0 : i32, i32
  }
  func.func @transform_6(%arg0: i32) -> (i32, i32, i32) {
    %c0_i32 = arith.constant 0 : i32
    %c0_i32_0 = arith.constant 0 : i32
    %c0_i32_1 = arith.constant 0 : i32
    return %arg0, %c0_i32, %c0_i32_0 : i32, i32, i32
  }
}

</mosaic_0001>

<llo_original>
// kernel: tpu_custom_call.1
$region0: #{tpu_custom_call.1}
  #allocation0 [shape = 'u32[]', space=smem, size = 0x4, offset = 0x4, fixed_abs, tag = 'smem constant byte address 0x4 - core index']
  #allocation1 [shape = 'u32[144,128]{1,0:T(1,128)}', space=vmem, size = 0x12000, scoped, tag = 'internal scratch']
  %s0 = inlined_call_operand.vmem [shape: f32[2,32,32], index: 0, kind: input, shape index: {}]
  %s1 = inlined_call_operand.vmem [shape: f32[2,64,32], index: 1, kind: input, shape index: {}]
  %s2 = inlined_call_operand.hbm [shape: f32[32,160], index: 2, kind: input, shape index: {}]
  %s3 = inlined_call_operand.vmem [shape: f32[14,64], index: 3, kind: input, shape index: {}]
  %s4 = inlined_call_operand.vmem [shape: f32[32,448], index: 4, kind: input, shape index: {}]
  %s5 = inlined_call_operand.vmem [shape: f32[64,32], index: 5, kind: input, shape index: {}]
  %s6 = inlined_call_operand.hbm [shape: f32[2,32,32], index: 6, kind: output, shape index: {}]
  %s7 = sld [smem:[#allocation0]]
  $region61: #{tpu_custom_call.1} parent=0
    _
  %s9 = ssub.s32 1, %s7
  %s10 = scalar_select 0, %s9, %s7
  $region1: #{tpu_custom_call.1} parent=0
    #allocation2 [shape = 'u8[32768]{0}', space=vmem, size = 0x8000, scoped, tag = 'input window, operand 2, single buffered']
    #allocation3 [shape = 's32[2]{0}', space=sflag, size = 0x8, scoped, tag = 'scoped memory for tpu_custom_call.1']
    #allocation4 [shape = 's32[2]{0}', space=sflag, size = 0x8, scoped, tag = 'scoped memory for tpu_custom_call.1']
    #allocation5 [shape = 'u8[32768]{0}', space=vmem, size = 0x8000, scoped, tag = 'output window, operand 0']
    %11 = vsyncpa [#allocation3], 0
    %12 = vsyncpa [#allocation4], 0
    %s13 = scalar_lea.sflag [#allocation4], 1
    %14 = vsyncpa %s13, 0
    loop: start=0, step=1, limit=4
    $region2: #{tpu_custom_call.1} parent=1 // loop_pre_header
      _
    $region3: #{tpu_custom_call.1} parent=1 // loop_header
      %s16 = sphi 0, %s20
      %p17 = scmp.ge.s32.totalorder %s16, 4
      %s26 = sphi 0, %s28
      %s29 = sphi 0, %s26
      %s30 = sphi 0, %s29
      %s46 = sphi 0, %s30
      %s52 = sphi 0, %s54
      %s55 = sphi 0, %s52
      %s56 = sphi 0, %s55
      %s72 = sphi 0, %s56
      %s76 = sphi 0, %s76
      %s78 = sphi 0, %s76
      %s79 = sphi 0, %s78
      %s93 = sphi 0, %s79
      %s97 = sphi 0, %s97
      %s99 = sphi 0, %s97
      %s100 = sphi 0, %s99
      %s114 = sphi 0, %s100
      %s118 = sphi 0, %s118
      %s120 = sphi 0, %s118
      %s121 = sphi 0, %s120
      %s135 = sphi 0, %s121
      %s139 = sphi 0, %s139
      %s141 = sphi 0, %s139
      %s142 = sphi 0, %s141
      %s156 = sphi 0, %s142
      %s162 = sphi 0, %s164
      %s165 = sphi 0, %s162
      %s166 = sphi 0, %s165
      %s182 = sphi 0, %s166
    $region4: #{tpu_custom_call.1} parent=1 // loop_header_branch
      %19 = sbr.rel (%p17) target = $region8
    $region5: #{tpu_custom_call.1} parent=1 // loop_body
      %s21 = ssub.s32 %s16, 1
      %s22 = ssub.s32 %s16, 2
      %s23 = sadd.s32 %s16, 1
      %s24 = ssub.s32 %s16, %s23
      %p25 = scmp.eq.s32.totalorder %s24, 0
      %s27 = sadd.s32 %s26, 1
      %s28 = scalar_select %p25, %s26, %s27
      %p31 = pneg %p25
      %p32 = scmp.eq.s32.totalorder %s16, 1
      %p33 = por %p31, %p32
      %p34 = scmp.ne.s32.totalorder %s26, %s29
      %p35 = scmp.eq.s32.totalorder %s16, 0
      %p36 = por %p34, %p35
      %p37 = scmp.ne.s32.totalorder %s26, %s29
      %p38 = scmp.eq.s32.totalorder %s21, 1
      %p39 = por %p37, %p38
      %p40 = scmp.ne.s32.totalorder %s29, %s30
      %p41 = scmp.eq.s32.totalorder %s21, 0
      %p42 = por %p40, %p41
      %p43 = scmp.ne.s32.totalorder %s29, %s30
      %p44 = scmp.eq.s32.totalorder %s22, 1
      %p45 = por %p43, %p44
      %p47 = scmp.ne.s32.totalorder %s30, %s46
      %p48 = scmp.eq.s32.totalorder %s22, 0
      %p49 = por %p47, %p48
      %s50 = ssub.s32 %s16, %s23
      %p51 = scmp.eq.s32.totalorder %s50, 0
      %s53 = sadd.s32 %s52, 1
      %s54 = scalar_select %p51, %s52, %s53
      %p57 = pneg %p51
      %p58 = scmp.eq.s32.totalorder %s16, 1
      %p59 = por %p57, %p58
      %p60 = scmp.ne.s32.totalorder %s52, %s55
      %p61 = scmp.eq.s32.totalorder %s16, 0
      %p62 = por %p60, %p61
      %p63 = scmp.ne.s32.totalorder %s52, %s55
      %p64 = scmp.eq.s32.totalorder %s21, 1
      %p65 = por %p63, %p64
      %p66 = scmp.ne.s32.totalorder %s55, %s56
      %p67 = scmp.eq.s32.totalorder %s21, 0
      %p68 = por %p66, %p67
      %p69 = scmp.ne.s32.totalorder %s55, %s56
      %p70 = scmp.eq.s32.totalorder %s22, 1
      %p71 = por %p69, %p70
      %p73 = scmp.ne.s32.totalorder %s56, %s72
      %p74 = scmp.eq.s32.totalorder %s22, 0
      %p75 = por %p73, %p74
      %s77 = sadd.s32 %s76, 1
      %p80 = scmp.eq.s32.totalorder %s16, 1
      %p81 = scmp.ne.s32.totalorder %s76, %s78
      %p82 = scmp.eq.s32.totalorder %s16, 0
      %p83 = por %p81, %p82
      %p84 = scmp.ne.s32.totalorder %s76, %s78
      %p85 = scmp.eq.s32.totalorder %s21, 1
      %p86 = por %p84, %p85
      %p87 = scmp.ne.s32.totalorder %s78, %s79
      %p88 = scmp.eq.s32.totalorder %s21, 0
      %p89 = por %p87, %p88
      %p90 = scmp.ne.s32.totalorder %s78, %s79
      %p91 = scmp.eq.s32.totalorder %s22, 1
      %p92 = por %p90, %p91
      %p94 = scmp.ne.s32.totalorder %s79, %s93
      %p95 = scmp.eq.s32.totalorder %s22, 0
      %p96 = por %p94, %p95
      %s98 = sadd.s32 %s97, 1
      %p101 = scmp.eq.s32.totalorder %s16, 1
      %p102 = scmp.ne.s32.totalorder %s97, %s99
      %p103 = scmp.eq.s32.totalorder %s16, 0
      %p104 = por %p102, %p103
      %p105 = scmp.ne.s32.totalorder %s97, %s99
      %p106 = scmp.eq.s32.totalorder %s21, 1
      %p107 = por %p105, %p106
      %p108 = scmp.ne.s32.totalorder %s99, %s100
      %p109 = scmp.eq.s32.totalorder %s21, 0
      %p110 = por %p108, %p109
      %p111 = scmp.ne.s32.totalorder %s99, %s100
      %p112 = scmp.eq.s32.totalorder %s22, 1
      %p113 = por %p111, %p112
      %p115 = scmp.ne.s32.totalorder %s100, %s114
      %p116 = scmp.eq.s32.totalorder %s22, 0
      %p117 = por %p115, %p116
      %s119 = sadd.s32 %s118, 1
      %p122 = scmp.eq.s32.totalorder %s16, 1
      %p123 = scmp.ne.s32.totalorder %s118, %s120
      %p124 = scmp.eq.s32.totalorder %s16, 0
      %p125 = por %p123, %p124
      %p126 = scmp.ne.s32.totalorder %s118, %s120
      %p127 = scmp.eq.s32.totalorder %s21, 1
      %p128 = por %p126, %p127
      %p129 = scmp.ne.s32.totalorder %s120, %s121
      %p130 = scmp.eq.s32.totalorder %s21, 0
      %p131 = por %p129, %p130
      %p132 = scmp.ne.s32.totalorder %s120, %s121
      %p133 = scmp.eq.s32.totalorder %s22, 1
      %p134 = por %p132, %p133
      %p136 = scmp.ne.s32.totalorder %s121, %s135
      %p137 = scmp.eq.s32.totalorder %s22, 0
      %p138 = por %p136, %p137
      %s140 = sadd.s32 %s139, 1
      %p143 = scmp.eq.s32.totalorder %s16, 1
      %p144 = scmp.ne.s32.totalorder %s139, %s141
      %p145 = scmp.eq.s32.totalorder %s16, 0
      %p146 = por %p144, %p145
      %p147 = scmp.ne.s32.totalorder %s139, %s141
      %p148 = scmp.eq.s32.totalorder %s21, 1
      %p149 = por %p147, %p148
      %p150 = scmp.ne.s32.totalorder %s141, %s142
      %p151 = scmp.eq.s32.totalorder %s21, 0
      %p152 = por %p150, %p151
      %p153 = scmp.ne.s32.totalorder %s141, %s142
      %p154 = scmp.eq.s32.totalorder %s22, 1
      %p155 = por %p153, %p154
      %p157 = scmp.ne.s32.totalorder %s142, %s156
      %p158 = scmp.eq.s32.totalorder %s22, 0
      %p159 = por %p157, %p158
      %s160 = ssub.s32 %s16, %s23
      %p161 = scmp.eq.s32.totalorder %s160, 0
      %s163 = sadd.s32 %s162, 1
      %s164 = scalar_select %p161, %s162, %s163
      %p167 = pneg %p161
      %p168 = scmp.eq.s32.totalorder %s16, 1
      %p169 = por %p167, %p168
      %p170 = scmp.ne.s32.totalorder %s162, %s165
      %p171 = scmp.eq.s32.totalorder %s16, 0
      %p172 = por %p170, %p171
      %p173 = scmp.ne.s32.totalorder %s162, %s165
      %p174 = scmp.eq.s32.totalorder %s21, 1
      %p175 = por %p173, %p174
      %p176 = scmp.ne.s32.totalorder %s165, %s166
      %p177 = scmp.eq.s32.totalorder %s21, 0
      %p178 = por %p176, %p177
      %p179 = scmp.ne.s32.totalorder %s165, %s166
      %p180 = scmp.eq.s32.totalorder %s22, 1
      %p181 = por %p179, %p180
      %p183 = scmp.ne.s32.totalorder %s166, %s182
      %p184 = scmp.eq.s32.totalorder %s22, 0
      %p185 = por %p183, %p184
      %p186 = scmp.le.s32.totalorder 1, %s16
      %p187 = scmp.lt.s32.totalorder %s16, 3
      %p188 = pnand %p186, %p187
      %p189 = pneg %p188
      // Predicated region
      $region9: #{tpu_custom_call.1} parent=5 // pred_check
        _
      $region10: #{tpu_custom_call.1} parent=5 // pred_check_branch
        %191 = sbr.rel (%p188) target = $region12
      $region11: #{tpu_custom_call.1} parent=5 // pred_region
        %s192 = ssub.s32 %s16, 1
        // Predicated region
        $region13: #{tpu_custom_call.1} parent=11 // pred_check
          %p193 = pneg %p89
        $region14: #{tpu_custom_call.1} parent=11 // pred_check_branch
          %195 = sbr.rel (%p193) target = $region16
        $region15: #{tpu_custom_call.1} parent=11 // pred_region
          %s197 = ssub.s32 1024, 1024
          %198 = vsyncadd [#allocation3], %s197
          %s199 = sshll.u32 [#allocation2], 4
          %s200 = int_to_ptr.vmem [resolvable:$true] %s199
          %205 = dma.hbm_to_vmem [thread:$0]  %s2, 1024, %s200, [#allocation3], 256, 256, 16
        $region16: #{tpu_custom_call.1} parent=11 // pred_fallthru
          _
        // Predicated region
        $region17: #{tpu_custom_call.1} parent=11 // pred_check
          %p206 = pneg %p110
        $region18: #{tpu_custom_call.1} parent=11 // pred_check_branch
          %208 = sbr.rel (%p206) target = $region20
        $region19: #{tpu_custom_call.1} parent=11 // pred_region
          _
        $region20: #{tpu_custom_call.1} parent=11 // pred_fallthru
          _
        // Predicated region
        $region21: #{tpu_custom_call.1} parent=11 // pred_check
          %p209 = pneg %p131
        $region22: #{tpu_custom_call.1} parent=11 // pred_check_branch
          %211 = sbr.rel (%p209) target = $region24
        $region23: #{tpu_custom_call.1} parent=11 // pred_region
          _
        $region24: #{tpu_custom_call.1} parent=11 // pred_fallthru
          _
        // Predicated region
        $region25: #{tpu_custom_call.1} parent=11 // pred_check
          %p212 = pneg %p152
        $region26: #{tpu_custom_call.1} parent=11 // pred_check_branch
          %214 = sbr.rel (%p212) target = $region28
        $region27: #{tpu_custom_call.1} parent=11 // pred_region
          _
        $region28: #{tpu_custom_call.1} parent=11 // pred_fallthru
          _
      $region12: #{tpu_custom_call.1} parent=5 // pred_fallthru
        _
      %p215 = scmp.lt.s32.totalorder %s16, 2
      // Predicated region
      $region29: #{tpu_custom_call.1} parent=5 // pred_check
        %p216 = pneg %p215
      $region30: #{tpu_custom_call.1} parent=5 // pred_check_branch
        %218 = sbr.rel (%p216) target = $region32
      $region31: #{tpu_custom_call.1} parent=5 // pred_region
        // Predicated region
        $region33: #{tpu_custom_call.1} parent=31 // pred_check
          %p219 = pneg %p36
        $region34: #{tpu_custom_call.1} parent=31 // pred_check_branch
          %221 = sbr.rel (%p219) target = $region36
        $region35: #{tpu_custom_call.1} parent=31 // pred_region
          %p222 = scmp.lt.s32.totalorder %s16, 1
          %s223 = scalar_select %p222, %s16, 1
          %s224 = smul.addr %s223, 4
          %s225 = smul.addr %s224, 8
          %s226 = scalar_lea.vmem %s0, %s225
        $region36: #{tpu_custom_call.1} parent=31 // pred_fallthru
          _
        // Predicated region
        $region37: #{tpu_custom_call.1} parent=31 // pred_check
          %p227 = pneg %p62
        $region38: #{tpu_custom_call.1} parent=31 // pred_check_branch
          %229 = sbr.rel (%p227) target = $region40
        $region39: #{tpu_custom_call.1} parent=31 // pred_region
          %p230 = scmp.lt.s32.totalorder %s16, 1
          %s231 = scalar_select %p230, %s16, 1
          %s232 = smul.addr %s231, 8
          %s233 = smul.addr %s232, 8
          %s234 = scalar_lea.vmem %s1, %s233
        $region40: #{tpu_custom_call.1} parent=31 // pred_fallthru
          _
      $region32: #{tpu_custom_call.1} parent=5 // pred_fallthru
        _
      %p235 = scmp.le.s32.totalorder 1, %s16
      %p236 = scmp.lt.s32.totalorder %s16, 3
      %p237 = pnand %p235, %p236
      %p238 = pneg %p237
      // Predicated region
      $region41: #{tpu_custom_call.1} parent=5 // pred_check
        _
      $region42: #{tpu_custom_call.1} parent=5 // pred_check_branch
        %240 = sbr.rel (%p237) target = $region44
      $region43: #{tpu_custom_call.1} parent=5 // pred_region
        %s241 = ssub.s32 %s16, 1
        // Predicated region
        $region45: #{tpu_custom_call.1} parent=43 // pred_check
          %p242 = pneg %p89
        $region46: #{tpu_custom_call.1} parent=43 // pred_check_branch
          %244 = sbr.rel (%p242) target = $region48
        $region47: #{tpu_custom_call.1} parent=43 // pred_region
          %245 = dma.done [#allocation3], 1024
        $region48: #{tpu_custom_call.1} parent=43 // pred_fallthru
          _
        %p246 = scmp.lt.s32.totalorder %s21, 1
        %s247 = scalar_select %p246, %s21, 1
        %s248 = smul.addr %s247, 4
        %s249 = smul.addr %s248, 8
        %s250 = scalar_lea.vmem %s0, %s249
        %p251 = pneg %p42
        %p252 = pneg %p39
        %p253 = scmp.lt.s32.totalorder %s21, 1
        %s254 = scalar_select %p253, %s21, 1
        %s255 = smul.addr %s254, 8
        %s256 = smul.addr %s255, 8
        %s257 = scalar_lea.vmem %s1, %s256
        %p258 = pneg %p68
        %p259 = pneg %p65
        %p260 = pneg %p89
        %p261 = pneg %p86
        %p262 = pneg %p110
        %p263 = pneg %p107
        %p264 = pneg %p131
        %p265 = pneg %p128
        %p266 = pneg %p152
        %p267 = pneg %p149
        %p268 = pneg %p178
        %p269 = pneg %p175
        %s270 = sand.u32 %s165, 1
        %s271 = scalar_lea.sflag [#allocation4], %s270
        %s272 = sand.u32 %s165, 1
        %s273 = smul.addr %s272, 32
        %s274 = scalar_lea.vmem [#allocation5], %s273
        %p275 = scmp.lt.s32.totalorder %s21, 1
        %s276 = scalar_select %p275, %s21, 1
        %s277 = smul.addr %s276, 4
        %s278 = smul.addr %s277, 8
        %s279 = scalar_lea.vmem %s0, %s278
        %p280 = scmp.lt.s32.totalorder %s21, 1
        %s281 = scalar_select %p280, %s21, 1
        %s282 = smul.addr %s281, 8
        %s283 = smul.addr %s282, 8
        %s284 = scalar_lea.vmem %s1, %s283
        %v285 = vld [vmem:[#allocation2] sm:$0xff]
        %v286 = vld [vmem:[#allocation2 + $0x10] sm:$0xff]
        %v287 = vld [vmem:[#allocation2 + $0x20] sm:$0xff]
        %v288 = vld [vmem:[#allocation2 + $0x30] sm:$0xff]
        %v289 = vld [vmem:[#allocation2 + $0x8] sm:$0xff]
        %v290 = vld [vmem:[#allocation2 + $0x18] sm:$0xff]
        %v291 = vld [vmem:[#allocation2 + $0x28] sm:$0xff]
        %v292 = vld [vmem:[#allocation2 + $0x38] sm:$0xff]
        %v293 = vld [vmem:[%s3] sm:$0x1]
        %v294 = vld [vmem:[%s3 + $0x1] sm:$0x1]
        %v295 = vld [vmem:[%s3 + $0x2] sm:$0x1]
        %v296 = vld [vmem:[%s3 + $0x3] sm:$0x1]
        %v297 = vld [vmem:[%s3 + $0x4] sm:$0x1]
        %v298 = vld [vmem:[%s3 + $0x5] sm:$0x1]
        %v299 = vld [vmem:[%s3 + $0x6] sm:$0x1]
        %v300 = vld [vmem:[%s3 + $0x7] sm:$0x1]
        %v301 = vld [vmem:[%s3 + $0x8] sm:$0x1]
        %v302 = vld [vmem:[%s3 + $0x9] sm:$0x1]
        %v303 = vld [vmem:[%s3 + $0xa] sm:$0x1]
        %v304 = vld [vmem:[%s3 + $0xb] sm:$0x1]
        %v305 = vld [vmem:[%s3 + $0xc] sm:$0x1]
        %v306 = vld [vmem:[%s3 + $0xd] sm:$0x1]
        %v307 = vld [vmem:[%s4] sm:$0xff]
        %v308 = vld [vmem:[%s4 + $0x20] sm:$0xff]
        %v309 = vld [vmem:[%s4 + $0x40] sm:$0xff]
        %v310 = vld [vmem:[%s4 + $0x60] sm:$0xff]
        %v311 = vld [vmem:[%s4 + $0x8] sm:$0xff]
        %v312 = vld [vmem:[%s4 + $0x28] sm:$0xff]
        %v313 = vld [vmem:[%s4 + $0x48] sm:$0xff]
        %v314 = vld [vmem:[%s4 + $0x68] sm:$0xff]
        %v315 = vld [vmem:[%s4 + $0x10] sm:$0xff]
        %v316 = vld [vmem:[%s4 + $0x30] sm:$0xff]
        %v317 = vld [vmem:[%s4 + $0x50] sm:$0xff]
        %v318 = vld [vmem:[%s4 + $0x70] sm:$0xff]
        %v319 = vld [vmem:[%s4 + $0x18] sm:$0xff]
        %v320 = vld [vmem:[%s4 + $0x38] sm:$0xff]
        %v321 = vld [vmem:[%s4 + $0x58] sm:$0xff]
        %v322 = vld [vmem:[%s4 + $0x78] sm:$0xff]
        %v323 = vld [vmem:[%s5] sm:$0xff]
        %v324 = vld [vmem:[%s5 + $0x8] sm:$0xff]
        %v325 = vld [vmem:[%s5 + $0x10] sm:$0xff]
        %v326 = vld [vmem:[%s5 + $0x18] sm:$0xff]
        %v327 = vld [vmem:[%s5 + $0x20] sm:$0xff]
        %v328 = vld [vmem:[%s5 + $0x28] sm:$0xff]
        %v329 = vld [vmem:[%s5 + $0x30] sm:$0xff]
        %v330 = vld [vmem:[%s5 + $0x38] sm:$0xff]
        %v331 = vld [vmem:[%s279] sm:$0xff]
        %v332 = vld [vmem:[%s279 + $0x8] sm:$0xff]
        %v333 = vld [vmem:[%s279 + $0x10] sm:$0xff]
        %v334 = vld [vmem:[%s279 + $0x18] sm:$0xff]
        %vm335 = vcmask 261120
        %v336 = vsel %vm335, %v331, 0.0
        %337 = vadd.xlane.f32.xlu0 %v336
        %v338 = vpop.xlane.xlu0 %337
        %v339 = vsel %vm335, %v332, 0.0
        %340 = vadd.xlane.f32.xlu0 %v339
        %v341 = vpop.xlane.xlu0 %340
        %v342 = vsel %vm335, %v333, 0.0
        %343 = vadd.xlane.f32.xlu0 %v342
        %v344 = vpop.xlane.xlu0 %343
        %v345 = vsel %vm335, %v334, 0.0
        %346 = vadd.xlane.f32.xlu0 %v345
        %v347 = vpop.xlane.xlu0 %346
        %v348 = vrcp.pop 32.0
        %v349 = vmul.f32 %v338, %v348
        %v350 = vmul.f32 %v341, %v348
        %v351 = vmul.f32 %v344, %v348
        %v352 = vmul.f32 %v347, %v348
        %v353 = vsub.f32 %v331, %v349
        %v354 = vsub.f32 %v332, %v350
        %v355 = vsub.f32 %v333, %v351
        %v356 = vsub.f32 %v334, %v352
        %v357 = vmul.f32 %v353, %v353
        %v358 = vmul.f32 %v354, %v354
        %v359 = vmul.f32 %v355, %v355
        %v360 = vmul.f32 %v356, %v356
        %v361 = vsel %vm335, %v357, 0.0
        %362 = vadd.xlane.f32.xlu0 %v361
        %v363 = vpop.xlane.xlu0 %362
        %v364 = vsel %vm335, %v358, 0.0
        %365 = vadd.xlane.f32.xlu0 %v364
        %v366 = vpop.xlane.xlu0 %365
        %v367 = vsel %vm335, %v359, 0.0
        %368 = vadd.xlane.f32.xlu0 %v367
        %v369 = vpop.xlane.xlu0 %368
        %v370 = vsel %vm335, %v360, 0.0
        %371 = vadd.xlane.f32.xlu0 %v370
        %v372 = vpop.xlane.xlu0 %371
        %v373 = vmul.f32 %v363, %v348
        %v374 = vmul.f32 %v366, %v348
        %v375 = vmul.f32 %v369, %v348
        %v376 = vmul.f32 %v372, %v348
        %v377 = vadd.f32 %v373, 1e-05
        %v378 = vadd.f32 %v374, 1e-05
        %v379 = vadd.f32 %v375, 1e-05
        %v380 = vadd.f32 %v376, 1e-05
        %v381 = vrsqrt.pop %v377
        %v382 = vrsqrt.pop %v378
        %v383 = vrsqrt.pop %v379
        %v384 = vrsqrt.pop %v380
        %v385 = vmul.f32 %v353, %v381
        %v386 = vmul.f32 %v354, %v382
        %v387 = vmul.f32 %v355, %v383
        %v388 = vmul.f32 %v356, %v384
        %v389 = vlaneseq
        %v390 = vshrl.u32 %v389, 7
        %v391 = vsub.s32 0, %v390
        %v392 = vrot.slane %v293, %v391
        %v393 = vmul.f32 %v385, %v392
        %v394 = vmul.f32 %v386, %v392
        %v395 = vmul.f32 %v387, %v392
        %v396 = vmul.f32 %v388, %v392
        %v397 = vlaneseq
        %v398 = vshrl.u32 %v397, 7
        %v399 = vsub.s32 0, %v398
        %v400 = vrot.slane %v294, %v399
        %v401 = vadd.f32 %v393, %v400
        %v402 = vadd.f32 %v394, %v400
        %v403 = vadd.f32 %v395, %v400
        %v404 = vadd.f32 %v396, %v400
        %v405 = vadd.f32 %v401, %v289
        %v406 = vadd.f32 %v402, %v290
        %v407 = vadd.f32 %v403, %v291
        %v408 = vadd.f32 %v404, %v292
        %v409 = vld [vmem:[%s284] sm:$0xff]
        %v410 = vld [vmem:[%s284 + $0x8] sm:$0xff]
        %v411 = vld [vmem:[%s284 + $0x10] sm:$0xff]
        %v412 = vld [vmem:[%s284 + $0x18] sm:$0xff]
        %v413 = vld [vmem:[%s284 + $0x20] sm:$0xff]
        %v414 = vld [vmem:[%s284 + $0x28] sm:$0xff]
        %v415 = vld [vmem:[%s284 + $0x30] sm:$0xff]
        %v416 = vld [vmem:[%s284 + $0x38] sm:$0xff]
        %v417 = vsel %vm335, %v409, 0.0
        %418 = vadd.xlane.f32.xlu0 %v417
        %v419 = vpop.xlane.xlu0 %418
        %v420 = vsel %vm335, %v410, 0.0
        %421 = vadd.xlane.f32.xlu0 %v420
        %v422 = vpop.xlane.xlu0 %421
        %v423 = vsel %vm335, %v411, 0.0
        %424 = vadd.xlane.f32.xlu0 %v423
        %v425 = vpop.xlane.xlu0 %424
        %v426 = vsel %vm335, %v412, 0.0
        %427 = vadd.xlane.f32.xlu0 %v426
        %v428 = vpop.xlane.xlu0 %427
        %v429 = vsel %vm335, %v413, 0.0
        %430 = vadd.xlane.f32.xlu0 %v429
        %v431 = vpop.xlane.xlu0 %430
        %v432 = vsel %vm335, %v414, 0.0
        %433 = vadd.xlane.f32.xlu0 %v432
        %v434 = vpop.xlane.xlu0 %433
        %v435 = vsel %vm335, %v415, 0.0
        %436 = vadd.xlane.f32.xlu0 %v435
        %v437 = vpop.xlane.xlu0 %436
        %v438 = vsel %vm335, %v416, 0.0
        %439 = vadd.xlane.f32.xlu0 %v438
        %v440 = vpop.xlane.xlu0 %439
        %v441 = vmul.f32 %v419, %v348
        %v442 = vmul.f32 %v422, %v348
        %v443 = vmul.f32 %v425, %v348
        %v444 = vmul.f32 %v428, %v348
        %v445 = vmul.f32 %v431, %v348
        %v446 = vmul.f32 %v434, %v348
        %v447 = vmul.f32 %v437, %v348
        %v448 = vmul.f32 %v440, %v348
        %v449 = vsub.f32 %v409, %v441
        %v450 = vsub.f32 %v410, %v442
        %v451 = vsub.f32 %v411, %v443
        %v452 = vsub.f32 %v412, %v444
        %v453 = vsub.f32 %v413, %v445
        %v454 = vsub.f32 %v414, %v446
        %v455 = vsub.f32 %v415, %v447
        %v456 = vsub.f32 %v416, %v448
        %v457 = vmul.f32 %v449, %v449
        %v458 = vmul.f32 %v450, %v450
        %v459 = vmul.f32 %v451, %v451
        %v460 = vmul.f32 %v452, %v452
        %v461 = vmul.f32 %v453, %v453
        %v462 = vmul.f32 %v454, %v454
        %v463 = vmul.f32 %v455, %v455
        %v464 = vmul.f32 %v456, %v456
        %v465 = vsel %vm335, %v457, 0.0
        %466 = vadd.xlane.f32.xlu0 %v465
        %v467 = vpop.xlane.xlu0 %466
        %v468 = vsel %vm335, %v458, 0.0
        %469 = vadd.xlane.f32.xlu0 %v468
        %v470 = vpop.xlane.xlu0 %469
        %v471 = vsel %vm335, %v459, 0.0
        %472 = vadd.xlane.f32.xlu0 %v471
        %v473 = vpop.xlane.xlu0 %472
        %v474 = vsel %vm335, %v460, 0.0
        %475 = vadd.xlane.f32.xlu0 %v474
        %v476 = vpop.xlane.xlu0 %475
        %v477 = vsel %vm335, %v461, 0.0
        %478 = vadd.xlane.f32.xlu0 %v477
        %v479 = vpop.xlane.xlu0 %478
        %v480 = vsel %vm335, %v462, 0.0
        %481 = vadd.xlane.f32.xlu0 %v480
        %v482 = vpop.xlane.xlu0 %481
        %v483 = vsel %vm335, %v463, 0.0
        %484 = vadd.xlane.f32.xlu0 %v483
        %v485 = vpop.xlane.xlu0 %484
        %v486 = vsel %vm335, %v464, 0.0
        %487 = vadd.xlane.f32.xlu0 %v486
        %v488 = vpop.xlane.xlu0 %487
        %v489 = vmul.f32 %v467, %v348
        %v490 = vmul.f32 %v470, %v348
        %v491 = vmul.f32 %v473, %v348
        %v492 = vmul.f32 %v476, %v348
        %v493 = vmul.f32 %v479, %v348
        %v494 = vmul.f32 %v482, %v348
        %v495 = vmul.f32 %v485, %v348
        %v496 = vmul.f32 %v488, %v348
        %v497 = vadd.f32 %v489, 1e-05
        %v498 = vadd.f32 %v490, 1e-05
        %v499 = vadd.f32 %v491, 1e-05
        %v500 = vadd.f32 %v492, 1e-05
        %v501 = vadd.f32 %v493, 1e-05
        %v502 = vadd.f32 %v494, 1e-05
        %v503 = vadd.f32 %v495, 1e-05
        %v504 = vadd.f32 %v496, 1e-05
        %v505 = vrsqrt.pop %v497
        %v506 = vrsqrt.pop %v498
        %v507 = vrsqrt.pop %v499
        %v508 = vrsqrt.pop %v500
        %v509 = vrsqrt.pop %v501
        %v510 = vrsqrt.pop %v502
        %v511 = vrsqrt.pop %v503
        %v512 = vrsqrt.pop %v504
        %v513 = vmul.f32 %v449, %v505
        %v514 = vmul.f32 %v450, %v506
        %v515 = vmul.f32 %v451, %v507
        %v516 = vmul.f32 %v452, %v508
        %v517 = vmul.f32 %v453, %v509
        %v518 = vmul.f32 %v454, %v510
        %v519 = vmul.f32 %v455, %v511
        %v520 = vmul.f32 %v456, %v512
        %v521 = vlaneseq
        %v522 = vshrl.u32 %v521, 7
        %v523 = vsub.s32 0, %v522
        %v524 = vrot.slane %v295, %v523
        %v525 = vmul.f32 %v513, %v524
        %v526 = vmul.f32 %v514, %v524
        %v527 = vmul.f32 %v515, %v524
        %v528 = vmul.f32 %v516, %v524
        %v529 = vmul.f32 %v517, %v524
        %v530 = vmul.f32 %v518, %v524
        %v531 = vmul.f32 %v519, %v524
        %v532 = vmul.f32 %v520, %v524
        %v533 = vlaneseq
        %v534 = vshrl.u32 %v533, 7
        %v535 = vsub.s32 0, %v534
        %v536 = vrot.slane %v296, %v535
        %v537 = vadd.f32 %v525, %v536
        %v538 = vadd.f32 %v526, %v536
        %v539 = vadd.f32 %v527, %v536
        %v540 = vadd.f32 %v528, %v536
        %v541 = vadd.f32 %v529, %v536
        %v542 = vadd.f32 %v530, %v536
        %v543 = vadd.f32 %v531, %v536
        %v544 = vadd.f32 %v532, %v536
        %v546 = vsel %vm335, %v405, 0
        %v549 = vsel %vm335, %v406, 0
        %v552 = vsel %vm335, %v407, 0
        %v555 = vsel %vm335, %v408, 0
        %557 = vmatprep.subr.mxu0 0.0
        %558 = vmatpush1.msra.mxu0 %v307
        %559 = vmatprep.subr.mxu0 0.0
        %560 = vmatpush1.msra.mxu0 %v308
        %561 = vmatprep.subr.mxu0 0.0
        %562 = vmatpush1.msra.mxu0 %v309
        %563 = vmatprep.subr.mxu0 0.0
        %564 = vmatpush1.msra.mxu0 %v310
        %565 = vmatprep.subr.mxu0 0.0
        %566 = vmatpush1.msra.mxu0 0.0
        %567 = vmatprep.subr.mxu0 0.0
        %568 = vmatpush1.msra.mxu0 0.0
        %569 = vmatprep.subr.mxu0 0.0
        %570 = vmatpush1.msra.mxu0 0.0
        %571 = vmatprep.subr.mxu0 0.0
        %572 = vmatpush1.msra.mxu0 0.0
        %573 = vmatprep.subr.mxu0 0.0
        %574 = vmatpush1.msra.mxu0 0.0
        %575 = vmatprep.subr.mxu0 0.0
        %576 = vmatpush1.msra.mxu0 0.0
        %577 = vmatprep.subr.mxu0 0.0
        %578 = vmatpush1.msra.mxu0 0.0
        %579 = vmatprep.subr.mxu0 0.0
        %580 = vmatpush1.msra.mxu0 0.0
        %581 = vmatprep.subr.mxu0 0.0
        %582 = vmatpush1.msra.mxu0 0.0
        %583 = vmatprep.subr.mxu0 0.0
        %584 = vmatpush1.msra.mxu0 0.0
        %585 = vmatprep.subr.mxu0 0.0
        %586 = vmatpush1.msra.mxu0 0.0
        %587 = vmatprep.subr.mxu0 0.0
        %588 = vmatpush1.msra.mxu0 0.0
        %589 = vmatprep.subr.mxu0 0.0
        %590 = vmatpush1.msra.mxu0 0.0
        %591 = vmatprep.subr.mxu0 0.0
        %592 = vmatpush1.msra.mxu0 0.0
        %593 = vmatprep.subr.mxu0 0.0
        %594 = vmatpush1.msra.mxu0 0.0
        %595 = vmatprep.subr.mxu0 0.0
        %596 = vmatpush1.msra.mxu0 0.0
        %597 = vmatprep.subr.mxu0 0.0
        %598 = vmatpush1.msra.mxu0 0.0
        %599 = vmatprep.subr.mxu0 0.0
        %600 = vmatpush1.msra.mxu0 0.0
        %601 = vmatprep.subr.mxu0 0.0
        %602 = vmatpush1.msra.mxu0 0.0
        %603 = vmatprep.subr.mxu0 0.0
        %604 = vmatpush1.msra.mxu0 0.0
        %605 = vmatprep.subr.mxu0 0.0
        %606 = vmatpush1.msra.mxu0 0.0
        %607 = vmatprep.subr.mxu0 0.0
        %608 = vmatpush1.msra.mxu0 0.0
        %609 = vmatprep.subr.mxu0 0.0
        %610 = vmatpush1.msra.mxu0 0.0
        %611 = vmatprep.subr.mxu0 0.0
        %612 = vmatpush1.msra.mxu0 0.0
        %613 = vmatprep.subr.mxu0 0.0
        %614 = vmatpush1.msra.mxu0 0.0
        %615 = vmatprep.subr.mxu0 0.0
        %616 = vmatpush1.msra.mxu0 0.0
        %617 = vmatprep.subr.mxu0 0.0
        %618 = vmatpush1.msra.mxu0 0.0
        %619 = vmatprep.subr.mxu0 0.0
        %620 = vmatpush1.msra.mxu0 0.0
        %621 = vmatprep.mubr.f32.mxu0 0.0
        %622 = vmatmul.mubr.f32.gmra.mrb[0].mxu0 %v546
        %v623 = vpop.f32.mrb[0].mxu0
        %v624 = vadd.f32 0.0, %v623
        %v625 = vpop.f32.mrb[0].mxu0
        %626 = vmatprep.mubr.f32.mxu0 0.0
        %627 = vmatmul.mubr.f32.gmra.mrb[0].mxu0 %v549
        %v628 = vpop.f32.mrb[0].mxu0
        %v629 = vadd.f32 0.0, %v628
        %v630 = vpop.f32.mrb[0].mxu0
        %631 = vmatprep.mubr.f32.mxu0 0.0
        %632 = vmatmul.mubr.f32.gmra.mrb[0].mxu0 %v552
        %v633 = vpop.f32.mrb[0].mxu0
        %v634 = vadd.f32 0.0, %v633
        %v635 = vpop.f32.mrb[0].mxu0
        %636 = vmatprep.mubr.f32.mxu0 0.0
        %637 = vmatmul.mubr.f32.gmra.mrb[0].mxu0 %v555
        %v638 = vpop.f32.mrb[0].mxu0
        %v639 = vadd.f32 0.0, %v638
        %v640 = vpop.f32.mrb[0].mxu0
        %641 = vdwg.mxu0
        %646 = vrot.lane.b32.xlu0 %v307, 96
        %v647 = vpop.permute.xlu0 %646
        %648 = vrot.lane.b32.xlu0 %v308, 96
        %v649 = vpop.permute.xlu0 %648
        %650 = vrot.lane.b32.xlu0 %v309, 96
        %v651 = vpop.permute.xlu0 %650
        %652 = vrot.lane.b32.xlu0 %v310, 96
        %v653 = vpop.permute.xlu0 %652
        %v659 = vsel %vm335, %v537, 0
        %v662 = vsel %vm335, %v538, 0
        %v665 = vsel %vm335, %v539, 0
        %v668 = vsel %vm335, %v540, 0
        %v671 = vsel %vm335, %v541, 0
        %v674 = vsel %vm335, %v542, 0
        %v677 = vsel %vm335, %v543, 0
        %v680 = vsel %vm335, %v544, 0
        %682 = vmatprep.subr.mxu0 0.0
        %683 = vmatpush1.msra.mxu0 %v647
        %684 = vmatprep.subr.mxu0 0.0
        %685 = vmatpush1.msra.mxu0 %v649
        %686 = vmatprep.subr.mxu0 0.0
        %687 = vmatpush1.msra.mxu0 %v651
        %688 = vmatprep.subr.mxu0 0.0
        %689 = vmatpush1.msra.mxu0 %v653
        %690 = vmatprep.subr.mxu0 0.0
        %691 = vmatpush1.msra.mxu0 0.0
        %692 = vmatprep.subr.mxu0 0.0
        %693 = vmatpush1.msra.mxu0 0.0
        %694 = vmatprep.subr.mxu0 0.0
        %695 = vmatpush1.msra.mxu0 0.0
        %696 = vmatprep.subr.mxu0 0.0
        %697 = vmatpush1.msra.mxu0 0.0
        %698 = vmatprep.subr.mxu0 0.0
        %699 = vmatpush1.msra.mxu0 0.0
        %700 = vmatprep.subr.mxu0 0.0
        %701 = vmatpush1.msra.mxu0 0.0
        %702 = vmatprep.subr.mxu0 0.0
        %703 = vmatpush1.msra.mxu0 0.0
        %704 = vmatprep.subr.mxu0 0.0
        %705 = vmatpush1.msra.mxu0 0.0
        %706 = vmatprep.subr.mxu0 0.0
        %707 = vmatpush1.msra.mxu0 0.0
        %708 = vmatprep.subr.mxu0 0.0
        %709 = vmatpush1.msra.mxu0 0.0
        %710 = vmatprep.subr.mxu0 0.0
        %711 = vmatpush1.msra.mxu0 0.0
        %712 = vmatprep.subr.mxu0 0.0
        %713 = vmatpush1.msra.mxu0 0.0
        %714 = vmatprep.subr.mxu0 0.0
        %715 = vmatpush1.msra.mxu0 0.0
        %716 = vmatprep.subr.mxu0 0.0
        %717 = vmatpush1.msra.mxu0 0.0
        %718 = vmatprep.subr.mxu0 0.0
        %719 = vmatpush1.msra.mxu0 0.0
        %720 = vmatprep.subr.mxu0 0.0
        %721 = vmatpush1.msra.mxu0 0.0
        %722 = vmatprep.subr.mxu0 0.0
        %723 = vmatpush1.msra.mxu0 0.0
        %724 = vmatprep.subr.mxu0 0.0
        %725 = vmatpush1.msra.mxu0 0.0
        %726 = vmatprep.subr.mxu0 0.0
        %727 = vmatpush1.msra.mxu0 0.0
        %728 = vmatprep.subr.mxu0 0.0
        %729 = vmatpush1.msra.mxu0 0.0
        %730 = vmatprep.subr.mxu0 0.0
        %731 = vmatpush1.msra.mxu0 0.0
        %732 = vmatprep.subr.mxu0 0.0
        %733 = vmatpush1.msra.mxu0 0.0
        %734 = vmatprep.subr.mxu0 0.0
        %735 = vmatpush1.msra.mxu0 0.0
        %736 = vmatprep.subr.mxu0 0.0
        %737 = vmatpush1.msra.mxu0 0.0
        %738 = vmatprep.subr.mxu0 0.0
        %739 = vmatpush1.msra.mxu0 0.0
        %740 = vmatprep.subr.mxu0 0.0
        %741 = vmatpush1.msra.mxu0 0.0
        %742 = vmatprep.subr.mxu0 0.0
        %743 = vmatpush1.msra.mxu0 0.0
        %744 = vmatprep.subr.mxu0 0.0
        %745 = vmatpush1.msra.mxu0 0.0
        %746 = vmatprep.mubr.f32.mxu0 0.0
        %747 = vmatmul.mubr.f32.gmra.mrb[0].mxu0 %v659
        %v748 = vpop.f32.mrb[0].mxu0
        %v749 = vadd.f32 0.0, %v748
        %v750 = vpop.f32.mrb[0].mxu0
        %751 = vmatprep.mubr.f32.mxu0 0.0
        %752 = vmatmul.mubr.f32.gmra.mrb[0].mxu0 %v662
        %v753 = vpop.f32.mrb[0].mxu0
        %v754 = vadd.f32 0.0, %v753
        %v755 = vpop.f32.mrb[0].mxu0
        %756 = vmatprep.mubr.f32.mxu0 0.0
        %757 = vmatmul.mubr.f32.gmra.mrb[0].mxu0 %v665
        %v758 = vpop.f32.mrb[0].mxu0
        %v759 = vadd.f32 0.0, %v758
        %v760 = vpop.f32.mrb[0].mxu0
        %761 = vmatprep.mubr.f32.mxu0 0.0
        %762 = vmatmul.mubr.f32.gmra.mrb[0].mxu0 %v668
        %v763 = vpop.f32.mrb[0].mxu0
        %v764 = vadd.f32 0.0, %v763
        %v765 = vpop.f32.mrb[0].mxu0
        %766 = vmatprep.mubr.f32.mxu0 0.0
        %767 = vmatmul.mubr.f32.gmra.mrb[0].mxu0 %v671
        %v768 = vpop.f32.mrb[0].mxu0
        %v769 = vadd.f32 0.0, %v768
        %v770 = vpop.f32.mrb[0].mxu0
        %771 = vmatprep.mubr.f32.mxu0 0.0
        %772 = vmatmul.mubr.f32.gmra.mrb[0].mxu0 %v674
        %v773 = vpop.f32.mrb[0].mxu0
        %v774 = vadd.f32 0.0, %v773
        %v775 = vpop.f32.mrb[0].mxu0
        %776 = vmatprep.mubr.f32.mxu0 0.0
        %777 = vmatmul.mubr.f32.gmra.mrb[0].mxu0 %v677
        %v778 = vpop.f32.mrb[0].mxu0
        %v779 = vadd.f32 0.0, %v778
        %v780 = vpop.f32.mrb[0].mxu0
        %781 = vmatprep.mubr.f32.mxu0 0.0
        %782 = vmatmul.mubr.f32.gmra.mrb[0].mxu0 %v680
        %v783 = vpop.f32.mrb[0].mxu0
        %v784 = vadd.f32 0.0, %v783
        %v785 = vpop.f32.mrb[0].mxu0
        %786 = vdwg.mxu0
        %787 = vrot.lane.b32.xlu0 %v307, 64
        %v788 = vpop.permute.xlu0 %787
        %789 = vrot.lane.b32.xlu0 %v308, 64
        %v790 = vpop.permute.xlu0 %789
        %791 = vrot.lane.b32.xlu0 %v309, 64
        %v792 = vpop.permute.xlu0 %791
        %793 = vrot.lane.b32.xlu0 %v310, 64
        %v794 = vpop.permute.xlu0 %793
        %799 = vmatprep.subr.mxu0 0.0
        %800 = vmatpush1.msra.mxu0 %v788
        %801 = vmatprep.subr.mxu0 0.0
        %802 = vmatpush1.msra.mxu0 %v790
        %803 = vmatprep.subr.mxu0 0.0
        %804 = vmatpush1.msra.mxu0 %v792
        %805 = vmatprep.subr.mxu0 0.0
        %806 = vmatpush1.msra.mxu0 %v794
        %807 = vmatprep.subr.mxu0 0.0
        %808 = vmatpush1.msra.mxu0 0.0
        %809 = vmatprep.subr.mxu0 0.0
        %810 = vmatpush1.msra.mxu0 0.0
        %811 = vmatprep.subr.mxu0 0.0
        %812 = vmatpush1.msra.mxu0 0.0
        %813 = vmatprep.subr.mxu0 0.0
        %814 = vmatpush1.msra.mxu0 0.0
        %815 = vmatprep.subr.mxu0 0.0
        %816 = vmatpush1.msra.mxu0 0.0
        %817 = vmatprep.subr.mxu0 0.0
        %818 = vmatpush1.msra.mxu0 0.0
        %819 = vmatprep.subr.mxu0 0.0
        %820 = vmatpush1.msra.mxu0 0.0
        %821 = vmatprep.subr.mxu0 0.0
        %822 = vmatpush1.msra.mxu0 0.0
        %823 = vmatprep.subr.mxu0 0.0
        %824 = vmatpush1.msra.mxu0 0.0
        %825 = vmatprep.subr.mxu0 0.0
        %826 = vmatpush1.msra.mxu0 0.0
        %827 = vmatprep.subr.mxu0 0.0
        %828 = vmatpush1.msra.mxu0 0.0
        %829 = vmatprep.subr.mxu0 0.0
        %830 = vmatpush1.msra.mxu0 0.0
        %831 = vmatprep.subr.mxu0 0.0
        %832 = vmatpush1.msra.mxu0 0.0
        %833 = vmatprep.subr.mxu0 0.0
        %834 = vmatpush1.msra.mxu0 0.0
        %835 = vmatprep.subr.mxu0 0.0
        %836 = vmatpush1.msra.mxu0 0.0
        %837 = vmatprep.subr.mxu0 0.0
        %838 = vmatpush1.msra.mxu0 0.0
        %839 = vmatprep.subr.mxu0 0.0
        %840 = vmatpush1.msra.mxu0 0.0
        %841 = vmatprep.subr.mxu0 0.0
        %842 = vmatpush1.msra.mxu0 0.0
        %843 = vmatprep.subr.mxu0 0.0
        %844 = vmatpush1.msra.mxu0 0.0
        %845 = vmatprep.subr.mxu0 0.0
        %846 = vmatpush1.msra.mxu0 0.0
        %847 = vmatprep.subr.mxu0 0.0
        %848 = vmatpush1.msra.mxu0 0.0
        %849 = vmatprep.subr.mxu0 0.0
        %850 = vmatpush1.msra.mxu0 0.0
        %851 = vmatprep.subr.mxu0 0.0
        %852 = vmatpush1.msra.mxu0 0.0
        %853 = vmatprep.subr.mxu0 0.0
        %854 = vmatpush1.msra.mxu0 0.0
        %855 = vmatprep.subr.mxu0 0.0
        %856 = vmatpush1.msra.mxu0 0.0
        %857 = vmatprep.subr.mxu0 0.0
        %858 = vmatpush1.msra.mxu0 0.0
        %859 = vmatprep.subr.mxu0 0.0
        %860 = vmatpush1.msra.mxu0 0.0
        %861 = vmatprep.subr.mxu0 0.0
        %862 = vmatpush1.msra.mxu0 0.0
        %863 = vmatprep.mubr.f32.mxu0 0.0
        %864 = vmatmul.mubr.f32.gmra.mrb[0].mxu0 %v659
        %v865 = vpop.f32.mrb[0].mxu0
        %v866 = vadd.f32 0.0, %v865
        %v867 = vpop.f32.mrb[0].mxu0
        %868 = vmatprep.mubr.f32.mxu0 0.0
        %869 = vmatmul.mubr.f32.gmra.mrb[0].mxu0 %v662
        %v870 = vpop.f32.mrb[0].mxu0
        %v871 = vadd.f32 0.0, %v870
        %v872 = vpop.f32.mrb[0].mxu0
        %873 = vmatprep.mubr.f32.mxu0 0.0
        %874 = vmatmul.mubr.f32.gmra.mrb[0].mxu0 %v665
        %v875 = vpop.f32.mrb[0].mxu0
        %v876 = vadd.f32 0.0, %v875
        %v877 = vpop.f32.mrb[0].mxu0
        %878 = vmatprep.mubr.f32.mxu0 0.0
        %879 = vmatmul.mubr.f32.gmra.mrb[0].mxu0 %v668
        %v880 = vpop.f32.mrb[0].mxu0
        %v881 = vadd.f32 0.0, %v880
        %v882 = vpop.f32.mrb[0].mxu0
        %883 = vmatprep.mubr.f32.mxu0 0.0
        %884 = vmatmul.mubr.f32.gmra.mrb[0].mxu0 %v671
        %v885 = vpop.f32.mrb[0].mxu0
        %v886 = vadd.f32 0.0, %v885
        %v887 = vpop.f32.mrb[0].mxu0
        %888 = vmatprep.mubr.f32.mxu0 0.0
        %889 = vmatmul.mubr.f32.gmra.mrb[0].mxu0 %v674
        %v890 = vpop.f32.mrb[0].mxu0
        %v891 = vadd.f32 0.0, %v890
        %v892 = vpop.f32.mrb[0].mxu0
        %893 = vmatprep.mubr.f32.mxu0 0.0
        %894 = vmatmul.mubr.f32.gmra.mrb[0].mxu0 %v677
        %v895 = vpop.f32.mrb[0].mxu0
        %v896 = vadd.f32 0.0, %v895
        %v897 = vpop.f32.mrb[0].mxu0
        %898 = vmatprep.mubr.f32.mxu0 0.0
        %899 = vmatmul.mubr.f32.gmra.mrb[0].mxu0 %v680
        %v900 = vpop.f32.mrb[0].mxu0
        %v901 = vadd.f32 0.0, %v900
        %v902 = vpop.f32.mrb[0].mxu0
        %903 = vdwg.mxu0
        %v905 = vsel %vm335, %v624, 0
        %v908 = vsel %vm335, %v629, 0
        %v911 = vsel %vm335, %v634, 0
        %v914 = vsel %vm335, %v639, 0
        %v917 = vsel %vm335, %v749, 0
        %v920 = vsel %vm335, %v754, 0
        %v923 = vsel %vm335, %v759, 0
        %v926 = vsel %vm335, %v764, 0
        %v929 = vsel %vm335, %v769, 0
        %v932 = vsel %vm335, %v774, 0
        %v935 = vsel %vm335, %v779, 0
        %v938 = vsel %vm335, %v784, 0
        %940 = vmatprep.subr.mxu0 0.0
        %941 = vmatpush1.xpose.msra.mxu0 %v917
        %942 = vmatprep.subr.mxu0 0.0
        %943 = vmatpush1.xpose.msra.mxu0 %v920
        %944 = vmatprep.subr.mxu0 0.0
        %945 = vmatpush1.xpose.msra.mxu0 %v923
        %946 = vmatprep.subr.mxu0 0.0
        %947 = vmatpush1.xpose.msra.mxu0 %v926
        %948 = vmatprep.subr.mxu0 0.0
        %949 = vmatpush1.xpose.msra.mxu0 %v929
        %950 = vmatprep.subr.mxu0 0.0
        %951 = vmatpush1.xpose.msra.mxu0 %v932
        %952 = vmatprep.subr.mxu0 0.0
        %953 = vmatpush1.xpose.msra.mxu0 %v935
        %954 = vmatprep.subr.mxu0 0.0
        %955 = vmatpush1.xpose.msra.mxu0 %v938
        %956 = vmatprep.subr.mxu0 0.0
        %957 = vmatpush1.xpose.msra.mxu0 0.0
        %958 = vmatprep.subr.mxu0 0.0
        %959 = vmatpush1.xpose.msra.mxu0 0.0
        %960 = vmatprep.subr.mxu0 0.0
        %961 = vmatpush1.xpose.msra.mxu0 0.0
        %962 = vmatprep.subr.mxu0 0.0
        %963 = vmatpush1.xpose.msra.mxu0 0.0
        %964 = vmatprep.subr.mxu0 0.0
        %965 = vmatpush1.xpose.msra.mxu0 0.0
        %966 = vmatprep.subr.mxu0 0.0
        %967 = vmatpush1.xpose.msra.mxu0 0.0
        %968 = vmatprep.subr.mxu0 0.0
        %969 = vmatpush1.xpose.msra.mxu0 0.0
        %970 = vmatprep.subr.mxu0 0.0
        %971 = vmatpush1.xpose.msra.mxu0 0.0
        %972 = vmatprep.subr.mxu0 0.0
        %973 = vmatpush1.xpose.msra.mxu0 0.0
        %974 = vmatprep.subr.mxu0 0.0
        %975 = vmatpush1.xpose.msra.mxu0 0.0
        %976 = vmatprep.subr.mxu0 0.0
        %977 = vmatpush1.xpose.msra.mxu0 0.0
        %978 = vmatprep.subr.mxu0 0.0
        %979 = vmatpush1.xpose.msra.mxu0 0.0
        %980 = vmatprep.subr.mxu0 0.0
        %981 = vmatpush1.xpose.msra.mxu0 0.0
        %982 = vmatprep.subr.mxu0 0.0
        %983 = vmatpush1.xpose.msra.mxu0 0.0
        %984 = vmatprep.subr.mxu0 0.0
        %985 = vmatpush1.xpose.msra.mxu0 0.0
        %986 = vmatprep.subr.mxu0 0.0
        %987 = vmatpush1.xpose.msra.mxu0 0.0
        %988 = vmatprep.subr.mxu0 0.0
        %989 = vmatpush1.xpose.msra.mxu0 0.0
        %990 = vmatprep.subr.mxu0 0.0
        %991 = vmatpush1.xpose.msra.mxu0 0.0
        %992 = vmatprep.subr.mxu0 0.0
        %993 = vmatpush1.xpose.msra.mxu0 0.0
        %994 = vmatprep.subr.mxu0 0.0
        %995 = vmatpush1.xpose.msra.mxu0 0.0
        %996 = vmatprep.subr.mxu0 0.0
        %997 = vmatpush1.xpose.msra.mxu0 0.0
        %998 = vmatprep.subr.mxu0 0.0
        %999 = vmatpush1.xpose.msra.mxu0 0.0
        %1000 = vmatprep.subr.mxu0 0.0
        %1001 = vmatpush1.xpose.msra.mxu0 0.0
        %1002 = vmatprep.subr.mxu0 0.0
        %1003 = vmatpush1.xpose.msra.mxu0 0.0
        %1004 = vmatprep.mubr.f32.mxu0 0.0
        %1005 = vmatmul.mubr.f32.gmra.mrb[0].mxu0 %v905
        %v1006 = vpop.f32.mrb[0].mxu0
        %v1007 = vadd.f32 %v285, %v1006
        %v1008 = vpop.f32.mrb[0].mxu0
        %1009 = vmatprep.mubr.f32.mxu0 0.0
        %1010 = vmatmul.mubr.f32.gmra.mrb[0].mxu0 %v908
        %v1011 = vpop.f32.mrb[0].mxu0
        %v1012 = vadd.f32 %v286, %v1011
        %v1013 = vpop.f32.mrb[0].mxu0
        %1014 = vmatprep.mubr.f32.mxu0 0.0
        %1015 = vmatmul.mubr.f32.gmra.mrb[0].mxu0 %v911
        %v1016 = vpop.f32.mrb[0].mxu0
        %v1017 = vadd.f32 %v287, %v1016
        %v1018 = vpop.f32.mrb[0].mxu0
        %1019 = vmatprep.mubr.f32.mxu0 0.0
        %1020 = vmatmul.mubr.f32.gmra.mrb[0].mxu0 %v914
        %v1021 = vpop.f32.mrb[0].mxu0
        %v1022 = vadd.f32 %v288, %v1021
        %v1023 = vpop.f32.mrb[0].mxu0
        %1024 = vdwg.mxu0
        %vm1025 = vcmask 523264
        %v1026 = vsel %vm1025, %v1007, -inf
        %v1027 = vsel %vm1025, %v1012, -inf
        %v1028 = vsel %vm1025, %v1017, -inf
        %v1029 = vsel %vm1025, %v1022, -inf
        %v1030 = vmax.f32 %v1026, %v1027
        %v1031 = vmax.f32 %v1028, %v1029
        %v1032 = vmax.f32 %v1030, %v1031
        %v1033 = vrot.slane %v1032, 4
        %v1034 = vmax.f32 %v1032, %v1033
        %v1035 = vrot.slane %v1034, 2
        %v1036 = vmax.f32 %v1034, %v1035
        %v1037 = vrot.slane %v1036, 1
        %v1038 = vmax.f32 %v1036, %v1037
        %v1039 = vsub.f32 %v1007, %v1038
        %v1040 = vsub.f32 %v1012, %v1038
        %v1041 = vsub.f32 %v1017, %v1038
        %v1042 = vsub.f32 %v1022, %v1038
        %v1043 = vmul.f32 %v1039, 1.442695
        %v1044 = vpow.pop %v1043
        %v1045 = vmul.f32 %v1040, 1.442695
        %v1046 = vpow.pop %v1045
        %v1047 = vmul.f32 %v1041, 1.442695
        %v1048 = vpow.pop %v1047
        %v1049 = vmul.f32 %v1042, 1.442695
        %v1050 = vpow.pop %v1049
        %v1051 = vsel %vm1025, %v1044, 0.0
        %v1052 = vsel %vm1025, %v1046, 0.0
        %v1053 = vadd.f32 %v1051, %v1052
        %v1054 = vsel %vm1025, %v1048, 0.0
        %v1055 = vadd.f32 %v1053, %v1054
        %v1056 = vsel %vm1025, %v1050, 0.0
        %v1057 = vadd.f32 %v1055, %v1056
        %v1058 = vrot.slane %v1057, 4
        %v1059 = vadd.f32 %v1057, %v1058
        %v1060 = vrot.slane %v1059, 2
        %v1061 = vadd.f32 %v1059, %v1060
        %v1062 = vrot.slane %v1061, 1
        %v1063 = vadd.f32 %v1061, %v1062
        %v1064 = vrcp.pop %v1063
        %v1065 = vmul.f32 1.0, %v1064
        %v1066 = vmul.f32 %v1044, %v1065
        %v1067 = vmul.f32 %v1046, %v1065
        %v1068 = vmul.f32 %v1048, %v1065
        %v1069 = vmul.f32 %v1050, %v1065
        %v1070 = vadd.f32 %v1066, 1e-10
        %v1071 = vadd.f32 %v1067, 1e-10
        %v1072 = vadd.f32 %v1068, 1e-10
        %v1073 = vadd.f32 %v1069, 1e-10
        %v1074 = vsel %vm1025, %v1070, 0.0
        %1075 = vadd.xlane.f32.xlu0 %v1074
        %v1076 = vpop.xlane.xlu0 %1075
        %v1077 = vsel %vm1025, %v1071, 0.0
        %1078 = vadd.xlane.f32.xlu0 %v1077
        %v1079 = vpop.xlane.xlu0 %1078
        %v1080 = vsel %vm1025, %v1072, 0.0
        %1081 = vadd.xlane.f32.xlu0 %v1080
        %v1082 = vpop.xlane.xlu0 %1081
        %v1083 = vsel %vm1025, %v1073, 0.0
        %1084 = vadd.xlane.f32.xlu0 %v1083
        %v1085 = vpop.xlane.xlu0 %1084
        %v1086 = vrcp.pop %v1076
        %v1087 = vmul.f32 1.0, %v1086
        %v1088 = vrcp.pop %v1079
        %v1089 = vmul.f32 1.0, %v1088
        %v1090 = vrcp.pop %v1082
        %v1091 = vmul.f32 1.0, %v1090
        %v1092 = vrcp.pop %v1085
        %v1093 = vmul.f32 1.0, %v1092
        %v1094 = vmul.f32 %v1066, %v1087
        %v1095 = vmul.f32 %v1067, %v1089
        %v1096 = vmul.f32 %v1068, %v1091
        %v1097 = vmul.f32 %v1069, %v1093
        %v1099 = vsel %vm1025, %v1094, 0
        %v1102 = vsel %vm1025, %v1095, 0
        %v1105 = vsel %vm1025, %v1096, 0
        %v1108 = vsel %vm1025, %v1097, 0
        %1110 = vmatprep.subr.mxu0 0.0
        %1111 = vmatpush1.msra.mxu0 %v866
        %1112 = vmatprep.subr.mxu0 0.0
        %1113 = vmatpush1.msra.mxu0 %v871
        %1114 = vmatprep.subr.mxu0 0.0
        %1115 = vmatpush1.msra.mxu0 %v876
        %1116 = vmatprep.subr.mxu0 0.0
        %1117 = vmatpush1.msra.mxu0 %v881
        %1118 = vmatprep.subr.mxu0 0.0
        %1119 = vmatpush1.msra.mxu0 %v886
        %1120 = vmatprep.subr.mxu0 0.0
        %1121 = vmatpush1.msra.mxu0 %v891
        %1122 = vmatprep.subr.mxu0 0.0
        %1123 = vmatpush1.msra.mxu0 %v896
        %1124 = vmatprep.subr.mxu0 0.0
        %1125 = vmatpush1.msra.mxu0 %v901
        %1126 = vmatprep.subr.mxu0 0.0
        %1127 = vmatpush1.msra.mxu0 0.0
        %1128 = vmatprep.subr.mxu0 0.0
        %1129 = vmatpush1.msra.mxu0 0.0
        %1130 = vmatprep.subr.mxu0 0.0
        %1131 = vmatpush1.msra.mxu0 0.0
        %1132 = vmatprep.subr.mxu0 0.0
        %1133 = vmatpush1.msra.mxu0 0.0
        %1134 = vmatprep.subr.mxu0 0.0
        %1135 = vmatpush1.msra.mxu0 0.0
        %1136 = vmatprep.subr.mxu0 0.0
        %1137 = vmatpush1.msra.mxu0 0.0
        %1138 = vmatprep.subr.mxu0 0.0
        %1139 = vmatpush1.msra.mxu0 0.0
        %1140 = vmatprep.subr.mxu0 0.0
        %1141 = vmatpush1.msra.mxu0 0.0
        %1142 = vmatprep.subr.mxu0 0.0
        %1143 = vmatpush1.msra.mxu0 0.0
        %1144 = vmatprep.subr.mxu0 0.0
        %1145 = vmatpush1.msra.mxu0 0.0
        %1146 = vmatprep.subr.mxu0 0.0
        %1147 = vmatpush1.msra.mxu0 0.0
        %1148 = vmatprep.subr.mxu0 0.0
        %1149 = vmatpush1.msra.mxu0 0.0
        %1150 = vmatprep.subr.mxu0 0.0
        %1151 = vmatpush1.msra.mxu0 0.0
        %1152 = vmatprep.subr.mxu0 0.0
        %1153 = vmatpush1.msra.mxu0 0.0
        %1154 = vmatprep.subr.mxu0 0.0
        %1155 = vmatpush1.msra.mxu0 0.0
        %1156 = vmatprep.subr.mxu0 0.0
        %1157 = vmatpush1.msra.mxu0 0.0
        %1158 = vmatprep.subr.mxu0 0.0
        %1159 = vmatpush1.msra.mxu0 0.0
        %1160 = vmatprep.subr.mxu0 0.0
        %1161 = vmatpush1.msra.mxu0 0.0
        %1162 = vmatprep.subr.mxu0 0.0
        %1163 = vmatpush1.msra.mxu0 0.0
        %1164 = vmatprep.subr.mxu0 0.0
        %1165 = vmatpush1.msra.mxu0 0.0
        %1166 = vmatprep.subr.mxu0 0.0
        %1167 = vmatpush1.msra.mxu0 0.0
        %1168 = vmatprep.subr.mxu0 0.0
        %1169 = vmatpush1.msra.mxu0 0.0
        %1170 = vmatprep.subr.mxu0 0.0
        %1171 = vmatpush1.msra.mxu0 0.0
        %1172 = vmatprep.subr.mxu0 0.0
        %1173 = vmatpush1.msra.mxu0 0.0
        %1174 = vmatprep.mubr.f32.mxu0 0.0
        %1175 = vmatmul.mubr.f32.gmra.mrb[0].mxu0 %v1099
        %v1176 = vpop.f32.mrb[0].mxu0
        %v1177 = vadd.f32 0.0, %v1176
        %v1178 = vpop.f32.mrb[0].mxu0
        %1179 = vmatprep.mubr.f32.mxu0 0.0
        %1180 = vmatmul.mubr.f32.gmra.mrb[0].mxu0 %v1102
        %v1181 = vpop.f32.mrb[0].mxu0
        %v1182 = vadd.f32 0.0, %v1181
        %v1183 = vpop.f32.mrb[0].mxu0
        %1184 = vmatprep.mubr.f32.mxu0 0.0
        %1185 = vmatmul.mubr.f32.gmra.mrb[0].mxu0 %v1105
        %v1186 = vpop.f32.mrb[0].mxu0
        %v1187 = vadd.f32 0.0, %v1186
        %v1188 = vpop.f32.mrb[0].mxu0
        %1189 = vmatprep.mubr.f32.mxu0 0.0
        %1190 = vmatmul.mubr.f32.gmra.mrb[0].mxu0 %v1108
        %v1191 = vpop.f32.mrb[0].mxu0
        %v1192 = vadd.f32 0.0, %v1191
        %v1193 = vpop.f32.mrb[0].mxu0
        %1194 = vdwg.mxu0
        %1195 = vrot.lane.b32.xlu0 %v307, 32
        %v1196 = vpop.permute.xlu0 %1195
        %1197 = vrot.lane.b32.xlu0 %v308, 32
        %v1198 = vpop.permute.xlu0 %1197
        %1199 = vrot.lane.b32.xlu0 %v309, 32
        %v1200 = vpop.permute.xlu0 %1199
        %1201 = vrot.lane.b32.xlu0 %v310, 32
        %v1202 = vpop.permute.xlu0 %1201
        %v1208 = vsel %vm335, %v1177, 0
        %v1211 = vsel %vm335, %v1182, 0
        %v1214 = vsel %vm335, %v1187, 0
        %v1217 = vsel %vm335, %v1192, 0
        %1219 = vmatprep.subr.mxu0 0.0
        %1220 = vmatpush1.msra.mxu0 %v1196
        %1221 = vmatprep.subr.mxu0 0.0
        %1222 = vmatpush1.msra.mxu0 %v1198
        %1223 = vmatprep.subr.mxu0 0.0
        %1224 = vmatpush1.msra.mxu0 %v1200
        %1225 = vmatprep.subr.mxu0 0.0
        %1226 = vmatpush1.msra.mxu0 %v1202
        %1227 = vmatprep.subr.mxu0 0.0
        %1228 = vmatpush1.msra.mxu0 0.0
        %1229 = vmatprep.subr.mxu0 0.0
        %1230 = vmatpush1.msra.mxu0 0.0
        %1231 = vmatprep.subr.mxu0 0.0
        %1232 = vmatpush1.msra.mxu0 0.0
        %1233 = vmatprep.subr.mxu0 0.0
        %1234 = vmatpush1.msra.mxu0 0.0
        %1235 = vmatprep.subr.mxu0 0.0
        %1236 = vmatpush1.msra.mxu0 0.0
        %1237 = vmatprep.subr.mxu0 0.0
        %1238 = vmatpush1.msra.mxu0 0.0
        %1239 = vmatprep.subr.mxu0 0.0
        %1240 = vmatpush1.msra.mxu0 0.0
        %1241 = vmatprep.subr.mxu0 0.0
        %1242 = vmatpush1.msra.mxu0 0.0
        %1243 = vmatprep.subr.mxu0 0.0
        %1244 = vmatpush1.msra.mxu0 0.0
        %1245 = vmatprep.subr.mxu0 0.0
        %1246 = vmatpush1.msra.mxu0 0.0
        %1247 = vmatprep.subr.mxu0 0.0
        %1248 = vmatpush1.msra.mxu0 0.0
        %1249 = vmatprep.subr.mxu0 0.0
        %1250 = vmatpush1.msra.mxu0 0.0
        %1251 = vmatprep.subr.mxu0 0.0
        %1252 = vmatpush1.msra.mxu0 0.0
        %1253 = vmatprep.subr.mxu0 0.0
        %1254 = vmatpush1.msra.mxu0 0.0
        %1255 = vmatprep.subr.mxu0 0.0
        %1256 = vmatpush1.msra.mxu0 0.0
        %1257 = vmatprep.subr.mxu0 0.0
        %1258 = vmatpush1.msra.mxu0 0.0
        %1259 = vmatprep.subr.mxu0 0.0
        %1260 = vmatpush1.msra.mxu0 0.0
        %1261 = vmatprep.subr.mxu0 0.0
        %1262 = vmatpush1.msra.mxu0 0.0
        %1263 = vmatprep.subr.mxu0 0.0
        %1264 = vmatpush1.msra.mxu0 0.0
        %1265 = vmatprep.subr.mxu0 0.0
        %1266 = vmatpush1.msra.mxu0 0.0
        %1267 = vmatprep.subr.mxu0 0.0
        %1268 = vmatpush1.msra.mxu0 0.0
        %1269 = vmatprep.subr.mxu0 0.0
        %1270 = vmatpush1.msra.mxu0 0.0
        %1271 = vmatprep.subr.mxu0 0.0
        %1272 = vmatpush1.msra.mxu0 0.0
        %1273 = vmatprep.subr.mxu0 0.0
        %1274 = vmatpush1.msra.mxu0 0.0
        %1275 = vmatprep.subr.mxu0 0.0
        %1276 = vmatpush1.msra.mxu0 0.0
        %1277 = vmatprep.subr.mxu0 0.0
        %1278 = vmatpush1.msra.mxu0 0.0
        %1279 = vmatprep.subr.mxu0 0.0
        %1280 = vmatpush1.msra.mxu0 0.0
        %1281 = vmatprep.subr.mxu0 0.0
        %1282 = vmatpush1.msra.mxu0 0.0
        %1283 = vmatprep.mubr.f32.mxu0 0.0
        %1284 = vmatmul.mubr.f32.gmra.mrb[0].mxu0 %v1208
        %v1285 = vpop.f32.mrb[0].mxu0
        %v1286 = vadd.f32 0.0, %v1285
        %v1287 = vpop.f32.mrb[0].mxu0
        %1288 = vmatprep.mubr.f32.mxu0 0.0
        %1289 = vmatmul.mubr.f32.gmra.mrb[0].mxu0 %v1211
        %v1290 = vpop.f32.mrb[0].mxu0
        %v1291 = vadd.f32 0.0, %v1290
        %v1292 = vpop.f32.mrb[0].mxu0
        %1293 = vmatprep.mubr.f32.mxu0 0.0
        %1294 = vmatmul.mubr.f32.gmra.mrb[0].mxu0 %v1214
        %v1295 = vpop.f32.mrb[0].mxu0
        %v1296 = vadd.f32 0.0, %v1295
        %v1297 = vpop.f32.mrb[0].mxu0
        %1298 = vmatprep.mubr.f32.mxu0 0.0
        %1299 = vmatmul.mubr.f32.gmra.mrb[0].mxu0 %v1217
        %v1300 = vpop.f32.mrb[0].mxu0
        %v1301 = vadd.f32 0.0, %v1300
        %v1302 = vpop.f32.mrb[0].mxu0
        %1303 = vdwg.mxu0
        %v1304 = vadd.f32 %v405, %v1286
        %v1305 = vadd.f32 %v406, %v1291
        %v1306 = vadd.f32 %v407, %v1296
        %v1307 = vadd.f32 %v408, %v1301
        %v1308 = vsel %vm335, %v1304, 0.0
        %1309 = vadd.xlane.f32.xlu0 %v1308
        %v1310 = vpop.xlane.xlu0 %1309
        %v1311 = vsel %vm335, %v1305, 0.0
        %1312 = vadd.xlane.f32.xlu0 %v1311
        %v1313 = vpop.xlane.xlu0 %1312
        %v1314 = vsel %vm335, %v1306, 0.0
        %1315 = vadd.xlane.f32.xlu0 %v1314
        %v1316 = vpop.xlane.xlu0 %1315
        %v1317 = vsel %vm335, %v1307, 0.0
        %1318 = vadd.xlane.f32.xlu0 %v1317
        %v1319 = vpop.xlane.xlu0 %1318
        %v1320 = vmul.f32 %v1310, %v348
        %v1321 = vmul.f32 %v1313, %v348
        %v1322 = vmul.f32 %v1316, %v348
        %v1323 = vmul.f32 %v1319, %v348
        %v1324 = vsub.f32 %v1304, %v1320
        %v1325 = vsub.f32 %v1305, %v1321
        %v1326 = vsub.f32 %v1306, %v1322
        %v1327 = vsub.f32 %v1307, %v1323
        %v1328 = vmul.f32 %v1324, %v1324
        %v1329 = vmul.f32 %v1325, %v1325
        %v1330 = vmul.f32 %v1326, %v1326
        %v1331 = vmul.f32 %v1327, %v1327
        %v1332 = vsel %vm335, %v1328, 0.0
        %1333 = vadd.xlane.f32.xlu0 %v1332
        %v1334 = vpop.xlane.xlu0 %1333
        %v1335 = vsel %vm335, %v1329, 0.0
        %1336 = vadd.xlane.f32.xlu0 %v1335
        %v1337 = vpop.xlane.xlu0 %1336
        %v1338 = vsel %vm335, %v1330, 0.0
        %1339 = vadd.xlane.f32.xlu0 %v1338
        %v1340 = vpop.xlane.xlu0 %1339
        %v1341 = vsel %vm335, %v1331, 0.0
        %1342 = vadd.xlane.f32.xlu0 %v1341
        %v1343 = vpop.xlane.xlu0 %1342
        %v1344 = vmul.f32 %v1334, %v348
        %v1345 = vmul.f32 %v1337, %v348
        %v1346 = vmul.f32 %v1340, %v348
        %v1347 = vmul.f32 %v1343, %v348
        %v1348 = vadd.f32 %v1344, 1e-05
        %v1349 = vadd.f32 %v1345, 1e-05
        %v1350 = vadd.f32 %v1346, 1e-05
        %v1351 = vadd.f32 %v1347, 1e-05
        %v1352 = vrsqrt.pop %v1348
        %v1353 = vrsqrt.pop %v1349
        %v1354 = vrsqrt.pop %v1350
        %v1355 = vrsqrt.pop %v1351
        %v1356 = vmul.f32 %v1324, %v1352
        %v1357 = vmul.f32 %v1325, %v1353
        %v1358 = vmul.f32 %v1326, %v1354
        %v1359 = vmul.f32 %v1327, %v1355
        %v1360 = vlaneseq
        %v1361 = vshrl.u32 %v1360, 7
        %v1362 = vsub.s32 0, %v1361
        %v1363 = vrot.slane %v297, %v1362
        %v1364 = vmul.f32 %v1356, %v1363
        %v1365 = vmul.f32 %v1357, %v1363
        %v1366 = vmul.f32 %v1358, %v1363
        %v1367 = vmul.f32 %v1359, %v1363
        %v1368 = vlaneseq
        %v1369 = vshrl.u32 %v1368, 7
        %v1370 = vsub.s32 0, %v1369
        %v1371 = vrot.slane %v298, %v1370
        %v1372 = vadd.f32 %v1364, %v1371
        %v1373 = vadd.f32 %v1365, %v1371
        %v1374 = vadd.f32 %v1366, %v1371
        %v1375 = vadd.f32 %v1367, %v1371
        %v1377 = vsel %vm335, %v1372, 0
        %v1380 = vsel %vm335, %v1373, 0
        %v1383 = vsel %vm335, %v1374, 0
        %v1386 = vsel %vm335, %v1375, 0
        %1388 = vmatprep.subr.mxu0 0.0
        %1389 = vmatpush1.msra.mxu0 %v311
        %1390 = vmatprep.subr.mxu0 0.0
        %1391 = vmatpush1.msra.mxu0 %v312
        %1392 = vmatprep.subr.mxu0 0.0
        %1393 = vmatpush1.msra.mxu0 %v313
        %1394 = vmatprep.subr.mxu0 0.0
        %1395 = vmatpush1.msra.mxu0 %v314
        %1396 = vmatprep.subr.mxu0 0.0
        %1397 = vmatpush1.msra.mxu0 0.0
        %1398 = vmatprep.subr.mxu0 0.0
        %1399 = vmatpush1.msra.mxu0 0.0
        %1400 = vmatprep.subr.mxu0 0.0
        %1401 = vmatpush1.msra.mxu0 0.0
        %1402 = vmatprep.subr.mxu0 0.0
        %1403 = vmatpush1.msra.mxu0 0.0
        %1404 = vmatprep.subr.mxu0 0.0
        %1405 = vmatpush1.msra.mxu0 0.0
        %1406 = vmatprep.subr.mxu0 0.0
        %1407 = vmatpush1.msra.mxu0 0.0
        %1408 = vmatprep.subr.mxu0 0.0
        %1409 = vmatpush1.msra.mxu0 0.0
        %1410 = vmatprep.subr.mxu0 0.0
        %1411 = vmatpush1.msra.mxu0 0.0
        %1412 = vmatprep.subr.mxu0 0.0
        %1413 = vmatpush1.msra.mxu0 0.0
        %1414 = vmatprep.subr.mxu0 0.0
        %1415 = vmatpush1.msra.mxu0 0.0
        %1416 = vmatprep.subr.mxu0 0.0
        %1417 = vmatpush1.msra.mxu0 0.0
        %1418 = vmatprep.subr.mxu0 0.0
        %1419 = vmatpush1.msra.mxu0 0.0
        %1420 = vmatprep.subr.mxu0 0.0
        %1421 = vmatpush1.msra.mxu0 0.0
        %1422 = vmatprep.subr.mxu0 0.0
        %1423 = vmatpush1.msra.mxu0 0.0
        %1424 = vmatprep.subr.mxu0 0.0
        %1425 = vmatpush1.msra.mxu0 0.0
        %1426 = vmatprep.subr.mxu0 0.0
        %1427 = vmatpush1.msra.mxu0 0.0
        %1428 = vmatprep.subr.mxu0 0.0
        %1429 = vmatpush1.msra.mxu0 0.0
        %1430 = vmatprep.subr.mxu0 0.0
        %1431 = vmatpush1.msra.mxu0 0.0
        %1432 = vmatprep.subr.mxu0 0.0
        %1433 = vmatpush1.msra.mxu0 0.0
        %1434 = vmatprep.subr.mxu0 0.0
        %1435 = vmatpush1.msra.mxu0 0.0
        %1436 = vmatprep.subr.mxu0 0.0
        %1437 = vmatpush1.msra.mxu0 0.0
        %1438 = vmatprep.subr.mxu0 0.0
        %1439 = vmatpush1.msra.mxu0 0.0
        %1440 = vmatprep.subr.mxu0 0.0
        %1441 = vmatpush1.msra.mxu0 0.0
        %1442 = vmatprep.subr.mxu0 0.0
        %1443 = vmatpush1.msra.mxu0 0.0
        %1444 = vmatprep.subr.mxu0 0.0
        %1445 = vmatpush1.msra.mxu0 0.0
        %1446 = vmatprep.subr.mxu0 0.0
        %1447 = vmatpush1.msra.mxu0 0.0
        %1448 = vmatprep.subr.mxu0 0.0
        %1449 = vmatpush1.msra.mxu0 0.0
        %1450 = vmatprep.subr.mxu0 0.0
        %1451 = vmatpush1.msra.mxu0 0.0
        %1452 = vmatprep.mubr.f32.mxu0 0.0
        %1453 = vmatmul.mubr.f32.gmra.mrb[0].mxu0 %v1377
        %v1454 = vpop.f32.mrb[0].mxu0
        %v1455 = vadd.f32 0.0, %v1454
        %v1456 = vpop.f32.mrb[0].mxu0
        %1457 = vmatprep.mubr.f32.mxu0 0.0
        %1458 = vmatmul.mubr.f32.gmra.mrb[0].mxu0 %v1380
        %v1459 = vpop.f32.mrb[0].mxu0
        %v1460 = vadd.f32 0.0, %v1459
        %v1461 = vpop.f32.mrb[0].mxu0
        %1462 = vmatprep.mubr.f32.mxu0 0.0
        %1463 = vmatmul.mubr.f32.gmra.mrb[0].mxu0 %v1383
        %v1464 = vpop.f32.mrb[0].mxu0
        %v1465 = vadd.f32 0.0, %v1464
        %v1466 = vpop.f32.mrb[0].mxu0
        %1467 = vmatprep.mubr.f32.mxu0 0.0
        %1468 = vmatmul.mubr.f32.gmra.mrb[0].mxu0 %v1386
        %v1469 = vpop.f32.mrb[0].mxu0
        %v1470 = vadd.f32 0.0, %v1469
        %v1471 = vpop.f32.mrb[0].mxu0
        %1472 = vdwg.mxu0
        %1477 = vrot.lane.b32.xlu0 %v1455, 96
        %v1478 = vpop.permute.xlu0 %1477
        %1479 = vrot.lane.b32.xlu0 %v1460, 96
        %v1480 = vpop.permute.xlu0 %1479
        %1481 = vrot.lane.b32.xlu0 %v1465, 96
        %v1482 = vpop.permute.xlu0 %1481
        %1483 = vrot.lane.b32.xlu0 %v1470, 96
        %v1484 = vpop.permute.xlu0 %1483
        %1489 = vrot.lane.b32.xlu0 %v285, 64
        %v1490 = vpop.permute.xlu0 %1489
        %1491 = vrot.lane.b32.xlu0 %v286, 64
        %v1492 = vpop.permute.xlu0 %1491
        %1493 = vrot.lane.b32.xlu0 %v287, 64
        %v1494 = vpop.permute.xlu0 %1493
        %1495 = vrot.lane.b32.xlu0 %v288, 64
        %v1496 = vpop.permute.xlu0 %1495
        %vm1501 = vcmask 64512
        %v1502 = vsel %vm1501, %v1455, 0
        %v1504 = vsel %vm1501, %v1460, 0
        %v1506 = vsel %vm1501, %v1465, 0
        %v1508 = vsel %vm1501, %v1470, 0
        %v1510 = vsel %vm1501, %v1478, 0
        %v1512 = vsel %vm1501, %v1480, 0
        %v1514 = vsel %vm1501, %v1482, 0
        %v1516 = vsel %vm1501, %v1484, 0
        %1518 = vmatprep.subr.mxu0 0.0
        %1519 = vmatpush1.xpose.msra.mxu0 %v1510
        %1520 = vmatprep.subr.mxu0 0.0
        %1521 = vmatpush1.xpose.msra.mxu0 %v1512
        %1522 = vmatprep.subr.mxu0 0.0
        %1523 = vmatpush1.xpose.msra.mxu0 %v1514
        %1524 = vmatprep.subr.mxu0 0.0
        %1525 = vmatpush1.xpose.msra.mxu0 %v1516
        %1526 = vmatprep.subr.mxu0 0.0
        %1527 = vmatpush1.xpose.msra.mxu0 0.0
        %1528 = vmatprep.subr.mxu0 0.0
        %1529 = vmatpush1.xpose.msra.mxu0 0.0
        %1530 = vmatprep.subr.mxu0 0.0
        %1531 = vmatpush1.xpose.msra.mxu0 0.0
        %1532 = vmatprep.subr.mxu0 0.0
        %1533 = vmatpush1.xpose.msra.mxu0 0.0
        %1534 = vmatprep.subr.mxu0 0.0
        %1535 = vmatpush1.xpose.msra.mxu0 0.0
        %1536 = vmatprep.subr.mxu0 0.0
        %1537 = vmatpush1.xpose.msra.mxu0 0.0
        %1538 = vmatprep.subr.mxu0 0.0
        %1539 = vmatpush1.xpose.msra.mxu0 0.0
        %1540 = vmatprep.subr.mxu0 0.0
        %1541 = vmatpush1.xpose.msra.mxu0 0.0
        %1542 = vmatprep.subr.mxu0 0.0
        %1543 = vmatpush1.xpose.msra.mxu0 0.0
        %1544 = vmatprep.subr.mxu0 0.0
        %1545 = vmatpush1.xpose.msra.mxu0 0.0
        %1546 = vmatprep.subr.mxu0 0.0
        %1547 = vmatpush1.xpose.msra.mxu0 0.0
        %1548 = vmatprep.subr.mxu0 0.0
        %1549 = vmatpush1.xpose.msra.mxu0 0.0
        %1550 = vmatprep.subr.mxu0 0.0
        %1551 = vmatpush1.xpose.msra.mxu0 0.0
        %1552 = vmatprep.subr.mxu0 0.0
        %1553 = vmatpush1.xpose.msra.mxu0 0.0
        %1554 = vmatprep.subr.mxu0 0.0
        %1555 = vmatpush1.xpose.msra.mxu0 0.0
        %1556 = vmatprep.subr.mxu0 0.0
        %1557 = vmatpush1.xpose.msra.mxu0 0.0
        %1558 = vmatprep.subr.mxu0 0.0
        %1559 = vmatpush1.xpose.msra.mxu0 0.0
        %1560 = vmatprep.subr.mxu0 0.0
        %1561 = vmatpush1.xpose.msra.mxu0 0.0
        %1562 = vmatprep.subr.mxu0 0.0
        %1563 = vmatpush1.xpose.msra.mxu0 0.0
        %1564 = vmatprep.subr.mxu0 0.0
        %1565 = vmatpush1.xpose.msra.mxu0 0.0
        %1566 = vmatprep.subr.mxu0 0.0
        %1567 = vmatpush1.xpose.msra.mxu0 0.0
        %1568 = vmatprep.subr.mxu0 0.0
        %1569 = vmatpush1.xpose.msra.mxu0 0.0
        %1570 = vmatprep.subr.mxu0 0.0
        %1571 = vmatpush1.xpose.msra.mxu0 0.0
        %1572 = vmatprep.subr.mxu0 0.0
        %1573 = vmatpush1.xpose.msra.mxu0 0.0
        %1574 = vmatprep.subr.mxu0 0.0
        %1575 = vmatpush1.xpose.msra.mxu0 0.0
        %1576 = vmatprep.subr.mxu0 0.0
        %1577 = vmatpush1.xpose.msra.mxu0 0.0
        %1578 = vmatprep.subr.mxu0 0.0
        %1579 = vmatpush1.xpose.msra.mxu0 0.0
        %1580 = vmatprep.subr.mxu0 0.0
        %1581 = vmatpush1.xpose.msra.mxu0 0.0
        %1582 = vmatprep.mubr.f32.mxu0 0.0
        %1583 = vmatmul.mubr.f32.gmra.mrb[0].mxu0 %v1502
        %v1584 = vpop.f32.mrb[0].mxu0
        %v1585 = vadd.f32 %v1490, %v1584
        %v1586 = vpop.f32.mrb[0].mxu0
        %1587 = vmatprep.mubr.f32.mxu0 0.0
        %1588 = vmatmul.mubr.f32.gmra.mrb[0].mxu0 %v1504
        %v1589 = vpop.f32.mrb[0].mxu0
        %v1590 = vadd.f32 %v1492, %v1589
        %v1591 = vpop.f32.mrb[0].mxu0
        %1592 = vmatprep.mubr.f32.mxu0 0.0
        %1593 = vmatmul.mubr.f32.gmra.mrb[0].mxu0 %v1506
        %v1594 = vpop.f32.mrb[0].mxu0
        %v1595 = vadd.f32 %v1494, %v1594
        %v1596 = vpop.f32.mrb[0].mxu0
        %1597 = vmatprep.mubr.f32.mxu0 0.0
        %1598 = vmatmul.mubr.f32.gmra.mrb[0].mxu0 %v1508
        %v1599 = vpop.f32.mrb[0].mxu0
        %v1600 = vadd.f32 %v1496, %v1599
        %v1601 = vpop.f32.mrb[0].mxu0
        %1602 = vdwg.mxu0
        %v1603 = vsel %vm335, %v1585, -inf
        %1604 = vmax.xlane.f32.xlu0 %v1603
        %v1605 = vpop.xlane.xlu0 %1604
        %v1606 = vsel %vm335, %v1590, -inf
        %1607 = vmax.xlane.f32.xlu0 %v1606
        %v1608 = vpop.xlane.xlu0 %1607
        %v1609 = vsel %vm335, %v1595, -inf
        %1610 = vmax.xlane.f32.xlu0 %v1609
        %v1611 = vpop.xlane.xlu0 %1610
        %v1612 = vsel %vm335, %v1600, -inf
        %1613 = vmax.xlane.f32.xlu0 %v1612
        %v1614 = vpop.xlane.xlu0 %1613
        %v1615 = vsub.f32 %v1585, %v1605
        %v1616 = vsub.f32 %v1590, %v1608
        %v1617 = vsub.f32 %v1595, %v1611
        %v1618 = vsub.f32 %v1600, %v1614
        %v1619 = vmul.f32 %v1615, 1.442695
        %v1620 = vpow.pop %v1619
        %v1621 = vmul.f32 %v1616, 1.442695
        %v1622 = vpow.pop %v1621
        %v1623 = vmul.f32 %v1617, 1.442695
        %v1624 = vpow.pop %v1623
        %v1625 = vmul.f32 %v1618, 1.442695
        %v1626 = vpow.pop %v1625
        %v1627 = vsel %vm335, %v1620, 0.0
        %1628 = vadd.xlane.f32.xlu0 %v1627
        %v1629 = vpop.xlane.xlu0 %1628
        %v1630 = vsel %vm335, %v1622, 0.0
        %1631 = vadd.xlane.f32.xlu0 %v1630
        %v1632 = vpop.xlane.xlu0 %1631
        %v1633 = vsel %vm335, %v1624, 0.0
        %1634 = vadd.xlane.f32.xlu0 %v1633
        %v1635 = vpop.xlane.xlu0 %1634
        %v1636 = vsel %vm335, %v1626, 0.0
        %1637 = vadd.xlane.f32.xlu0 %v1636
        %v1638 = vpop.xlane.xlu0 %1637
        %v1639 = vrcp.pop %v1629
        %v1640 = vmul.f32 1.0, %v1639
        %v1641 = vrcp.pop %v1632
        %v1642 = vmul.f32 1.0, %v1641
        %v1643 = vrcp.pop %v1635
        %v1644 = vmul.f32 1.0, %v1643
        %v1645 = vrcp.pop %v1638
        %v1646 = vmul.f32 1.0, %v1645
        %v1647 = vmul.f32 %v1620, %v1640
        %v1648 = vmul.f32 %v1622, %v1642
        %v1649 = vmul.f32 %v1624, %v1644
        %v1650 = vmul.f32 %v1626, %v1646
        %1651 = vrot.lane.b32.xlu0 %v1455, 64
        %v1652 = vpop.permute.xlu0 %1651
        %1653 = vrot.lane.b32.xlu0 %v1460, 64
        %v1654 = vpop.permute.xlu0 %1653
        %1655 = vrot.lane.b32.xlu0 %v1465, 64
        %v1656 = vpop.permute.xlu0 %1655
        %1657 = vrot.lane.b32.xlu0 %v1470, 64
        %v1658 = vpop.permute.xlu0 %1657
        %v1664 = vsel %vm335, %v1647, 0
        %v1667 = vsel %vm335, %v1648, 0
        %v1670 = vsel %vm335, %v1649, 0
        %v1673 = vsel %vm335, %v1650, 0
        %1675 = vmatprep.subr.mxu0 0.0
        %1676 = vmatpush1.msra.mxu0 %v1652
        %1677 = vmatprep.subr.mxu0 0.0
        %1678 = vmatpush1.msra.mxu0 %v1654
        %1679 = vmatprep.subr.mxu0 0.0
        %1680 = vmatpush1.msra.mxu0 %v1656
        %1681 = vmatprep.subr.mxu0 0.0
        %1682 = vmatpush1.msra.mxu0 %v1658
        %1683 = vmatprep.subr.mxu0 0.0
        %1684 = vmatpush1.msra.mxu0 0.0
        %1685 = vmatprep.subr.mxu0 0.0
        %1686 = vmatpush1.msra.mxu0 0.0
        %1687 = vmatprep.subr.mxu0 0.0
        %1688 = vmatpush1.msra.mxu0 0.0
        %1689 = vmatprep.subr.mxu0 0.0
        %1690 = vmatpush1.msra.mxu0 0.0
        %1691 = vmatprep.subr.mxu0 0.0
        %1692 = vmatpush1.msra.mxu0 0.0
        %1693 = vmatprep.subr.mxu0 0.0
        %1694 = vmatpush1.msra.mxu0 0.0
        %1695 = vmatprep.subr.mxu0 0.0
        %1696 = vmatpush1.msra.mxu0 0.0
        %1697 = vmatprep.subr.mxu0 0.0
        %1698 = vmatpush1.msra.mxu0 0.0
        %1699 = vmatprep.subr.mxu0 0.0
        %1700 = vmatpush1.msra.mxu0 0.0
        %1701 = vmatprep.subr.mxu0 0.0
        %1702 = vmatpush1.msra.mxu0 0.0
        %1703 = vmatprep.subr.mxu0 0.0
        %1704 = vmatpush1.msra.mxu0 0.0
        %1705 = vmatprep.subr.mxu0 0.0
        %1706 = vmatpush1.msra.mxu0 0.0
        %1707 = vmatprep.subr.mxu0 0.0
        %1708 = vmatpush1.msra.mxu0 0.0
        %1709 = vmatprep.subr.mxu0 0.0
        %1710 = vmatpush1.msra.mxu0 0.0
        %1711 = vmatprep.subr.mxu0 0.0
        %1712 = vmatpush1.msra.mxu0 0.0
        %1713 = vmatprep.subr.mxu0 0.0
        %1714 = vmatpush1.msra.mxu0 0.0
        %1715 = vmatprep.subr.mxu0 0.0
        %1716 = vmatpush1.msra.mxu0 0.0
        %1717 = vmatprep.subr.mxu0 0.0
        %1718 = vmatpush1.msra.mxu0 0.0
        %1719 = vmatprep.subr.mxu0 0.0
        %1720 = vmatpush1.msra.mxu0 0.0
        %1721 = vmatprep.subr.mxu0 0.0
        %1722 = vmatpush1.msra.mxu0 0.0
        %1723 = vmatprep.subr.mxu0 0.0
        %1724 = vmatpush1.msra.mxu0 0.0
        %1725 = vmatprep.subr.mxu0 0.0
        %1726 = vmatpush1.msra.mxu0 0.0
        %1727 = vmatprep.subr.mxu0 0.0
        %1728 = vmatpush1.msra.mxu0 0.0
        %1729 = vmatprep.subr.mxu0 0.0
        %1730 = vmatpush1.msra.mxu0 0.0
        %1731 = vmatprep.subr.mxu0 0.0
        %1732 = vmatpush1.msra.mxu0 0.0
        %1733 = vmatprep.subr.mxu0 0.0
        %1734 = vmatpush1.msra.mxu0 0.0
        %1735 = vmatprep.subr.mxu0 0.0
        %1736 = vmatpush1.msra.mxu0 0.0
        %1737 = vmatprep.subr.mxu0 0.0
        %1738 = vmatpush1.msra.mxu0 0.0
        %1739 = vmatprep.mubr.f32.mxu0 0.0
        %1740 = vmatmul.mubr.f32.gmra.mrb[0].mxu0 %v1664
        %v1741 = vpop.f32.mrb[0].mxu0
        %v1742 = vadd.f32 0.0, %v1741
        %v1743 = vpop.f32.mrb[0].mxu0
        %1744 = vmatprep.mubr.f32.mxu0 0.0
        %1745 = vmatmul.mubr.f32.gmra.mrb[0].mxu0 %v1667
        %v1746 = vpop.f32.mrb[0].mxu0
        %v1747 = vadd.f32 0.0, %v1746
        %v1748 = vpop.f32.mrb[0].mxu0
        %1749 = vmatprep.mubr.f32.mxu0 0.0
        %1750 = vmatmul.mubr.f32.gmra.mrb[0].mxu0 %v1670
        %v1751 = vpop.f32.mrb[0].mxu0
        %v1752 = vadd.f32 0.0, %v1751
        %v1753 = vpop.f32.mrb[0].mxu0
        %1754 = vmatprep.mubr.f32.mxu0 0.0
        %1755 = vmatmul.mubr.f32.gmra.mrb[0].mxu0 %v1673
        %v1756 = vpop.f32.mrb[0].mxu0
        %v1757 = vadd.f32 0.0, %v1756
        %v1758 = vpop.f32.mrb[0].mxu0
        %1759 = vdwg.mxu0
        %1760 = vrot.lane.b32.xlu0 %v1455, 120
        %v1761 = vpop.permute.xlu0 %1760
        %1762 = vrot.lane.b32.xlu0 %v1460, 120
        %v1763 = vpop.permute.xlu0 %1762
        %1764 = vrot.lane.b32.xlu0 %v1465, 120
        %v1765 = vpop.permute.xlu0 %1764
        %1766 = vrot.lane.b32.xlu0 %v1470, 120
        %v1767 = vpop.permute.xlu0 %1766
        %1768 = vrot.lane.b32.xlu0 %v1455, 88
        %v1769 = vpop.permute.xlu0 %1768
        %1770 = vrot.lane.b32.xlu0 %v1460, 88
        %v1771 = vpop.permute.xlu0 %1770
        %1772 = vrot.lane.b32.xlu0 %v1465, 88
        %v1773 = vpop.permute.xlu0 %1772
        %1774 = vrot.lane.b32.xlu0 %v1470, 88
        %v1775 = vpop.permute.xlu0 %1774
        %v1776 = vsel %vm1501, %v1761, 0
        %v1778 = vsel %vm1501, %v1763, 0
        %v1780 = vsel %vm1501, %v1765, 0
        %v1782 = vsel %vm1501, %v1767, 0
        %v1784 = vsel %vm1501, %v1769, 0
        %v1786 = vsel %vm1501, %v1771, 0
        %v1788 = vsel %vm1501, %v1773, 0
        %v1790 = vsel %vm1501, %v1775, 0
        %1792 = vmatprep.subr.mxu0 0.0
        %1793 = vmatpush1.xpose.msra.mxu0 %v1784
        %1794 = vmatprep.subr.mxu0 0.0
        %1795 = vmatpush1.xpose.msra.mxu0 %v1786
        %1796 = vmatprep.subr.mxu0 0.0
        %1797 = vmatpush1.xpose.msra.mxu0 %v1788
        %1798 = vmatprep.subr.mxu0 0.0
        %1799 = vmatpush1.xpose.msra.mxu0 %v1790
        %1800 = vmatprep.subr.mxu0 0.0
        %1801 = vmatpush1.xpose.msra.mxu0 0.0
        %1802 = vmatprep.subr.mxu0 0.0
        %1803 = vmatpush1.xpose.msra.mxu0 0.0
        %1804 = vmatprep.subr.mxu0 0.0
        %1805 = vmatpush1.xpose.msra.mxu0 0.0
        %1806 = vmatprep.subr.mxu0 0.0
        %1807 = vmatpush1.xpose.msra.mxu0 0.0
        %1808 = vmatprep.subr.mxu0 0.0
        %1809 = vmatpush1.xpose.msra.mxu0 0.0
        %1810 = vmatprep.subr.mxu0 0.0
        %1811 = vmatpush1.xpose.msra.mxu0 0.0
        %1812 = vmatprep.subr.mxu0 0.0
        %1813 = vmatpush1.xpose.msra.mxu0 0.0
        %1814 = vmatprep.subr.mxu0 0.0
        %1815 = vmatpush1.xpose.msra.mxu0 0.0
        %1816 = vmatprep.subr.mxu0 0.0
        %1817 = vmatpush1.xpose.msra.mxu0 0.0
        %1818 = vmatprep.subr.mxu0 0.0
        %1819 = vmatpush1.xpose.msra.mxu0 0.0
        %1820 = vmatprep.subr.mxu0 0.0
        %1821 = vmatpush1.xpose.msra.mxu0 0.0
        %1822 = vmatprep.subr.mxu0 0.0
        %1823 = vmatpush1.xpose.msra.mxu0 0.0
        %1824 = vmatprep.subr.mxu0 0.0
        %1825 = vmatpush1.xpose.msra.mxu0 0.0
        %1826 = vmatprep.subr.mxu0 0.0
        %1827 = vmatpush1.xpose.msra.mxu0 0.0
        %1828 = vmatprep.subr.mxu0 0.0
        %1829 = vmatpush1.xpose.msra.mxu0 0.0
        %1830 = vmatprep.subr.mxu0 0.0
        %1831 = vmatpush1.xpose.msra.mxu0 0.0
        %1832 = vmatprep.subr.mxu0 0.0
        %1833 = vmatpush1.xpose.msra.mxu0 0.0
        %1834 = vmatprep.subr.mxu0 0.0
        %1835 = vmatpush1.xpose.msra.mxu0 0.0
        %1836 = vmatprep.subr.mxu0 0.0
        %1837 = vmatpush1.xpose.msra.mxu0 0.0
        %1838 = vmatprep.subr.mxu0 0.0
        %1839 = vmatpush1.xpose.msra.mxu0 0.0
        %1840 = vmatprep.subr.mxu0 0.0
        %1841 = vmatpush1.xpose.msra.mxu0 0.0
        %1842 = vmatprep.subr.mxu0 0.0
        %1843 = vmatpush1.xpose.msra.mxu0 0.0
        %1844 = vmatprep.subr.mxu0 0.0
        %1845 = vmatpush1.xpose.msra.mxu0 0.0
        %1846 = vmatprep.subr.mxu0 0.0
        %1847 = vmatpush1.xpose.msra.mxu0 0.0
        %1848 = vmatprep.subr.mxu0 0.0
        %1849 = vmatpush1.xpose.msra.mxu0 0.0
        %1850 = vmatprep.subr.mxu0 0.0
        %1851 = vmatpush1.xpose.msra.mxu0 0.0
        %1852 = vmatprep.subr.mxu0 0.0
        %1853 = vmatpush1.xpose.msra.mxu0 0.0
        %1854 = vmatprep.subr.mxu0 0.0
        %1855 = vmatpush1.xpose.msra.mxu0 0.0
        %1856 = vmatprep.mubr.f32.mxu0 0.0
        %1857 = vmatmul.mubr.f32.gmra.mrb[0].mxu0 %v1776
        %v1858 = vpop.f32.mrb[0].mxu0
        %v1859 = vadd.f32 %v1490, %v1858
        %v1860 = vpop.f32.mrb[0].mxu0
        %1861 = vmatprep.mubr.f32.mxu0 0.0
        %1862 = vmatmul.mubr.f32.gmra.mrb[0].mxu0 %v1778
        %v1863 = vpop.f32.mrb[0].mxu0
        %v1864 = vadd.f32 %v1492, %v1863
        %v1865 = vpop.f32.mrb[0].mxu0
        %1866 = vmatprep.mubr.f32.mxu0 0.0
        %1867 = vmatmul.mubr.f32.gmra.mrb[0].mxu0 %v1780
        %v1868 = vpop.f32.mrb[0].mxu0
        %v1869 = vadd.f32 %v1494, %v1868
        %v1870 = vpop.f32.mrb[0].mxu0
        %1871 = vmatprep.mubr.f32.mxu0 0.0
        %1872 = vmatmul.mubr.f32.gmra.mrb[0].mxu0 %v1782
        %v1873 = vpop.f32.mrb[0].mxu0
        %v1874 = vadd.f32 %v1496, %v1873
        %v1875 = vpop.f32.mrb[0].mxu0
        %1876 = vdwg.mxu0
        %v1877 = vsel %vm335, %v1859, -inf
        %1878 = vmax.xlane.f32.xlu0 %v1877
        %v1879 = vpop.xlane.xlu0 %1878
        %v1880 = vsel %vm335, %v1864, -inf
        %1881 = vmax.xlane.f32.xlu0 %v1880
        %v1882 = vpop.xlane.xlu0 %1881
        %v1883 = vsel %vm335, %v1869, -inf
        %1884 = vmax.xlane.f32.xlu0 %v1883
        %v1885 = vpop.xlane.xlu0 %1884
        %v1886 = vsel %vm335, %v1874, -inf
        %1887 = vmax.xlane.f32.xlu0 %v1886
        %v1888 = vpop.xlane.xlu0 %1887
        %v1889 = vsub.f32 %v1859, %v1879
        %v1890 = vsub.f32 %v1864, %v1882
        %v1891 = vsub.f32 %v1869, %v1885
        %v1892 = vsub.f32 %v1874, %v1888
        %v1893 = vmul.f32 %v1889, 1.442695
        %v1894 = vpow.pop %v1893
        %v1895 = vmul.f32 %v1890, 1.442695
        %v1896 = vpow.pop %v1895
        %v1897 = vmul.f32 %v1891, 1.442695
        %v1898 = vpow.pop %v1897
        %v1899 = vmul.f32 %v1892, 1.442695
        %v1900 = vpow.pop %v1899
        %v1901 = vsel %vm335, %v1894, 0.0
        %1902 = vadd.xlane.f32.xlu0 %v1901
        %v1903 = vpop.xlane.xlu0 %1902
        %v1904 = vsel %vm335, %v1896, 0.0
        %1905 = vadd.xlane.f32.xlu0 %v1904
        %v1906 = vpop.xlane.xlu0 %1905
        %v1907 = vsel %vm335, %v1898, 0.0
        %1908 = vadd.xlane.f32.xlu0 %v1907
        %v1909 = vpop.xlane.xlu0 %1908
        %v1910 = vsel %vm335, %v1900, 0.0
        %1911 = vadd.xlane.f32.xlu0 %v1910
        %v1912 = vpop.xlane.xlu0 %1911
        %v1913 = vrcp.pop %v1903
        %v1914 = vmul.f32 1.0, %v1913
        %v1915 = vrcp.pop %v1906
        %v1916 = vmul.f32 1.0, %v1915
        %v1917 = vrcp.pop %v1909
        %v1918 = vmul.f32 1.0, %v1917
        %v1919 = vrcp.pop %v1912
        %v1920 = vmul.f32 1.0, %v1919
        %v1921 = vmul.f32 %v1894, %v1914
        %v1922 = vmul.f32 %v1896, %v1916
        %v1923 = vmul.f32 %v1898, %v1918
        %v1924 = vmul.f32 %v1900, %v1920
        %1925 = vrot.lane.b32.xlu0 %v1455, 56
        %v1926 = vpop.permute.xlu0 %1925
        %1927 = vrot.lane.b32.xlu0 %v1460, 56
        %v1928 = vpop.permute.xlu0 %1927
        %1929 = vrot.lane.b32.xlu0 %v1465, 56
        %v1930 = vpop.permute.xlu0 %1929
        %1931 = vrot.lane.b32.xlu0 %v1470, 56
        %v1932 = vpop.permute.xlu0 %1931
        %v1938 = vsel %vm335, %v1921, 0
        %v1941 = vsel %vm335, %v1922, 0
        %v1944 = vsel %vm335, %v1923, 0
        %v1947 = vsel %vm335, %v1924, 0
        %1949 = vmatprep.subr.mxu0 0.0
        %1950 = vmatpush1.msra.mxu0 %v1926
        %1951 = vmatprep.subr.mxu0 0.0
        %1952 = vmatpush1.msra.mxu0 %v1928
        %1953 = vmatprep.subr.mxu0 0.0
        %1954 = vmatpush1.msra.mxu0 %v1930
        %1955 = vmatprep.subr.mxu0 0.0
        %1956 = vmatpush1.msra.mxu0 %v1932
        %1957 = vmatprep.subr.mxu0 0.0
        %1958 = vmatpush1.msra.mxu0 0.0
        %1959 = vmatprep.subr.mxu0 0.0
        %1960 = vmatpush1.msra.mxu0 0.0
        %1961 = vmatprep.subr.mxu0 0.0
        %1962 = vmatpush1.msra.mxu0 0.0
        %1963 = vmatprep.subr.mxu0 0.0
        %1964 = vmatpush1.msra.mxu0 0.0
        %1965 = vmatprep.subr.mxu0 0.0
        %1966 = vmatpush1.msra.mxu0 0.0
        %1967 = vmatprep.subr.mxu0 0.0
        %1968 = vmatpush1.msra.mxu0 0.0
        %1969 = vmatprep.subr.mxu0 0.0
        %1970 = vmatpush1.msra.mxu0 0.0
        %1971 = vmatprep.subr.mxu0 0.0
        %1972 = vmatpush1.msra.mxu0 0.0
        %1973 = vmatprep.subr.mxu0 0.0
        %1974 = vmatpush1.msra.mxu0 0.0
        %1975 = vmatprep.subr.mxu0 0.0
        %1976 = vmatpush1.msra.mxu0 0.0
        %1977 = vmatprep.subr.mxu0 0.0
        %1978 = vmatpush1.msra.mxu0 0.0
        %1979 = vmatprep.subr.mxu0 0.0
        %1980 = vmatpush1.msra.mxu0 0.0
        %1981 = vmatprep.subr.mxu0 0.0
        %1982 = vmatpush1.msra.mxu0 0.0
        %1983 = vmatprep.subr.mxu0 0.0
        %1984 = vmatpush1.msra.mxu0 0.0
        %1985 = vmatprep.subr.mxu0 0.0
        %1986 = vmatpush1.msra.mxu0 0.0
        %1987 = vmatprep.subr.mxu0 0.0
        %1988 = vmatpush1.msra.mxu0 0.0
        %1989 = vmatprep.subr.mxu0 0.0
        %1990 = vmatpush1.msra.mxu0 0.0
        %1991 = vmatprep.subr.mxu0 0.0
        %1992 = vmatpush1.msra.mxu0 0.0
        %1993 = vmatprep.subr.mxu0 0.0
        %1994 = vmatpush1.msra.mxu0 0.0
        %1995 = vmatprep.subr.mxu0 0.0
        %1996 = vmatpush1.msra.mxu0 0.0
        %1997 = vmatprep.subr.mxu0 0.0
        %1998 = vmatpush1.msra.mxu0 0.0
        %1999 = vmatprep.subr.mxu0 0.0
        %2000 = vmatpush1.msra.mxu0 0.0
        %2001 = vmatprep.subr.mxu0 0.0
        %2002 = vmatpush1.msra.mxu0 0.0
        %2003 = vmatprep.subr.mxu0 0.0
        %2004 = vmatpush1.msra.mxu0 0.0
        %2005 = vmatprep.subr.mxu0 0.0
        %2006 = vmatpush1.msra.mxu0 0.0
        %2007 = vmatprep.subr.mxu0 0.0
        %2008 = vmatpush1.msra.mxu0 0.0
        %2009 = vmatprep.subr.mxu0 0.0
        %2010 = vmatpush1.msra.mxu0 0.0
        %2011 = vmatprep.subr.mxu0 0.0
        %2012 = vmatpush1.msra.mxu0 0.0
        %2013 = vmatprep.mubr.f32.mxu0 0.0
        %2014 = vmatmul.mubr.f32.gmra.mrb[0].mxu0 %v1938
        %v2015 = vpop.f32.mrb[0].mxu0
        %v2016 = vadd.f32 0.0, %v2015
        %v2017 = vpop.f32.mrb[0].mxu0
        %2018 = vmatprep.mubr.f32.mxu0 0.0
        %2019 = vmatmul.mubr.f32.gmra.mrb[0].mxu0 %v1941
        %v2020 = vpop.f32.mrb[0].mxu0
        %v2021 = vadd.f32 0.0, %v2020
        %v2022 = vpop.f32.mrb[0].mxu0
        %2023 = vmatprep.mubr.f32.mxu0 0.0
        %2024 = vmatmul.mubr.f32.gmra.mrb[0].mxu0 %v1944
        %v2025 = vpop.f32.mrb[0].mxu0
        %v2026 = vadd.f32 0.0, %v2025
        %v2027 = vpop.f32.mrb[0].mxu0
        %2028 = vmatprep.mubr.f32.mxu0 0.0
        %2029 = vmatmul.mubr.f32.gmra.mrb[0].mxu0 %v1947
        %v2030 = vpop.f32.mrb[0].mxu0
        %v2031 = vadd.f32 0.0, %v2030
        %v2032 = vpop.f32.mrb[0].mxu0
        %2033 = vdwg.mxu0
        %2034 = vrot.lane.b32.xlu0 %v1455, 112
        %v2035 = vpop.permute.xlu0 %2034
        %2036 = vrot.lane.b32.xlu0 %v1460, 112
        %v2037 = vpop.permute.xlu0 %2036
        %2038 = vrot.lane.b32.xlu0 %v1465, 112
        %v2039 = vpop.permute.xlu0 %2038
        %2040 = vrot.lane.b32.xlu0 %v1470, 112
        %v2041 = vpop.permute.xlu0 %2040
        %2042 = vrot.lane.b32.xlu0 %v1455, 80
        %v2043 = vpop.permute.xlu0 %2042
        %2044 = vrot.lane.b32.xlu0 %v1460, 80
        %v2045 = vpop.permute.xlu0 %2044
        %2046 = vrot.lane.b32.xlu0 %v1465, 80
        %v2047 = vpop.permute.xlu0 %2046
        %2048 = vrot.lane.b32.xlu0 %v1470, 80
        %v2049 = vpop.permute.xlu0 %2048
        %v2050 = vsel %vm1501, %v2035, 0
        %v2052 = vsel %vm1501, %v2037, 0
        %v2054 = vsel %vm1501, %v2039, 0
        %v2056 = vsel %vm1501, %v2041, 0
        %v2058 = vsel %vm1501, %v2043, 0
        %v2060 = vsel %vm1501, %v2045, 0
        %v2062 = vsel %vm1501, %v2047, 0
        %v2064 = vsel %vm1501, %v2049, 0
        %2066 = vmatprep.subr.mxu0 0.0
        %2067 = vmatpush1.xpose.msra.mxu0 %v2058
        %2068 = vmatprep.subr.mxu0 0.0
        %2069 = vmatpush1.xpose.msra.mxu0 %v2060
        %2070 = vmatprep.subr.mxu0 0.0
        %2071 = vmatpush1.xpose.msra.mxu0 %v2062
        %2072 = vmatprep.subr.mxu0 0.0
        %2073 = vmatpush1.xpose.msra.mxu0 %v2064
        %2074 = vmatprep.subr.mxu0 0.0
        %2075 = vmatpush1.xpose.msra.mxu0 0.0
        %2076 = vmatprep.subr.mxu0 0.0
        %2077 = vmatpush1.xpose.msra.mxu0 0.0
        %2078 = vmatprep.subr.mxu0 0.0
        %2079 = vmatpush1.xpose.msra.mxu0 0.0
        %2080 = vmatprep.subr.mxu0 0.0
        %2081 = vmatpush1.xpose.msra.mxu0 0.0
        %2082 = vmatprep.subr.mxu0 0.0
        %2083 = vmatpush1.xpose.msra.mxu0 0.0
        %2084 = vmatprep.subr.mxu0 0.0
        %2085 = vmatpush1.xpose.msra.mxu0 0.0
        %2086 = vmatprep.subr.mxu0 0.0
        %2087 = vmatpush1.xpose.msra.mxu0 0.0
        %2088 = vmatprep.subr.mxu0 0.0
        %2089 = vmatpush1.xpose.msra.mxu0 0.0
        %2090 = vmatprep.subr.mxu0 0.0
        %2091 = vmatpush1.xpose.msra.mxu0 0.0
        %2092 = vmatprep.subr.mxu0 0.0
        %2093 = vmatpush1.xpose.msra.mxu0 0.0
        %2094 = vmatprep.subr.mxu0 0.0
        %2095 = vmatpush1.xpose.msra.mxu0 0.0
        %2096 = vmatprep.subr.mxu0 0.0
        %2097 = vmatpush1.xpose.msra.mxu0 0.0
        %2098 = vmatprep.subr.mxu0 0.0
        %2099 = vmatpush1.xpose.msra.mxu0 0.0
        %2100 = vmatprep.subr.mxu0 0.0
        %2101 = vmatpush1.xpose.msra.mxu0 0.0
        %2102 = vmatprep.subr.mxu0 0.0
        %2103 = vmatpush1.xpose.msra.mxu0 0.0
        %2104 = vmatprep.subr.mxu0 0.0
        %2105 = vmatpush1.xpose.msra.mxu0 0.0
        %2106 = vmatprep.subr.mxu0 0.0
        %2107 = vmatpush1.xpose.msra.mxu0 0.0
        %2108 = vmatprep.subr.mxu0 0.0
        %2109 = vmatpush1.xpose.msra.mxu0 0.0
        %2110 = vmatprep.subr.mxu0 0.0
        %2111 = vmatpush1.xpose.msra.mxu0 0.0
        %2112 = vmatprep.subr.mxu0 0.0
        %2113 = vmatpush1.xpose.msra.mxu0 0.0
        %2114 = vmatprep.subr.mxu0 0.0
        %2115 = vmatpush1.xpose.msra.mxu0 0.0
        %2116 = vmatprep.subr.mxu0 0.0
        %2117 = vmatpush1.xpose.msra.mxu0 0.0
        %2118 = vmatprep.subr.mxu0 0.0
        %2119 = vmatpush1.xpose.msra.mxu0 0.0
        %2120 = vmatprep.subr.mxu0 0.0
        %2121 = vmatpush1.xpose.msra.mxu0 0.0
        %2122 = vmatprep.subr.mxu0 0.0
        %2123 = vmatpush1.xpose.msra.mxu0 0.0
        %2124 = vmatprep.subr.mxu0 0.0
        %2125 = vmatpush1.xpose.msra.mxu0 0.0
        %2126 = vmatprep.subr.mxu0 0.0
        %2127 = vmatpush1.xpose.msra.mxu0 0.0
        %2128 = vmatprep.subr.mxu0 0.0
        %2129 = vmatpush1.xpose.msra.mxu0 0.0
        %2130 = vmatprep.mubr.f32.mxu0 0.0
        %2131 = vmatmul.mubr.f32.gmra.mrb[0].mxu0 %v2050
        %v2132 = vpop.f32.mrb[0].mxu0
        %v2133 = vadd.f32 %v1490, %v2132
        %v2134 = vpop.f32.mrb[0].mxu0
        %2135 = vmatprep.mubr.f32.mxu0 0.0
        %2136 = vmatmul.mubr.f32.gmra.mrb[0].mxu0 %v2052
        %v2137 = vpop.f32.mrb[0].mxu0
        %v2138 = vadd.f32 %v1492, %v2137
        %v2139 = vpop.f32.mrb[0].mxu0
        %2140 = vmatprep.mubr.f32.mxu0 0.0
        %2141 = vmatmul.mubr.f32.gmra.mrb[0].mxu0 %v2054
        %v2142 = vpop.f32.mrb[0].mxu0
        %v2143 = vadd.f32 %v1494, %v2142
        %v2144 = vpop.f32.mrb[0].mxu0
        %2145 = vmatprep.mubr.f32.mxu0 0.0
        %2146 = vmatmul.mubr.f32.gmra.mrb[0].mxu0 %v2056
        %v2147 = vpop.f32.mrb[0].mxu0
        %v2148 = vadd.f32 %v1496, %v2147
        %v2149 = vpop.f32.mrb[0].mxu0
        %2150 = vdwg.mxu0
        %v2151 = vsel %vm335, %v2133, -inf
        %2152 = vmax.xlane.f32.xlu0 %v2151
        %v2153 = vpop.xlane.xlu0 %2152
        %v2154 = vsel %vm335, %v2138, -inf
        %2155 = vmax.xlane.f32.xlu0 %v2154
        %v2156 = vpop.xlane.xlu0 %2155
        %v2157 = vsel %vm335, %v2143, -inf
        %2158 = vmax.xlane.f32.xlu0 %v2157
        %v2159 = vpop.xlane.xlu0 %2158
        %v2160 = vsel %vm335, %v2148, -inf
        %2161 = vmax.xlane.f32.xlu0 %v2160
        %v2162 = vpop.xlane.xlu0 %2161
        %v2163 = vsub.f32 %v2133, %v2153
        %v2164 = vsub.f32 %v2138, %v2156
        %v2165 = vsub.f32 %v2143, %v2159
        %v2166 = vsub.f32 %v2148, %v2162
        %v2167 = vmul.f32 %v2163, 1.442695
        %v2168 = vpow.pop %v2167
        %v2169 = vmul.f32 %v2164, 1.442695
        %v2170 = vpow.pop %v2169
        %v2171 = vmul.f32 %v2165, 1.442695
        %v2172 = vpow.pop %v2171
        %v2173 = vmul.f32 %v2166, 1.442695
        %v2174 = vpow.pop %v2173
        %v2175 = vsel %vm335, %v2168, 0.0
        %2176 = vadd.xlane.f32.xlu0 %v2175
        %v2177 = vpop.xlane.xlu0 %2176
        %v2178 = vsel %vm335, %v2170, 0.0
        %2179 = vadd.xlane.f32.xlu0 %v2178
        %v2180 = vpop.xlane.xlu0 %2179
        %v2181 = vsel %vm335, %v2172, 0.0
        %2182 = vadd.xlane.f32.xlu0 %v2181
        %v2183 = vpop.xlane.xlu0 %2182
        %v2184 = vsel %vm335, %v2174, 0.0
        %2185 = vadd.xlane.f32.xlu0 %v2184
        %v2186 = vpop.xlane.xlu0 %2185
        %v2187 = vrcp.pop %v2177
        %v2188 = vmul.f32 1.0, %v2187
        %v2189 = vrcp.pop %v2180
        %v2190 = vmul.f32 1.0, %v2189
        %v2191 = vrcp.pop %v2183
        %v2192 = vmul.f32 1.0, %v2191
        %v2193 = vrcp.pop %v2186
        %v2194 = vmul.f32 1.0, %v2193
        %v2195 = vmul.f32 %v2168, %v2188
        %v2196 = vmul.f32 %v2170, %v2190
        %v2197 = vmul.f32 %v2172, %v2192
        %v2198 = vmul.f32 %v2174, %v2194
        %2199 = vrot.lane.b32.xlu0 %v1455, 48
        %v2200 = vpop.permute.xlu0 %2199
        %2201 = vrot.lane.b32.xlu0 %v1460, 48
        %v2202 = vpop.permute.xlu0 %2201
        %2203 = vrot.lane.b32.xlu0 %v1465, 48
        %v2204 = vpop.permute.xlu0 %2203
        %2205 = vrot.lane.b32.xlu0 %v1470, 48
        %v2206 = vpop.permute.xlu0 %2205
        %v2212 = vsel %vm335, %v2195, 0
        %v2215 = vsel %vm335, %v2196, 0
        %v2218 = vsel %vm335, %v2197, 0
        %v2221 = vsel %vm335, %v2198, 0
        %2223 = vmatprep.subr.mxu0 0.0
        %2224 = vmatpush1.msra.mxu0 %v2200
        %2225 = vmatprep.subr.mxu0 0.0
        %2226 = vmatpush1.msra.mxu0 %v2202
        %2227 = vmatprep.subr.mxu0 0.0
        %2228 = vmatpush1.msra.mxu0 %v2204
        %2229 = vmatprep.subr.mxu0 0.0
        %2230 = vmatpush1.msra.mxu0 %v2206
        %2231 = vmatprep.subr.mxu0 0.0
        %2232 = vmatpush1.msra.mxu0 0.0
        %2233 = vmatprep.subr.mxu0 0.0
        %2234 = vmatpush1.msra.mxu0 0.0
        %2235 = vmatprep.subr.mxu0 0.0
        %2236 = vmatpush1.msra.mxu0 0.0
        %2237 = vmatprep.subr.mxu0 0.0
        %2238 = vmatpush1.msra.mxu0 0.0
        %2239 = vmatprep.subr.mxu0 0.0
        %2240 = vmatpush1.msra.mxu0 0.0
        %2241 = vmatprep.subr.mxu0 0.0
        %2242 = vmatpush1.msra.mxu0 0.0
        %2243 = vmatprep.subr.mxu0 0.0
        %2244 = vmatpush1.msra.mxu0 0.0
        %2245 = vmatprep.subr.mxu0 0.0
        %2246 = vmatpush1.msra.mxu0 0.0
        %2247 = vmatprep.subr.mxu0 0.0
        %2248 = vmatpush1.msra.mxu0 0.0
        %2249 = vmatprep.subr.mxu0 0.0
        %2250 = vmatpush1.msra.mxu0 0.0
        %2251 = vmatprep.subr.mxu0 0.0
        %2252 = vmatpush1.msra.mxu0 0.0
        %2253 = vmatprep.subr.mxu0 0.0
        %2254 = vmatpush1.msra.mxu0 0.0
        %2255 = vmatprep.subr.mxu0 0.0
        %2256 = vmatpush1.msra.mxu0 0.0
        %2257 = vmatprep.subr.mxu0 0.0
        %2258 = vmatpush1.msra.mxu0 0.0
        %2259 = vmatprep.subr.mxu0 0.0
        %2260 = vmatpush1.msra.mxu0 0.0
        %2261 = vmatprep.subr.mxu0 0.0
        %2262 = vmatpush1.msra.mxu0 0.0
        %2263 = vmatprep.subr.mxu0 0.0
        %2264 = vmatpush1.msra.mxu0 0.0
        %2265 = vmatprep.subr.mxu0 0.0
        %2266 = vmatpush1.msra.mxu0 0.0
        %2267 = vmatprep.subr.mxu0 0.0
        %2268 = vmatpush1.msra.mxu0 0.0
        %2269 = vmatprep.subr.mxu0 0.0
        %2270 = vmatpush1.msra.mxu0 0.0
        %2271 = vmatprep.subr.mxu0 0.0
        %2272 = vmatpush1.msra.mxu0 0.0
        %2273 = vmatprep.subr.mxu0 0.0
        %2274 = vmatpush1.msra.mxu0 0.0
        %2275 = vmatprep.subr.mxu0 0.0
        %2276 = vmatpush1.msra.mxu0 0.0
        %2277 = vmatprep.subr.mxu0 0.0
        %2278 = vmatpush1.msra.mxu0 0.0
        %2279 = vmatprep.subr.mxu0 0.0
        %2280 = vmatpush1.msra.mxu0 0.0
        %2281 = vmatprep.subr.mxu0 0.0
        %2282 = vmatpush1.msra.mxu0 0.0
        %2283 = vmatprep.subr.mxu0 0.0
        %2284 = vmatpush1.msra.mxu0 0.0
        %2285 = vmatprep.subr.mxu0 0.0
        %2286 = vmatpush1.msra.mxu0 0.0
        %2287 = vmatprep.mubr.f32.mxu0 0.0
        %2288 = vmatmul.mubr.f32.gmra.mrb[0].mxu0 %v2212
        %v2289 = vpop.f32.mrb[0].mxu0
        %v2290 = vadd.f32 0.0, %v2289
        %v2291 = vpop.f32.mrb[0].mxu0
        %2292 = vmatprep.mubr.f32.mxu0 0.0
        %2293 = vmatmul.mubr.f32.gmra.mrb[0].mxu0 %v2215
        %v2294 = vpop.f32.mrb[0].mxu0
        %v2295 = vadd.f32 0.0, %v2294
        %v2296 = vpop.f32.mrb[0].mxu0
        %2297 = vmatprep.mubr.f32.mxu0 0.0
        %2298 = vmatmul.mubr.f32.gmra.mrb[0].mxu0 %v2218
        %v2299 = vpop.f32.mrb[0].mxu0
        %v2300 = vadd.f32 0.0, %v2299
        %v2301 = vpop.f32.mrb[0].mxu0
        %2302 = vmatprep.mubr.f32.mxu0 0.0
        %2303 = vmatmul.mubr.f32.gmra.mrb[0].mxu0 %v2221
        %v2304 = vpop.f32.mrb[0].mxu0
        %v2305 = vadd.f32 0.0, %v2304
        %v2306 = vpop.f32.mrb[0].mxu0
        %2307 = vdwg.mxu0
        %2308 = vrot.lane.b32.xlu0 %v1455, 104
        %v2309 = vpop.permute.xlu0 %2308
        %2310 = vrot.lane.b32.xlu0 %v1460, 104
        %v2311 = vpop.permute.xlu0 %2310
        %2312 = vrot.lane.b32.xlu0 %v1465, 104
        %v2313 = vpop.permute.xlu0 %2312
        %2314 = vrot.lane.b32.xlu0 %v1470, 104
        %v2315 = vpop.permute.xlu0 %2314
        %2316 = vrot.lane.b32.xlu0 %v1455, 72
        %v2317 = vpop.permute.xlu0 %2316
        %2318 = vrot.lane.b32.xlu0 %v1460, 72
        %v2319 = vpop.permute.xlu0 %2318
        %2320 = vrot.lane.b32.xlu0 %v1465, 72
        %v2321 = vpop.permute.xlu0 %2320
        %2322 = vrot.lane.b32.xlu0 %v1470, 72
        %v2323 = vpop.permute.xlu0 %2322
        %v2324 = vsel %vm1501, %v2309, 0
        %v2326 = vsel %vm1501, %v2311, 0
        %v2328 = vsel %vm1501, %v2313, 0
        %v2330 = vsel %vm1501, %v2315, 0
        %v2332 = vsel %vm1501, %v2317, 0
        %v2334 = vsel %vm1501, %v2319, 0
        %v2336 = vsel %vm1501, %v2321, 0
        %v2338 = vsel %vm1501, %v2323, 0
        %2340 = vmatprep.subr.mxu0 0.0
        %2341 = vmatpush1.xpose.msra.mxu0 %v2332
        %2342 = vmatprep.subr.mxu0 0.0
        %2343 = vmatpush1.xpose.msra.mxu0 %v2334
        %2344 = vmatprep.subr.mxu0 0.0
        %2345 = vmatpush1.xpose.msra.mxu0 %v2336
        %2346 = vmatprep.subr.mxu0 0.0
        %2347 = vmatpush1.xpose.msra.mxu0 %v2338
        %2348 = vmatprep.subr.mxu0 0.0
        %2349 = vmatpush1.xpose.msra.mxu0 0.0
        %2350 = vmatprep.subr.mxu0 0.0
        %2351 = vmatpush1.xpose.msra.mxu0 0.0
        %2352 = vmatprep.subr.mxu0 0.0
        %2353 = vmatpush1.xpose.msra.mxu0 0.0
        %2354 = vmatprep.subr.mxu0 0.0
        %2355 = vmatpush1.xpose.msra.mxu0 0.0
        %2356 = vmatprep.subr.mxu0 0.0
        %2357 = vmatpush1.xpose.msra.mxu0 0.0
        %2358 = vmatprep.subr.mxu0 0.0
        %2359 = vmatpush1.xpose.msra.mxu0 0.0
        %2360 = vmatprep.subr.mxu0 0.0
        %2361 = vmatpush1.xpose.msra.mxu0 0.0
        %2362 = vmatprep.subr.mxu0 0.0
        %2363 = vmatpush1.xpose.msra.mxu0 0.0
        %2364 = vmatprep.subr.mxu0 0.0
        %2365 = vmatpush1.xpose.msra.mxu0 0.0
        %2366 = vmatprep.subr.mxu0 0.0
        %2367 = vmatpush1.xpose.msra.mxu0 0.0
        %2368 = vmatprep.subr.mxu0 0.0
        %2369 = vmatpush1.xpose.msra.mxu0 0.0
        %2370 = vmatprep.subr.mxu0 0.0
        %2371 = vmatpush1.xpose.msra.mxu0 0.0
        %2372 = vmatprep.subr.mxu0 0.0
        %2373 = vmatpush1.xpose.msra.mxu0 0.0
        %2374 = vmatprep.subr.mxu0 0.0
        %2375 = vmatpush1.xpose.msra.mxu0 0.0
        %2376 = vmatprep.subr.mxu0 0.0
        %2377 = vmatpush1.xpose.msra.mxu0 0.0
        %2378 = vmatprep.subr.mxu0 0.0
        %2379 = vmatpush1.xpose.msra.mxu0 0.0
        %2380 = vmatprep.subr.mxu0 0.0
        %2381 = vmatpush1.xpose.msra.mxu0 0.0
        %2382 = vmatprep.subr.mxu0 0.0
        %2383 = vmatpush1.xpose.msra.mxu0 0.0
        %2384 = vmatprep.subr.mxu0 0.0
        %2385 = vmatpush1.xpose.msra.mxu0 0.0
        %2386 = vmatprep.subr.mxu0 0.0
        %2387 = vmatpush1.xpose.msra.mxu0 0.0
        %2388 = vmatprep.subr.mxu0 0.0
        %2389 = vmatpush1.xpose.msra.mxu0 0.0
        %2390 = vmatprep.subr.mxu0 0.0
        %2391 = vmatpush1.xpose.msra.mxu0 0.0
        %2392 = vmatprep.subr.mxu0 0.0
        %2393 = vmatpush1.xpose.msra.mxu0 0.0
        %2394 = vmatprep.subr.mxu0 0.0
        %2395 = vmatpush1.xpose.msra.mxu0 0.0
        %2396 = vmatprep.subr.mxu0 0.0
        %2397 = vmatpush1.xpose.msra.mxu0 0.0
        %2398 = vmatprep.subr.mxu0 0.0
        %2399 = vmatpush1.xpose.msra.mxu0 0.0
        %2400 = vmatprep.subr.mxu0 0.0
        %2401 = vmatpush1.xpose.msra.mxu0 0.0
        %2402 = vmatprep.subr.mxu0 0.0
        %2403 = vmatpush1.xpose.msra.mxu0 0.0
        %2404 = vmatprep.mubr.f32.mxu0 0.0
        %2405 = vmatmul.mubr.f32.gmra.mrb[0].mxu0 %v2324
        %v2406 = vpop.f32.mrb[0].mxu0
        %v2407 = vadd.f32 %v1490, %v2406
        %v2408 = vpop.f32.mrb[0].mxu0
        %2409 = vmatprep.mubr.f32.mxu0 0.0
        %2410 = vmatmul.mubr.f32.gmra.mrb[0].mxu0 %v2326
        %v2411 = vpop.f32.mrb[0].mxu0
        %v2412 = vadd.f32 %v1492, %v2411
        %v2413 = vpop.f32.mrb[0].mxu0
        %2414 = vmatprep.mubr.f32.mxu0 0.0
        %2415 = vmatmul.mubr.f32.gmra.mrb[0].mxu0 %v2328
        %v2416 = vpop.f32.mrb[0].mxu0
        %v2417 = vadd.f32 %v1494, %v2416
        %v2418 = vpop.f32.mrb[0].mxu0
        %2419 = vmatprep.mubr.f32.mxu0 0.0
        %2420 = vmatmul.mubr.f32.gmra.mrb[0].mxu0 %v2330
        %v2421 = vpop.f32.mrb[0].mxu0
        %v2422 = vadd.f32 %v1496, %v2421
        %v2423 = vpop.f32.mrb[0].mxu0
        %2424 = vdwg.mxu0
        %v2425 = vsel %vm335, %v2407, -inf
        %2426 = vmax.xlane.f32.xlu0 %v2425
        %v2427 = vpop.xlane.xlu0 %2426
        %v2428 = vsel %vm335, %v2412, -inf
        %2429 = vmax.xlane.f32.xlu0 %v2428
        %v2430 = vpop.xlane.xlu0 %2429
        %v2431 = vsel %vm335, %v2417, -inf
        %2432 = vmax.xlane.f32.xlu0 %v2431
        %v2433 = vpop.xlane.xlu0 %2432
        %v2434 = vsel %vm335, %v2422, -inf
        %2435 = vmax.xlane.f32.xlu0 %v2434
        %v2436 = vpop.xlane.xlu0 %2435
        %v2437 = vsub.f32 %v2407, %v2427
        %v2438 = vsub.f32 %v2412, %v2430
        %v2439 = vsub.f32 %v2417, %v2433
        %v2440 = vsub.f32 %v2422, %v2436
        %v2441 = vmul.f32 %v2437, 1.442695
        %v2442 = vpow.pop %v2441
        %v2443 = vmul.f32 %v2438, 1.442695
        %v2444 = vpow.pop %v2443
        %v2445 = vmul.f32 %v2439, 1.442695
        %v2446 = vpow.pop %v2445
        %v2447 = vmul.f32 %v2440, 1.442695
        %v2448 = vpow.pop %v2447
        %v2449 = vsel %vm335, %v2442, 0.0
        %2450 = vadd.xlane.f32.xlu0 %v2449
        %v2451 = vpop.xlane.xlu0 %2450
        %v2452 = vsel %vm335, %v2444, 0.0
        %2453 = vadd.xlane.f32.xlu0 %v2452
        %v2454 = vpop.xlane.xlu0 %2453
        %v2455 = vsel %vm335, %v2446, 0.0
        %2456 = vadd.xlane.f32.xlu0 %v2455
        %v2457 = vpop.xlane.xlu0 %2456
        %v2458 = vsel %vm335, %v2448, 0.0
        %2459 = vadd.xlane.f32.xlu0 %v2458
        %v2460 = vpop.xlane.xlu0 %2459
        %v2461 = vrcp.pop %v2451
        %v2462 = vmul.f32 1.0, %v2461
        %v2463 = vrcp.pop %v2454
        %v2464 = vmul.f32 1.0, %v2463
        %v2465 = vrcp.pop %v2457
        %v2466 = vmul.f32 1.0, %v2465
        %v2467 = vrcp.pop %v2460
        %v2468 = vmul.f32 1.0, %v2467
        %v2469 = vmul.f32 %v2442, %v2462
        %v2470 = vmul.f32 %v2444, %v2464
        %v2471 = vmul.f32 %v2446, %v2466
        %v2472 = vmul.f32 %v2448, %v2468
        %2473 = vrot.lane.b32.xlu0 %v1455, 40
        %v2474 = vpop.permute.xlu0 %2473
        %2475 = vrot.lane.b32.xlu0 %v1460, 40
        %v2476 = vpop.permute.xlu0 %2475
        %2477 = vrot.lane.b32.xlu0 %v1465, 40
        %v2478 = vpop.permute.xlu0 %2477
        %2479 = vrot.lane.b32.xlu0 %v1470, 40
        %v2480 = vpop.permute.xlu0 %2479
        %v2486 = vsel %vm335, %v2469, 0
        %v2489 = vsel %vm335, %v2470, 0
        %v2492 = vsel %vm335, %v2471, 0
        %v2495 = vsel %vm335, %v2472, 0
        %2497 = vmatprep.subr.mxu0 0.0
        %2498 = vmatpush1.msra.mxu0 %v2474
        %2499 = vmatprep.subr.mxu0 0.0
        %2500 = vmatpush1.msra.mxu0 %v2476
        %2501 = vmatprep.subr.mxu0 0.0
        %2502 = vmatpush1.msra.mxu0 %v2478
        %2503 = vmatprep.subr.mxu0 0.0
        %2504 = vmatpush1.msra.mxu0 %v2480
        %2505 = vmatprep.subr.mxu0 0.0
        %2506 = vmatpush1.msra.mxu0 0.0
        %2507 = vmatprep.subr.mxu0 0.0
        %2508 = vmatpush1.msra.mxu0 0.0
        %2509 = vmatprep.subr.mxu0 0.0
        %2510 = vmatpush1.msra.mxu0 0.0
        %2511 = vmatprep.subr.mxu0 0.0
        %2512 = vmatpush1.msra.mxu0 0.0
        %2513 = vmatprep.subr.mxu0 0.0
        %2514 = vmatpush1.msra.mxu0 0.0
        %2515 = vmatprep.subr.mxu0 0.0
        %2516 = vmatpush1.msra.mxu0 0.0
        %2517 = vmatprep.subr.mxu0 0.0
        %2518 = vmatpush1.msra.mxu0 0.0
        %2519 = vmatprep.subr.mxu0 0.0
        %2520 = vmatpush1.msra.mxu0 0.0
        %2521 = vmatprep.subr.mxu0 0.0
        %2522 = vmatpush1.msra.mxu0 0.0
        %2523 = vmatprep.subr.mxu0 0.0
        %2524 = vmatpush1.msra.mxu0 0.0
        %2525 = vmatprep.subr.mxu0 0.0
        %2526 = vmatpush1.msra.mxu0 0.0
        %2527 = vmatprep.subr.mxu0 0.0
        %2528 = vmatpush1.msra.mxu0 0.0
        %2529 = vmatprep.subr.mxu0 0.0
        %2530 = vmatpush1.msra.mxu0 0.0
        %2531 = vmatprep.subr.mxu0 0.0
        %2532 = vmatpush1.msra.mxu0 0.0
        %2533 = vmatprep.subr.mxu0 0.0
        %2534 = vmatpush1.msra.mxu0 0.0
        %2535 = vmatprep.subr.mxu0 0.0
        %2536 = vmatpush1.msra.mxu0 0.0
        %2537 = vmatprep.subr.mxu0 0.0
        %2538 = vmatpush1.msra.mxu0 0.0
        %2539 = vmatprep.subr.mxu0 0.0
        %2540 = vmatpush1.msra.mxu0 0.0
        %2541 = vmatprep.subr.mxu0 0.0
        %2542 = vmatpush1.msra.mxu0 0.0
        %2543 = vmatprep.subr.mxu0 0.0
        %2544 = vmatpush1.msra.mxu0 0.0
        %2545 = vmatprep.subr.mxu0 0.0
        %2546 = vmatpush1.msra.mxu0 0.0
        %2547 = vmatprep.subr.mxu0 0.0
        %2548 = vmatpush1.msra.mxu0 0.0
        %2549 = vmatprep.subr.mxu0 0.0
        %2550 = vmatpush1.msra.mxu0 0.0
        %2551 = vmatprep.subr.mxu0 0.0
        %2552 = vmatpush1.msra.mxu0 0.0
        %2553 = vmatprep.subr.mxu0 0.0
        %2554 = vmatpush1.msra.mxu0 0.0
        %2555 = vmatprep.subr.mxu0 0.0
        %2556 = vmatpush1.msra.mxu0 0.0
        %2557 = vmatprep.subr.mxu0 0.0
        %2558 = vmatpush1.msra.mxu0 0.0
        %2559 = vmatprep.subr.mxu0 0.0
        %2560 = vmatpush1.msra.mxu0 0.0
        %2561 = vmatprep.mubr.f32.mxu0 0.0
        %2562 = vmatmul.mubr.f32.gmra.mrb[0].mxu0 %v2486
        %v2563 = vpop.f32.mrb[0].mxu0
        %v2564 = vadd.f32 0.0, %v2563
        %v2565 = vpop.f32.mrb[0].mxu0
        %2566 = vmatprep.mubr.f32.mxu0 0.0
        %2567 = vmatmul.mubr.f32.gmra.mrb[0].mxu0 %v2489
        %v2568 = vpop.f32.mrb[0].mxu0
        %v2569 = vadd.f32 0.0, %v2568
        %v2570 = vpop.f32.mrb[0].mxu0
        %2571 = vmatprep.mubr.f32.mxu0 0.0
        %2572 = vmatmul.mubr.f32.gmra.mrb[0].mxu0 %v2492
        %v2573 = vpop.f32.mrb[0].mxu0
        %v2574 = vadd.f32 0.0, %v2573
        %v2575 = vpop.f32.mrb[0].mxu0
        %2576 = vmatprep.mubr.f32.mxu0 0.0
        %2577 = vmatmul.mubr.f32.gmra.mrb[0].mxu0 %v2495
        %v2578 = vpop.f32.mrb[0].mxu0
        %v2579 = vadd.f32 0.0, %v2578
        %v2580 = vpop.f32.mrb[0].mxu0
        %2581 = vdwg.mxu0
        %2586 = vrot.lane.b32.xlu0 %v2016, 8
        %v2587 = vpop.permute.xlu0 %2586
        %2588 = vrot.lane.b32.xlu0 %v2021, 8
        %v2589 = vpop.permute.xlu0 %2588
        %2590 = vrot.lane.b32.xlu0 %v2026, 8
        %v2591 = vpop.permute.xlu0 %2590
        %2592 = vrot.lane.b32.xlu0 %v2031, 8
        %v2593 = vpop.permute.xlu0 %2592
        %2602 = vrot.lane.b32.xlu0 %v2290, 16
        %v2603 = vpop.permute.xlu0 %2602
        %2604 = vrot.lane.b32.xlu0 %v2295, 16
        %v2605 = vpop.permute.xlu0 %2604
        %2606 = vrot.lane.b32.xlu0 %v2300, 16
        %v2607 = vpop.permute.xlu0 %2606
        %2608 = vrot.lane.b32.xlu0 %v2305, 16
        %v2609 = vpop.permute.xlu0 %2608
        %2618 = vrot.lane.b32.xlu0 %v2564, 24
        %v2619 = vpop.permute.xlu0 %2618
        %2620 = vrot.lane.b32.xlu0 %v2569, 24
        %v2621 = vpop.permute.xlu0 %2620
        %2622 = vrot.lane.b32.xlu0 %v2574, 24
        %v2623 = vpop.permute.xlu0 %2622
        %2624 = vrot.lane.b32.xlu0 %v2579, 24
        %v2625 = vpop.permute.xlu0 %2624
        %v2630 = vsel %vm1501, %v1742, %v2587
        %v2631 = vsel %vm1501, %v1747, %v2589
        %v2632 = vsel %vm1501, %v1752, %v2591
        %v2633 = vsel %vm1501, %v1757, %v2593
        %vm2634 = vcmask 130048
        %v2635 = vsel %vm2634, %v2630, %v2603
        %v2636 = vsel %vm2634, %v2631, %v2605
        %v2637 = vsel %vm2634, %v2632, %v2607
        %v2638 = vsel %vm2634, %v2633, %v2609
        %vm2639 = vcmask 195584
        %v2640 = vsel %vm2639, %v2635, %v2619
        %v2641 = vsel %vm2639, %v2636, %v2621
        %v2642 = vsel %vm2639, %v2637, %v2623
        %v2643 = vsel %vm2639, %v2638, %v2625
        %v2644 = vlaneseq
        %v2645 = vshrl.u32 %v2644, 7
        %v2646 = vsub.s32 0, %v2645
        %v2647 = vrot.slane %v299, %v2646
        %2652 = vrot.lane.b32.xlu0 %v311, 32
        %v2653 = vpop.permute.xlu0 %2652
        %2654 = vrot.lane.b32.xlu0 %v312, 32
        %v2655 = vpop.permute.xlu0 %2654
        %2656 = vrot.lane.b32.xlu0 %v313, 32
        %v2657 = vpop.permute.xlu0 %2656
        %2658 = vrot.lane.b32.xlu0 %v314, 32
        %v2659 = vpop.permute.xlu0 %2658
        %v2665 = vsel %vm335, %v2640, 0
        %v2668 = vsel %vm335, %v2641, 0
        %v2671 = vsel %vm335, %v2642, 0
        %v2674 = vsel %vm335, %v2643, 0
        %2676 = vmatprep.subr.mxu0 0.0
        %2677 = vmatpush1.msra.mxu0 %v2653
        %2678 = vmatprep.subr.mxu0 0.0
        %2679 = vmatpush1.msra.mxu0 %v2655
        %2680 = vmatprep.subr.mxu0 0.0
        %2681 = vmatpush1.msra.mxu0 %v2657
        %2682 = vmatprep.subr.mxu0 0.0
        %2683 = vmatpush1.msra.mxu0 %v2659
        %2684 = vmatprep.subr.mxu0 0.0
        %2685 = vmatpush1.msra.mxu0 0.0
        %2686 = vmatprep.subr.mxu0 0.0
        %2687 = vmatpush1.msra.mxu0 0.0
        %2688 = vmatprep.subr.mxu0 0.0
        %2689 = vmatpush1.msra.mxu0 0.0
        %2690 = vmatprep.subr.mxu0 0.0
        %2691 = vmatpush1.msra.mxu0 0.0
        %2692 = vmatprep.subr.mxu0 0.0
        %2693 = vmatpush1.msra.mxu0 0.0
        %2694 = vmatprep.subr.mxu0 0.0
        %2695 = vmatpush1.msra.mxu0 0.0
        %2696 = vmatprep.subr.mxu0 0.0
        %2697 = vmatpush1.msra.mxu0 0.0
        %2698 = vmatprep.subr.mxu0 0.0
        %2699 = vmatpush1.msra.mxu0 0.0
        %2700 = vmatprep.subr.mxu0 0.0
        %2701 = vmatpush1.msra.mxu0 0.0
        %2702 = vmatprep.subr.mxu0 0.0
        %2703 = vmatpush1.msra.mxu0 0.0
        %2704 = vmatprep.subr.mxu0 0.0
        %2705 = vmatpush1.msra.mxu0 0.0
        %2706 = vmatprep.subr.mxu0 0.0
        %2707 = vmatpush1.msra.mxu0 0.0
        %2708 = vmatprep.subr.mxu0 0.0
        %2709 = vmatpush1.msra.mxu0 0.0
        %2710 = vmatprep.subr.mxu0 0.0
        %2711 = vmatpush1.msra.mxu0 0.0
        %2712 = vmatprep.subr.mxu0 0.0
        %2713 = vmatpush1.msra.mxu0 0.0
        %2714 = vmatprep.subr.mxu0 0.0
        %2715 = vmatpush1.msra.mxu0 0.0
        %2716 = vmatprep.subr.mxu0 0.0
        %2717 = vmatpush1.msra.mxu0 0.0
        %2718 = vmatprep.subr.mxu0 0.0
        %2719 = vmatpush1.msra.mxu0 0.0
        %2720 = vmatprep.subr.mxu0 0.0
        %2721 = vmatpush1.msra.mxu0 0.0
        %2722 = vmatprep.subr.mxu0 0.0
        %2723 = vmatpush1.msra.mxu0 0.0
        %2724 = vmatprep.subr.mxu0 0.0
        %2725 = vmatpush1.msra.mxu0 0.0
        %2726 = vmatprep.subr.mxu0 0.0
        %2727 = vmatpush1.msra.mxu0 0.0
        %2728 = vmatprep.subr.mxu0 0.0
        %2729 = vmatpush1.msra.mxu0 0.0
        %2730 = vmatprep.subr.mxu0 0.0
        %2731 = vmatpush1.msra.mxu0 0.0
        %2732 = vmatprep.subr.mxu0 0.0
        %2733 = vmatpush1.msra.mxu0 0.0
        %2734 = vmatprep.subr.mxu0 0.0
        %2735 = vmatpush1.msra.mxu0 0.0
        %2736 = vmatprep.subr.mxu0 0.0
        %2737 = vmatpush1.msra.mxu0 0.0
        %2738 = vmatprep.subr.mxu0 0.0
        %2739 = vmatpush1.msra.mxu0 0.0
        %2740 = vmatprep.mubr.f32.mxu0 0.0
        %2741 = vmatmul.mubr.f32.gmra.mrb[0].mxu0 %v2665
        %v2742 = vpop.f32.mrb[0].mxu0
        %v2743 = vadd.f32 %v2647, %v2742
        %v2744 = vpop.f32.mrb[0].mxu0
        %2745 = vmatprep.mubr.f32.mxu0 0.0
        %2746 = vmatmul.mubr.f32.gmra.mrb[0].mxu0 %v2668
        %v2747 = vpop.f32.mrb[0].mxu0
        %v2748 = vadd.f32 %v2647, %v2747
        %v2749 = vpop.f32.mrb[0].mxu0
        %2750 = vmatprep.mubr.f32.mxu0 0.0
        %2751 = vmatmul.mubr.f32.gmra.mrb[0].mxu0 %v2671
        %v2752 = vpop.f32.mrb[0].mxu0
        %v2753 = vadd.f32 %v2647, %v2752
        %v2754 = vpop.f32.mrb[0].mxu0
        %2755 = vmatprep.mubr.f32.mxu0 0.0
        %2756 = vmatmul.mubr.f32.gmra.mrb[0].mxu0 %v2674
        %v2757 = vpop.f32.mrb[0].mxu0
        %v2758 = vadd.f32 %v2647, %v2757
        %v2759 = vpop.f32.mrb[0].mxu0
        %2760 = vdwg.mxu0
        %v2761 = vadd.f32 %v1372, %v2743
        %v2762 = vadd.f32 %v1373, %v2748
        %v2763 = vadd.f32 %v1374, %v2753
        %v2764 = vadd.f32 %v1375, %v2758
        %v2765 = vsel %vm335, %v2761, 0.0
        %2766 = vadd.xlane.f32.xlu0 %v2765
        %v2767 = vpop.xlane.xlu0 %2766
        %v2768 = vsel %vm335, %v2762, 0.0
        %2769 = vadd.xlane.f32.xlu0 %v2768
        %v2770 = vpop.xlane.xlu0 %2769
        %v2771 = vsel %vm335, %v2763, 0.0
        %2772 = vadd.xlane.f32.xlu0 %v2771
        %v2773 = vpop.xlane.xlu0 %2772
        %v2774 = vsel %vm335, %v2764, 0.0
        %2775 = vadd.xlane.f32.xlu0 %v2774
        %v2776 = vpop.xlane.xlu0 %2775
        %v2777 = vmul.f32 %v2767, %v348
        %v2778 = vmul.f32 %v2770, %v348
        %v2779 = vmul.f32 %v2773, %v348
        %v2780 = vmul.f32 %v2776, %v348
        %v2781 = vsub.f32 %v2761, %v2777
        %v2782 = vsub.f32 %v2762, %v2778
        %v2783 = vsub.f32 %v2763, %v2779
        %v2784 = vsub.f32 %v2764, %v2780
        %v2785 = vmul.f32 %v2781, %v2781
        %v2786 = vmul.f32 %v2782, %v2782
        %v2787 = vmul.f32 %v2783, %v2783
        %v2788 = vmul.f32 %v2784, %v2784
        %v2789 = vsel %vm335, %v2785, 0.0
        %2790 = vadd.xlane.f32.xlu0 %v2789
        %v2791 = vpop.xlane.xlu0 %2790
        %v2792 = vsel %vm335, %v2786, 0.0
        %2793 = vadd.xlane.f32.xlu0 %v2792
        %v2794 = vpop.xlane.xlu0 %2793
        %v2795 = vsel %vm335, %v2787, 0.0
        %2796 = vadd.xlane.f32.xlu0 %v2795
        %v2797 = vpop.xlane.xlu0 %2796
        %v2798 = vsel %vm335, %v2788, 0.0
        %2799 = vadd.xlane.f32.xlu0 %v2798
        %v2800 = vpop.xlane.xlu0 %2799
        %v2801 = vmul.f32 %v2791, %v348
        %v2802 = vmul.f32 %v2794, %v348
        %v2803 = vmul.f32 %v2797, %v348
        %v2804 = vmul.f32 %v2800, %v348
        %v2805 = vadd.f32 %v2801, 1e-05
        %v2806 = vadd.f32 %v2802, 1e-05
        %v2807 = vadd.f32 %v2803, 1e-05
        %v2808 = vadd.f32 %v2804, 1e-05
        %v2809 = vrsqrt.pop %v2805
        %v2810 = vrsqrt.pop %v2806
        %v2811 = vrsqrt.pop %v2807
        %v2812 = vrsqrt.pop %v2808
        %v2813 = vmul.f32 %v2781, %v2809
        %v2814 = vmul.f32 %v2782, %v2810
        %v2815 = vmul.f32 %v2783, %v2811
        %v2816 = vmul.f32 %v2784, %v2812
        %v2817 = vlaneseq
        %v2818 = vshrl.u32 %v2817, 7
        %v2819 = vsub.s32 0, %v2818
        %v2820 = vrot.slane %v300, %v2819
        %v2821 = vmul.f32 %v2813, %v2820
        %v2822 = vmul.f32 %v2814, %v2820
        %v2823 = vmul.f32 %v2815, %v2820
        %v2824 = vmul.f32 %v2816, %v2820
        %v2825 = vlaneseq
        %v2826 = vshrl.u32 %v2825, 7
        %v2827 = vsub.s32 0, %v2826
        %v2828 = vrot.slane %v301, %v2827
        %v2829 = vadd.f32 %v2821, %v2828
        %v2830 = vadd.f32 %v2822, %v2828
        %v2831 = vadd.f32 %v2823, %v2828
        %v2832 = vadd.f32 %v2824, %v2828
        %v2834 = vsel %vm335, %v2829, 0
        %v2837 = vsel %vm335, %v2830, 0
        %v2840 = vsel %vm335, %v2831, 0
        %v2843 = vsel %vm335, %v2832, 0
        %2845 = vmatprep.subr.mxu0 0.0
        %2846 = vmatpush1.msra.mxu0 %v315
        %2847 = vmatprep.subr.mxu0 0.0
        %2848 = vmatpush1.msra.mxu0 %v316
        %2849 = vmatprep.subr.mxu0 0.0
        %2850 = vmatpush1.msra.mxu0 %v317
        %2851 = vmatprep.subr.mxu0 0.0
        %2852 = vmatpush1.msra.mxu0 %v318
        %2853 = vmatprep.subr.mxu0 0.0
        %2854 = vmatpush1.msra.mxu0 0.0
        %2855 = vmatprep.subr.mxu0 0.0
        %2856 = vmatpush1.msra.mxu0 0.0
        %2857 = vmatprep.subr.mxu0 0.0
        %2858 = vmatpush1.msra.mxu0 0.0
        %2859 = vmatprep.subr.mxu0 0.0
        %2860 = vmatpush1.msra.mxu0 0.0
        %2861 = vmatprep.subr.mxu0 0.0
        %2862 = vmatpush1.msra.mxu0 0.0
        %2863 = vmatprep.subr.mxu0 0.0
        %2864 = vmatpush1.msra.mxu0 0.0
        %2865 = vmatprep.subr.mxu0 0.0
        %2866 = vmatpush1.msra.mxu0 0.0
        %2867 = vmatprep.subr.mxu0 0.0
        %2868 = vmatpush1.msra.mxu0 0.0
        %2869 = vmatprep.subr.mxu0 0.0
        %2870 = vmatpush1.msra.mxu0 0.0
        %2871 = vmatprep.subr.mxu0 0.0
        %2872 = vmatpush1.msra.mxu0 0.0
        %2873 = vmatprep.subr.mxu0 0.0
        %2874 = vmatpush1.msra.mxu0 0.0
        %2875 = vmatprep.subr.mxu0 0.0
        %2876 = vmatpush1.msra.mxu0 0.0
        %2877 = vmatprep.subr.mxu0 0.0
        %2878 = vmatpush1.msra.mxu0 0.0
        %2879 = vmatprep.subr.mxu0 0.0
        %2880 = vmatpush1.msra.mxu0 0.0
        %2881 = vmatprep.subr.mxu0 0.0
        %2882 = vmatpush1.msra.mxu0 0.0
        %2883 = vmatprep.subr.mxu0 0.0
        %2884 = vmatpush1.msra.mxu0 0.0
        %2885 = vmatprep.subr.mxu0 0.0
        %2886 = vmatpush1.msra.mxu0 0.0
        %2887 = vmatprep.subr.mxu0 0.0
        %2888 = vmatpush1.msra.mxu0 0.0
        %2889 = vmatprep.subr.mxu0 0.0
        %2890 = vmatpush1.msra.mxu0 0.0
        %2891 = vmatprep.subr.mxu0 0.0
        %2892 = vmatpush1.msra.mxu0 0.0
        %2893 = vmatprep.subr.mxu0 0.0
        %2894 = vmatpush1.msra.mxu0 0.0
        %2895 = vmatprep.subr.mxu0 0.0
        %2896 = vmatpush1.msra.mxu0 0.0
        %2897 = vmatprep.subr.mxu0 0.0
        %2898 = vmatpush1.msra.mxu0 0.0
        %2899 = vmatprep.subr.mxu0 0.0
        %2900 = vmatpush1.msra.mxu0 0.0
        %2901 = vmatprep.subr.mxu0 0.0
        %2902 = vmatpush1.msra.mxu0 0.0
        %2903 = vmatprep.subr.mxu0 0.0
        %2904 = vmatpush1.msra.mxu0 0.0
        %2905 = vmatprep.subr.mxu0 0.0
        %2906 = vmatpush1.msra.mxu0 0.0
        %2907 = vmatprep.subr.mxu0 0.0
        %2908 = vmatpush1.msra.mxu0 0.0
        %2909 = vmatprep.mubr.f32.mxu0 0.0
        %2910 = vmatmul.mubr.f32.gmra.mrb[0].mxu0 %v2834
        %v2911 = vpop.f32.mrb[0].mxu0
        %v2912 = vadd.f32 0.0, %v2911
        %v2913 = vpop.f32.mrb[0].mxu0
        %2914 = vmatprep.mubr.f32.mxu0 0.0
        %2915 = vmatmul.mubr.f32.gmra.mrb[0].mxu0 %v2837
        %v2916 = vpop.f32.mrb[0].mxu0
        %v2917 = vadd.f32 0.0, %v2916
        %v2918 = vpop.f32.mrb[0].mxu0
        %2919 = vmatprep.mubr.f32.mxu0 0.0
        %2920 = vmatmul.mubr.f32.gmra.mrb[0].mxu0 %v2840
        %v2921 = vpop.f32.mrb[0].mxu0
        %v2922 = vadd.f32 0.0, %v2921
        %v2923 = vpop.f32.mrb[0].mxu0
        %2924 = vmatprep.mubr.f32.mxu0 0.0
        %2925 = vmatmul.mubr.f32.gmra.mrb[0].mxu0 %v2843
        %v2926 = vpop.f32.mrb[0].mxu0
        %v2927 = vadd.f32 0.0, %v2926
        %v2928 = vpop.f32.mrb[0].mxu0
        %2929 = vdwg.mxu0
        %2934 = vrot.lane.b32.xlu0 %v2912, 96
        %v2935 = vpop.permute.xlu0 %2934
        %2936 = vrot.lane.b32.xlu0 %v2917, 96
        %v2937 = vpop.permute.xlu0 %2936
        %2938 = vrot.lane.b32.xlu0 %v2922, 96
        %v2939 = vpop.permute.xlu0 %2938
        %2940 = vrot.lane.b32.xlu0 %v2927, 96
        %v2941 = vpop.permute.xlu0 %2940
        %2942 = vrot.lane.b32.xlu0 %v285, 32
        %v2943 = vpop.permute.xlu0 %2942
        %2944 = vrot.lane.b32.xlu0 %v286, 32
        %v2945 = vpop.permute.xlu0 %2944
        %2946 = vrot.lane.b32.xlu0 %v287, 32
        %v2947 = vpop.permute.xlu0 %2946
        %2948 = vrot.lane.b32.xlu0 %v288, 32
        %v2949 = vpop.permute.xlu0 %2948
        %v2954 = vsel %vm1501, %v2912, 0
        %v2956 = vsel %vm1501, %v2917, 0
        %v2958 = vsel %vm1501, %v2922, 0
        %v2960 = vsel %vm1501, %v2927, 0
        %v2962 = vsel %vm1501, %v2935, 0
        %v2964 = vsel %vm1501, %v2937, 0
        %v2966 = vsel %vm1501, %v2939, 0
        %v2968 = vsel %vm1501, %v2941, 0
        %2970 = vmatprep.subr.mxu0 0.0
        %2971 = vmatpush1.xpose.msra.mxu0 %v2962
        %2972 = vmatprep.subr.mxu0 0.0
        %2973 = vmatpush1.xpose.msra.mxu0 %v2964
        %2974 = vmatprep.subr.mxu0 0.0
        %2975 = vmatpush1.xpose.msra.mxu0 %v2966
        %2976 = vmatprep.subr.mxu0 0.0
        %2977 = vmatpush1.xpose.msra.mxu0 %v2968
        %2978 = vmatprep.subr.mxu0 0.0
        %2979 = vmatpush1.xpose.msra.mxu0 0.0
        %2980 = vmatprep.subr.mxu0 0.0
        %2981 = vmatpush1.xpose.msra.mxu0 0.0
        %2982 = vmatprep.subr.mxu0 0.0
        %2983 = vmatpush1.xpose.msra.mxu0 0.0
        %2984 = vmatprep.subr.mxu0 0.0
        %2985 = vmatpush1.xpose.msra.mxu0 0.0
        %2986 = vmatprep.subr.mxu0 0.0
        %2987 = vmatpush1.xpose.msra.mxu0 0.0
        %2988 = vmatprep.subr.mxu0 0.0
        %2989 = vmatpush1.xpose.msra.mxu0 0.0
        %2990 = vmatprep.subr.mxu0 0.0
        %2991 = vmatpush1.xpose.msra.mxu0 0.0
        %2992 = vmatprep.subr.mxu0 0.0
        %2993 = vmatpush1.xpose.msra.mxu0 0.0
        %2994 = vmatprep.subr.mxu0 0.0
        %2995 = vmatpush1.xpose.msra.mxu0 0.0
        %2996 = vmatprep.subr.mxu0 0.0
        %2997 = vmatpush1.xpose.msra.mxu0 0.0
        %2998 = vmatprep.subr.mxu0 0.0
        %2999 = vmatpush1.xpose.msra.mxu0 0.0
        %3000 = vmatprep.subr.mxu0 0.0
        %3001 = vmatpush1.xpose.msra.mxu0 0.0
        %3002 = vmatprep.subr.mxu0 0.0
        %3003 = vmatpush1.xpose.msra.mxu0 0.0
        %3004 = vmatprep.subr.mxu0 0.0
        %3005 = vmatpush1.xpose.msra.mxu0 0.0
        %3006 = vmatprep.subr.mxu0 0.0
        %3007 = vmatpush1.xpose.msra.mxu0 0.0
        %3008 = vmatprep.subr.mxu0 0.0
        %3009 = vmatpush1.xpose.msra.mxu0 0.0
        %3010 = vmatprep.subr.mxu0 0.0
        %3011 = vmatpush1.xpose.msra.mxu0 0.0
        %3012 = vmatprep.subr.mxu0 0.0
        %3013 = vmatpush1.xpose.msra.mxu0 0.0
        %3014 = vmatprep.subr.mxu0 0.0
        %3015 = vmatpush1.xpose.msra.mxu0 0.0
        %3016 = vmatprep.subr.mxu0 0.0
        %3017 = vmatpush1.xpose.msra.mxu0 0.0
        %3018 = vmatprep.subr.mxu0 0.0
        %3019 = vmatpush1.xpose.msra.mxu0 0.0
        %3020 = vmatprep.subr.mxu0 0.0
        %3021 = vmatpush1.xpose.msra.mxu0 0.0
        %3022 = vmatprep.subr.mxu0 0.0
        %3023 = vmatpush1.xpose.msra.mxu0 0.0
        %3024 = vmatprep.subr.mxu0 0.0
        %3025 = vmatpush1.xpose.msra.mxu0 0.0
        %3026 = vmatprep.subr.mxu0 0.0
        %3027 = vmatpush1.xpose.msra.mxu0 0.0
        %3028 = vmatprep.subr.mxu0 0.0
        %3029 = vmatpush1.xpose.msra.mxu0 0.0
        %3030 = vmatprep.subr.mxu0 0.0
        %3031 = vmatpush1.xpose.msra.mxu0 0.0
        %3032 = vmatprep.subr.mxu0 0.0
        %3033 = vmatpush1.xpose.msra.mxu0 0.0
        %3034 = vmatprep.mubr.f32.mxu0 0.0
        %3035 = vmatmul.mubr.f32.gmra.mrb[0].mxu0 %v2954
        %v3036 = vpop.f32.mrb[0].mxu0
        %v3037 = vadd.f32 %v2943, %v3036
        %v3038 = vpop.f32.mrb[0].mxu0
        %3039 = vmatprep.mubr.f32.mxu0 0.0
        %3040 = vmatmul.mubr.f32.gmra.mrb[0].mxu0 %v2956
        %v3041 = vpop.f32.mrb[0].mxu0
        %v3042 = vadd.f32 %v2945, %v3041
        %v3043 = vpop.f32.mrb[0].mxu0
        %3044 = vmatprep.mubr.f32.mxu0 0.0
        %3045 = vmatmul.mubr.f32.gmra.mrb[0].mxu0 %v2958
        %v3046 = vpop.f32.mrb[0].mxu0
        %v3047 = vadd.f32 %v2947, %v3046
        %v3048 = vpop.f32.mrb[0].mxu0
        %3049 = vmatprep.mubr.f32.mxu0 0.0
        %3050 = vmatmul.mubr.f32.gmra.mrb[0].mxu0 %v2960
        %v3051 = vpop.f32.mrb[0].mxu0
        %v3052 = vadd.f32 %v2949, %v3051
        %v3053 = vpop.f32.mrb[0].mxu0
        %3054 = vdwg.mxu0
        %v3055 = vsel %vm335, %v3037, -inf
        %3056 = vmax.xlane.f32.xlu0 %v3055
        %v3057 = vpop.xlane.xlu0 %3056
        %v3058 = vsel %vm335, %v3042, -inf
        %3059 = vmax.xlane.f32.xlu0 %v3058
        %v3060 = vpop.xlane.xlu0 %3059
        %v3061 = vsel %vm335, %v3047, -inf
        %3062 = vmax.xlane.f32.xlu0 %v3061
        %v3063 = vpop.xlane.xlu0 %3062
        %v3064 = vsel %vm335, %v3052, -inf
        %3065 = vmax.xlane.f32.xlu0 %v3064
        %v3066 = vpop.xlane.xlu0 %3065
        %v3067 = vsub.f32 %v3037, %v3057
        %v3068 = vsub.f32 %v3042, %v3060
        %v3069 = vsub.f32 %v3047, %v3063
        %v3070 = vsub.f32 %v3052, %v3066
        %v3071 = vmul.f32 %v3067, 1.442695
        %v3072 = vpow.pop %v3071
        %v3073 = vmul.f32 %v3068, 1.442695
        %v3074 = vpow.pop %v3073
        %v3075 = vmul.f32 %v3069, 1.442695
        %v3076 = vpow.pop %v3075
        %v3077 = vmul.f32 %v3070, 1.442695
        %v3078 = vpow.pop %v3077
        %v3079 = vsel %vm335, %v3072, 0.0
        %3080 = vadd.xlane.f32.xlu0 %v3079
        %v3081 = vpop.xlane.xlu0 %3080
        %v3082 = vsel %vm335, %v3074, 0.0
        %3083 = vadd.xlane.f32.xlu0 %v3082
        %v3084 = vpop.xlane.xlu0 %3083
        %v3085 = vsel %vm335, %v3076, 0.0
        %3086 = vadd.xlane.f32.xlu0 %v3085
        %v3087 = vpop.xlane.xlu0 %3086
        %v3088 = vsel %vm335, %v3078, 0.0
        %3089 = vadd.xlane.f32.xlu0 %v3088
        %v3090 = vpop.xlane.xlu0 %3089
        %v3091 = vrcp.pop %v3081
        %v3092 = vmul.f32 1.0, %v3091
        %v3093 = vrcp.pop %v3084
        %v3094 = vmul.f32 1.0, %v3093
        %v3095 = vrcp.pop %v3087
        %v3096 = vmul.f32 1.0, %v3095
        %v3097 = vrcp.pop %v3090
        %v3098 = vmul.f32 1.0, %v3097
        %v3099 = vmul.f32 %v3072, %v3092
        %v3100 = vmul.f32 %v3074, %v3094
        %v3101 = vmul.f32 %v3076, %v3096
        %v3102 = vmul.f32 %v3078, %v3098
        %3103 = vrot.lane.b32.xlu0 %v2912, 64
        %v3104 = vpop.permute.xlu0 %3103
        %3105 = vrot.lane.b32.xlu0 %v2917, 64
        %v3106 = vpop.permute.xlu0 %3105
        %3107 = vrot.lane.b32.xlu0 %v2922, 64
        %v3108 = vpop.permute.xlu0 %3107
        %3109 = vrot.lane.b32.xlu0 %v2927, 64
        %v3110 = vpop.permute.xlu0 %3109
        %v3116 = vsel %vm335, %v3099, 0
        %v3119 = vsel %vm335, %v3100, 0
        %v3122 = vsel %vm335, %v3101, 0
        %v3125 = vsel %vm335, %v3102, 0
        %3127 = vmatprep.subr.mxu0 0.0
        %3128 = vmatpush1.msra.mxu0 %v3104
        %3129 = vmatprep.subr.mxu0 0.0
        %3130 = vmatpush1.msra.mxu0 %v3106
        %3131 = vmatprep.subr.mxu0 0.0
        %3132 = vmatpush1.msra.mxu0 %v3108
        %3133 = vmatprep.subr.mxu0 0.0
        %3134 = vmatpush1.msra.mxu0 %v3110
        %3135 = vmatprep.subr.mxu0 0.0
        %3136 = vmatpush1.msra.mxu0 0.0
        %3137 = vmatprep.subr.mxu0 0.0
        %3138 = vmatpush1.msra.mxu0 0.0
        %3139 = vmatprep.subr.mxu0 0.0
        %3140 = vmatpush1.msra.mxu0 0.0
        %3141 = vmatprep.subr.mxu0 0.0
        %3142 = vmatpush1.msra.mxu0 0.0
        %3143 = vmatprep.subr.mxu0 0.0
        %3144 = vmatpush1.msra.mxu0 0.0
        %3145 = vmatprep.subr.mxu0 0.0
        %3146 = vmatpush1.msra.mxu0 0.0
        %3147 = vmatprep.subr.mxu0 0.0
        %3148 = vmatpush1.msra.mxu0 0.0
        %3149 = vmatprep.subr.mxu0 0.0
        %3150 = vmatpush1.msra.mxu0 0.0
        %3151 = vmatprep.subr.mxu0 0.0
        %3152 = vmatpush1.msra.mxu0 0.0
        %3153 = vmatprep.subr.mxu0 0.0
        %3154 = vmatpush1.msra.mxu0 0.0
        %3155 = vmatprep.subr.mxu0 0.0
        %3156 = vmatpush1.msra.mxu0 0.0
        %3157 = vmatprep.subr.mxu0 0.0
        %3158 = vmatpush1.msra.mxu0 0.0
        %3159 = vmatprep.subr.mxu0 0.0
        %3160 = vmatpush1.msra.mxu0 0.0
        %3161 = vmatprep.subr.mxu0 0.0
        %3162 = vmatpush1.msra.mxu0 0.0
        %3163 = vmatprep.subr.mxu0 0.0
        %3164 = vmatpush1.msra.mxu0 0.0
        %3165 = vmatprep.subr.mxu0 0.0
        %3166 = vmatpush1.msra.mxu0 0.0
        %3167 = vmatprep.subr.mxu0 0.0
        %3168 = vmatpush1.msra.mxu0 0.0
        %3169 = vmatprep.subr.mxu0 0.0
        %3170 = vmatpush1.msra.mxu0 0.0
        %3171 = vmatprep.subr.mxu0 0.0
        %3172 = vmatpush1.msra.mxu0 0.0
        %3173 = vmatprep.subr.mxu0 0.0
        %3174 = vmatpush1.msra.mxu0 0.0
        %3175 = vmatprep.subr.mxu0 0.0
        %3176 = vmatpush1.msra.mxu0 0.0
        %3177 = vmatprep.subr.mxu0 0.0
        %3178 = vmatpush1.msra.mxu0 0.0
        %3179 = vmatprep.subr.mxu0 0.0
        %3180 = vmatpush1.msra.mxu0 0.0
        %3181 = vmatprep.subr.mxu0 0.0
        %3182 = vmatpush1.msra.mxu0 0.0
        %3183 = vmatprep.subr.mxu0 0.0
        %3184 = vmatpush1.msra.mxu0 0.0
        %3185 = vmatprep.subr.mxu0 0.0
        %3186 = vmatpush1.msra.mxu0 0.0
        %3187 = vmatprep.subr.mxu0 0.0
        %3188 = vmatpush1.msra.mxu0 0.0
        %3189 = vmatprep.subr.mxu0 0.0
        %3190 = vmatpush1.msra.mxu0 0.0
        %3191 = vmatprep.mubr.f32.mxu0 0.0
        %3192 = vmatmul.mubr.f32.gmra.mrb[0].mxu0 %v3116
        %v3193 = vpop.f32.mrb[0].mxu0
        %v3194 = vadd.f32 0.0, %v3193
        %v3195 = vpop.f32.mrb[0].mxu0
        %3196 = vmatprep.mubr.f32.mxu0 0.0
        %3197 = vmatmul.mubr.f32.gmra.mrb[0].mxu0 %v3119
        %v3198 = vpop.f32.mrb[0].mxu0
        %v3199 = vadd.f32 0.0, %v3198
        %v3200 = vpop.f32.mrb[0].mxu0
        %3201 = vmatprep.mubr.f32.mxu0 0.0
        %3202 = vmatmul.mubr.f32.gmra.mrb[0].mxu0 %v3122
        %v3203 = vpop.f32.mrb[0].mxu0
        %v3204 = vadd.f32 0.0, %v3203
        %v3205 = vpop.f32.mrb[0].mxu0
        %3206 = vmatprep.mubr.f32.mxu0 0.0
        %3207 = vmatmul.mubr.f32.gmra.mrb[0].mxu0 %v3125
        %v3208 = vpop.f32.mrb[0].mxu0
        %v3209 = vadd.f32 0.0, %v3208
        %v3210 = vpop.f32.mrb[0].mxu0
        %3211 = vdwg.mxu0
        %3212 = vrot.lane.b32.xlu0 %v2912, 120
        %v3213 = vpop.permute.xlu0 %3212
        %3214 = vrot.lane.b32.xlu0 %v2917, 120
        %v3215 = vpop.permute.xlu0 %3214
        %3216 = vrot.lane.b32.xlu0 %v2922, 120
        %v3217 = vpop.permute.xlu0 %3216
        %3218 = vrot.lane.b32.xlu0 %v2927, 120
        %v3219 = vpop.permute.xlu0 %3218
        %3220 = vrot.lane.b32.xlu0 %v2912, 88
        %v3221 = vpop.permute.xlu0 %3220
        %3222 = vrot.lane.b32.xlu0 %v2917, 88
        %v3223 = vpop.permute.xlu0 %3222
        %3224 = vrot.lane.b32.xlu0 %v2922, 88
        %v3225 = vpop.permute.xlu0 %3224
        %3226 = vrot.lane.b32.xlu0 %v2927, 88
        %v3227 = vpop.permute.xlu0 %3226
        %v3228 = vsel %vm1501, %v3213, 0
        %v3230 = vsel %vm1501, %v3215, 0
        %v3232 = vsel %vm1501, %v3217, 0
        %v3234 = vsel %vm1501, %v3219, 0
        %v3236 = vsel %vm1501, %v3221, 0
        %v3238 = vsel %vm1501, %v3223, 0
        %v3240 = vsel %vm1501, %v3225, 0
        %v3242 = vsel %vm1501, %v3227, 0
        %3244 = vmatprep.subr.mxu0 0.0
        %3245 = vmatpush1.xpose.msra.mxu0 %v3236
        %3246 = vmatprep.subr.mxu0 0.0
        %3247 = vmatpush1.xpose.msra.mxu0 %v3238
        %3248 = vmatprep.subr.mxu0 0.0
        %3249 = vmatpush1.xpose.msra.mxu0 %v3240
        %3250 = vmatprep.subr.mxu0 0.0
        %3251 = vmatpush1.xpose.msra.mxu0 %v3242
        %3252 = vmatprep.subr.mxu0 0.0
        %3253 = vmatpush1.xpose.msra.mxu0 0.0
        %3254 = vmatprep.subr.mxu0 0.0
        %3255 = vmatpush1.xpose.msra.mxu0 0.0
        %3256 = vmatprep.subr.mxu0 0.0
        %3257 = vmatpush1.xpose.msra.mxu0 0.0
        %3258 = vmatprep.subr.mxu0 0.0
        %3259 = vmatpush1.xpose.msra.mxu0 0.0
        %3260 = vmatprep.subr.mxu0 0.0
        %3261 = vmatpush1.xpose.msra.mxu0 0.0
        %3262 = vmatprep.subr.mxu0 0.0
        %3263 = vmatpush1.xpose.msra.mxu0 0.0
        %3264 = vmatprep.subr.mxu0 0.0
        %3265 = vmatpush1.xpose.msra.mxu0 0.0
        %3266 = vmatprep.subr.mxu0 0.0
        %3267 = vmatpush1.xpose.msra.mxu0 0.0
        %3268 = vmatprep.subr.mxu0 0.0
        %3269 = vmatpush1.xpose.msra.mxu0 0.0
        %3270 = vmatprep.subr.mxu0 0.0
        %3271 = vmatpush1.xpose.msra.mxu0 0.0
        %3272 = vmatprep.subr.mxu0 0.0
        %3273 = vmatpush1.xpose.msra.mxu0 0.0
        %3274 = vmatprep.subr.mxu0 0.0
        %3275 = vmatpush1.xpose.msra.mxu0 0.0
        %3276 = vmatprep.subr.mxu0 0.0
        %3277 = vmatpush1.xpose.msra.mxu0 0.0
        %3278 = vmatprep.subr.mxu0 0.0
        %3279 = vmatpush1.xpose.msra.mxu0 0.0
        %3280 = vmatprep.subr.mxu0 0.0
        %3281 = vmatpush1.xpose.msra.mxu0 0.0
        %3282 = vmatprep.subr.mxu0 0.0
        %3283 = vmatpush1.xpose.msra.mxu0 0.0
        %3284 = vmatprep.subr.mxu0 0.0
        %3285 = vmatpush1.xpose.msra.mxu0 0.0
        %3286 = vmatprep.subr.mxu0 0.0
        %3287 = vmatpush1.xpose.msra.mxu0 0.0
        %3288 = vmatprep.subr.mxu0 0.0
        %3289 = vmatpush1.xpose.msra.mxu0 0.0
        %3290 = vmatprep.subr.mxu0 0.0
        %3291 = vmatpush1.xpose.msra.mxu0 0.0
        %3292 = vmatprep.subr.mxu0 0.0
        %3293 = vmatpush1.xpose.msra.mxu0 0.0
        %3294 = vmatprep.subr.mxu0 0.0
        %3295 = vmatpush1.xpose.msra.mxu0 0.0
        %3296 = vmatprep.subr.mxu0 0.0
        %3297 = vmatpush1.xpose.msra.mxu0 0.0
        %3298 = vmatprep.subr.mxu0 0.0
        %3299 = vmatpush1.xpose.msra.mxu0 0.0
        %3300 = vmatprep.subr.mxu0 0.0
        %3301 = vmatpush1.xpose.msra.mxu0 0.0
        %3302 = vmatprep.subr.mxu0 0.0
        %3303 = vmatpush1.xpose.msra.mxu0 0.0
        %3304 = vmatprep.subr.mxu0 0.0
        %3305 = vmatpush1.xpose.msra.mxu0 0.0
        %3306 = vmatprep.subr.mxu0 0.0
        %3307 = vmatpush1.xpose.msra.mxu0 0.0
        %3308 = vmatprep.mubr.f32.mxu0 0.0
        %3309 = vmatmul.mubr.f32.gmra.mrb[0].mxu0 %v3228
        %v3310 = vpop.f32.mrb[0].mxu0
        %v3311 = vadd.f32 %v2943, %v3310
        %v3312 = vpop.f32.mrb[0].mxu0
        %3313 = vmatprep.mubr.f32.mxu0 0.0
        %3314 = vmatmul.mubr.f32.gmra.mrb[0].mxu0 %v3230
        %v3315 = vpop.f32.mrb[0].mxu0
        %v3316 = vadd.f32 %v2945, %v3315
        %v3317 = vpop.f32.mrb[0].mxu0
        %3318 = vmatprep.mubr.f32.mxu0 0.0
        %3319 = vmatmul.mubr.f32.gmra.mrb[0].mxu0 %v3232
        %v3320 = vpop.f32.mrb[0].mxu0
        %v3321 = vadd.f32 %v2947, %v3320
        %v3322 = vpop.f32.mrb[0].mxu0
        %3323 = vmatprep.mubr.f32.mxu0 0.0
        %3324 = vmatmul.mubr.f32.gmra.mrb[0].mxu0 %v3234
        %v3325 = vpop.f32.mrb[0].mxu0
        %v3326 = vadd.f32 %v2949, %v3325
        %v3327 = vpop.f32.mrb[0].mxu0
        %3328 = vdwg.mxu0
        %v3329 = vsel %vm335, %v3311, -inf
        %3330 = vmax.xlane.f32.xlu0 %v3329
        %v3331 = vpop.xlane.xlu0 %3330
        %v3332 = vsel %vm335, %v3316, -inf
        %3333 = vmax.xlane.f32.xlu0 %v3332
        %v3334 = vpop.xlane.xlu0 %3333
        %v3335 = vsel %vm335, %v3321, -inf
        %3336 = vmax.xlane.f32.xlu0 %v3335
        %v3337 = vpop.xlane.xlu0 %3336
        %v3338 = vsel %vm335, %v3326, -inf
        %3339 = vmax.xlane.f32.xlu0 %v3338
        %v3340 = vpop.xlane.xlu0 %3339
        %v3341 = vsub.f32 %v3311, %v3331
        %v3342 = vsub.f32 %v3316, %v3334
        %v3343 = vsub.f32 %v3321, %v3337
        %v3344 = vsub.f32 %v3326, %v3340
        %v3345 = vmul.f32 %v3341, 1.442695
        %v3346 = vpow.pop %v3345
        %v3347 = vmul.f32 %v3342, 1.442695
        %v3348 = vpow.pop %v3347
        %v3349 = vmul.f32 %v3343, 1.442695
        %v3350 = vpow.pop %v3349
        %v3351 = vmul.f32 %v3344, 1.442695
        %v3352 = vpow.pop %v3351
        %v3353 = vsel %vm335, %v3346, 0.0
        %3354 = vadd.xlane.f32.xlu0 %v3353
        %v3355 = vpop.xlane.xlu0 %3354
        %v3356 = vsel %vm335, %v3348, 0.0
        %3357 = vadd.xlane.f32.xlu0 %v3356
        %v3358 = vpop.xlane.xlu0 %3357
        %v3359 = vsel %vm335, %v3350, 0.0
        %3360 = vadd.xlane.f32.xlu0 %v3359
        %v3361 = vpop.xlane.xlu0 %3360
        %v3362 = vsel %vm335, %v3352, 0.0
        %3363 = vadd.xlane.f32.xlu0 %v3362
        %v3364 = vpop.xlane.xlu0 %3363
        %v3365 = vrcp.pop %v3355
        %v3366 = vmul.f32 1.0, %v3365
        %v3367 = vrcp.pop %v3358
        %v3368 = vmul.f32 1.0, %v3367
        %v3369 = vrcp.pop %v3361
        %v3370 = vmul.f32 1.0, %v3369
        %v3371 = vrcp.pop %v3364
        %v3372 = vmul.f32 1.0, %v3371
        %v3373 = vmul.f32 %v3346, %v3366
        %v3374 = vmul.f32 %v3348, %v3368
        %v3375 = vmul.f32 %v3350, %v3370
        %v3376 = vmul.f32 %v3352, %v3372
        %3377 = vrot.lane.b32.xlu0 %v2912, 56
        %v3378 = vpop.permute.xlu0 %3377
        %3379 = vrot.lane.b32.xlu0 %v2917, 56
        %v3380 = vpop.permute.xlu0 %3379
        %3381 = vrot.lane.b32.xlu0 %v2922, 56
        %v3382 = vpop.permute.xlu0 %3381
        %3383 = vrot.lane.b32.xlu0 %v2927, 56
        %v3384 = vpop.permute.xlu0 %3383
        %v3390 = vsel %vm335, %v3373, 0
        %v3393 = vsel %vm335, %v3374, 0
        %v3396 = vsel %vm335, %v3375, 0
        %v3399 = vsel %vm335, %v3376, 0
        %3401 = vmatprep.subr.mxu0 0.0
        %3402 = vmatpush1.msra.mxu0 %v3378
        %3403 = vmatprep.subr.mxu0 0.0
        %3404 = vmatpush1.msra.mxu0 %v3380
        %3405 = vmatprep.subr.mxu0 0.0
        %3406 = vmatpush1.msra.mxu0 %v3382
        %3407 = vmatprep.subr.mxu0 0.0
        %3408 = vmatpush1.msra.mxu0 %v3384
        %3409 = vmatprep.subr.mxu0 0.0
        %3410 = vmatpush1.msra.mxu0 0.0
        %3411 = vmatprep.subr.mxu0 0.0
        %3412 = vmatpush1.msra.mxu0 0.0
        %3413 = vmatprep.subr.mxu0 0.0
        %3414 = vmatpush1.msra.mxu0 0.0
        %3415 = vmatprep.subr.mxu0 0.0
        %3416 = vmatpush1.msra.mxu0 0.0
        %3417 = vmatprep.subr.mxu0 0.0
        %3418 = vmatpush1.msra.mxu0 0.0
        %3419 = vmatprep.subr.mxu0 0.0
        %3420 = vmatpush1.msra.mxu0 0.0
        %3421 = vmatprep.subr.mxu0 0.0
        %3422 = vmatpush1.msra.mxu0 0.0
        %3423 = vmatprep.subr.mxu0 0.0
        %3424 = vmatpush1.msra.mxu0 0.0
        %3425 = vmatprep.subr.mxu0 0.0
        %3426 = vmatpush1.msra.mxu0 0.0
        %3427 = vmatprep.subr.mxu0 0.0
        %3428 = vmatpush1.msra.mxu0 0.0
        %3429 = vmatprep.subr.mxu0 0.0
        %3430 = vmatpush1.msra.mxu0 0.0
        %3431 = vmatprep.subr.mxu0 0.0
        %3432 = vmatpush1.msra.mxu0 0.0
        %3433 = vmatprep.subr.mxu0 0.0
        %3434 = vmatpush1.msra.mxu0 0.0
        %3435 = vmatprep.subr.mxu0 0.0
        %3436 = vmatpush1.msra.mxu0 0.0
        %3437 = vmatprep.subr.mxu0 0.0
        %3438 = vmatpush1.msra.mxu0 0.0
        %3439 = vmatprep.subr.mxu0 0.0
        %3440 = vmatpush1.msra.mxu0 0.0
        %3441 = vmatprep.subr.mxu0 0.0
        %3442 = vmatpush1.msra.mxu0 0.0
        %3443 = vmatprep.subr.mxu0 0.0
        %3444 = vmatpush1.msra.mxu0 0.0
        %3445 = vmatprep.subr.mxu0 0.0
        %3446 = vmatpush1.msra.mxu0 0.0
        %3447 = vmatprep.subr.mxu0 0.0
        %3448 = vmatpush1.msra.mxu0 0.0
        %3449 = vmatprep.subr.mxu0 0.0
        %3450 = vmatpush1.msra.mxu0 0.0
        %3451 = vmatprep.subr.mxu0 0.0
        %3452 = vmatpush1.msra.mxu0 0.0
        %3453 = vmatprep.subr.mxu0 0.0
        %3454 = vmatpush1.msra.mxu0 0.0
        %3455 = vmatprep.subr.mxu0 0.0
        %3456 = vmatpush1.msra.mxu0 0.0
        %3457 = vmatprep.subr.mxu0 0.0
        %3458 = vmatpush1.msra.mxu0 0.0
        %3459 = vmatprep.subr.mxu0 0.0
        %3460 = vmatpush1.msra.mxu0 0.0
        %3461 = vmatprep.subr.mxu0 0.0
        %3462 = vmatpush1.msra.mxu0 0.0
        %3463 = vmatprep.subr.mxu0 0.0
        %3464 = vmatpush1.msra.mxu0 0.0
        %3465 = vmatprep.mubr.f32.mxu0 0.0
        %3466 = vmatmul.mubr.f32.gmra.mrb[0].mxu0 %v3390
        %v3467 = vpop.f32.mrb[0].mxu0
        %v3468 = vadd.f32 0.0, %v3467
        %v3469 = vpop.f32.mrb[0].mxu0
        %3470 = vmatprep.mubr.f32.mxu0 0.0
        %3471 = vmatmul.mubr.f32.gmra.mrb[0].mxu0 %v3393
        %v3472 = vpop.f32.mrb[0].mxu0
        %v3473 = vadd.f32 0.0, %v3472
        %v3474 = vpop.f32.mrb[0].mxu0
        %3475 = vmatprep.mubr.f32.mxu0 0.0
        %3476 = vmatmul.mubr.f32.gmra.mrb[0].mxu0 %v3396
        %v3477 = vpop.f32.mrb[0].mxu0
        %v3478 = vadd.f32 0.0, %v3477
        %v3479 = vpop.f32.mrb[0].mxu0
        %3480 = vmatprep.mubr.f32.mxu0 0.0
        %3481 = vmatmul.mubr.f32.gmra.mrb[0].mxu0 %v3399
        %v3482 = vpop.f32.mrb[0].mxu0
        %v3483 = vadd.f32 0.0, %v3482
        %v3484 = vpop.f32.mrb[0].mxu0
        %3485 = vdwg.mxu0
        %3486 = vrot.lane.b32.xlu0 %v2912, 112
        %v3487 = vpop.permute.xlu0 %3486
        %3488 = vrot.lane.b32.xlu0 %v2917, 112
        %v3489 = vpop.permute.xlu0 %3488
        %3490 = vrot.lane.b32.xlu0 %v2922, 112
        %v3491 = vpop.permute.xlu0 %3490
        %3492 = vrot.lane.b32.xlu0 %v2927, 112
        %v3493 = vpop.permute.xlu0 %3492
        %3494 = vrot.lane.b32.xlu0 %v2912, 80
        %v3495 = vpop.permute.xlu0 %3494
        %3496 = vrot.lane.b32.xlu0 %v2917, 80
        %v3497 = vpop.permute.xlu0 %3496
        %3498 = vrot.lane.b32.xlu0 %v2922, 80
        %v3499 = vpop.permute.xlu0 %3498
        %3500 = vrot.lane.b32.xlu0 %v2927, 80
        %v3501 = vpop.permute.xlu0 %3500
        %v3502 = vsel %vm1501, %v3487, 0
        %v3504 = vsel %vm1501, %v3489, 0
        %v3506 = vsel %vm1501, %v3491, 0
        %v3508 = vsel %vm1501, %v3493, 0
        %v3510 = vsel %vm1501, %v3495, 0
        %v3512 = vsel %vm1501, %v3497, 0
        %v3514 = vsel %vm1501, %v3499, 0
        %v3516 = vsel %vm1501, %v3501, 0
        %3518 = vmatprep.subr.mxu0 0.0
        %3519 = vmatpush1.xpose.msra.mxu0 %v3510
        %3520 = vmatprep.subr.mxu0 0.0
        %3521 = vmatpush1.xpose.msra.mxu0 %v3512
        %3522 = vmatprep.subr.mxu0 0.0
        %3523 = vmatpush1.xpose.msra.mxu0 %v3514
        %3524 = vmatprep.subr.mxu0 0.0
        %3525 = vmatpush1.xpose.msra.mxu0 %v3516
        %3526 = vmatprep.subr.mxu0 0.0
        %3527 = vmatpush1.xpose.msra.mxu0 0.0
        %3528 = vmatprep.subr.mxu0 0.0
        %3529 = vmatpush1.xpose.msra.mxu0 0.0
        %3530 = vmatprep.subr.mxu0 0.0
        %3531 = vmatpush1.xpose.msra.mxu0 0.0
        %3532 = vmatprep.subr.mxu0 0.0
        %3533 = vmatpush1.xpose.msra.mxu0 0.0
        %3534 = vmatprep.subr.mxu0 0.0
        %3535 = vmatpush1.xpose.msra.mxu0 0.0
        %3536 = vmatprep.subr.mxu0 0.0
        %3537 = vmatpush1.xpose.msra.mxu0 0.0
        %3538 = vmatprep.subr.mxu0 0.0
        %3539 = vmatpush1.xpose.msra.mxu0 0.0
        %3540 = vmatprep.subr.mxu0 0.0
        %3541 = vmatpush1.xpose.msra.mxu0 0.0
        %3542 = vmatprep.subr.mxu0 0.0
        %3543 = vmatpush1.xpose.msra.mxu0 0.0
        %3544 = vmatprep.subr.mxu0 0.0
        %3545 = vmatpush1.xpose.msra.mxu0 0.0
        %3546 = vmatprep.subr.mxu0 0.0
        %3547 = vmatpush1.xpose.msra.mxu0 0.0
        %3548 = vmatprep.subr.mxu0 0.0
        %3549 = vmatpush1.xpose.msra.mxu0 0.0
        %3550 = vmatprep.subr.mxu0 0.0
        %3551 = vmatpush1.xpose.msra.mxu0 0.0
        %3552 = vmatprep.subr.mxu0 0.0
        %3553 = vmatpush1.xpose.msra.mxu0 0.0
        %3554 = vmatprep.subr.mxu0 0.0
        %3555 = vmatpush1.xpose.msra.mxu0 0.0
        %3556 = vmatprep.subr.mxu0 0.0
        %3557 = vmatpush1.xpose.msra.mxu0 0.0
        %3558 = vmatprep.subr.mxu0 0.0
        %3559 = vmatpush1.xpose.msra.mxu0 0.0
        %3560 = vmatprep.subr.mxu0 0.0
        %3561 = vmatpush1.xpose.msra.mxu0 0.0
        %3562 = vmatprep.subr.mxu0 0.0
        %3563 = vmatpush1.xpose.msra.mxu0 0.0
        %3564 = vmatprep.subr.mxu0 0.0
        %3565 = vmatpush1.xpose.msra.mxu0 0.0
        %3566 = vmatprep.subr.mxu0 0.0
        %3567 = vmatpush1.xpose.msra.mxu0 0.0
        %3568 = vmatprep.subr.mxu0 0.0
        %3569 = vmatpush1.xpose.msra.mxu0 0.0
        %3570 = vmatprep.subr.mxu0 0.0
        %3571 = vmatpush1.xpose.msra.mxu0 0.0
        %3572 = vmatprep.subr.mxu0 0.0
        %3573 = vmatpush1.xpose.msra.mxu0 0.0
        %3574 = vmatprep.subr.mxu0 0.0
        %3575 = vmatpush1.xpose.msra.mxu0 0.0
        %3576 = vmatprep.subr.mxu0 0.0
        %3577 = vmatpush1.xpose.msra.mxu0 0.0
        %3578 = vmatprep.subr.mxu0 0.0
        %3579 = vmatpush1.xpose.msra.mxu0 0.0
        %3580 = vmatprep.subr.mxu0 0.0
        %3581 = vmatpush1.xpose.msra.mxu0 0.0
        %3582 = vmatprep.mubr.f32.mxu0 0.0
        %3583 = vmatmul.mubr.f32.gmra.mrb[0].mxu0 %v3502
        %v3584 = vpop.f32.mrb[0].mxu0
        %v3585 = vadd.f32 %v2943, %v3584
        %v3586 = vpop.f32.mrb[0].mxu0
        %3587 = vmatprep.mubr.f32.mxu0 0.0
        %3588 = vmatmul.mubr.f32.gmra.mrb[0].mxu0 %v3504
        %v3589 = vpop.f32.mrb[0].mxu0
        %v3590 = vadd.f32 %v2945, %v3589
        %v3591 = vpop.f32.mrb[0].mxu0
        %3592 = vmatprep.mubr.f32.mxu0 0.0
        %3593 = vmatmul.mubr.f32.gmra.mrb[0].mxu0 %v3506
        %v3594 = vpop.f32.mrb[0].mxu0
        %v3595 = vadd.f32 %v2947, %v3594
        %v3596 = vpop.f32.mrb[0].mxu0
        %3597 = vmatprep.mubr.f32.mxu0 0.0
        %3598 = vmatmul.mubr.f32.gmra.mrb[0].mxu0 %v3508
        %v3599 = vpop.f32.mrb[0].mxu0
        %v3600 = vadd.f32 %v2949, %v3599
        %v3601 = vpop.f32.mrb[0].mxu0
        %3602 = vdwg.mxu0
        %v3603 = vsel %vm335, %v3585, -inf
        %3604 = vmax.xlane.f32.xlu0 %v3603
        %v3605 = vpop.xlane.xlu0 %3604
        %v3606 = vsel %vm335, %v3590, -inf
        %3607 = vmax.xlane.f32.xlu0 %v3606
        %v3608 = vpop.xlane.xlu0 %3607
        %v3609 = vsel %vm335, %v3595, -inf
        %3610 = vmax.xlane.f32.xlu0 %v3609
        %v3611 = vpop.xlane.xlu0 %3610
        %v3612 = vsel %vm335, %v3600, -inf
        %3613 = vmax.xlane.f32.xlu0 %v3612
        %v3614 = vpop.xlane.xlu0 %3613
        %v3615 = vsub.f32 %v3585, %v3605
        %v3616 = vsub.f32 %v3590, %v3608
        %v3617 = vsub.f32 %v3595, %v3611
        %v3618 = vsub.f32 %v3600, %v3614
        %v3619 = vmul.f32 %v3615, 1.442695
        %v3620 = vpow.pop %v3619
        %v3621 = vmul.f32 %v3616, 1.442695
        %v3622 = vpow.pop %v3621
        %v3623 = vmul.f32 %v3617, 1.442695
        %v3624 = vpow.pop %v3623
        %v3625 = vmul.f32 %v3618, 1.442695
        %v3626 = vpow.pop %v3625
        %v3627 = vsel %vm335, %v3620, 0.0
        %3628 = vadd.xlane.f32.xlu0 %v3627
        %v3629 = vpop.xlane.xlu0 %3628
        %v3630 = vsel %vm335, %v3622, 0.0
        %3631 = vadd.xlane.f32.xlu0 %v3630
        %v3632 = vpop.xlane.xlu0 %3631
        %v3633 = vsel %vm335, %v3624, 0.0
        %3634 = vadd.xlane.f32.xlu0 %v3633
        %v3635 = vpop.xlane.xlu0 %3634
        %v3636 = vsel %vm335, %v3626, 0.0
        %3637 = vadd.xlane.f32.xlu0 %v3636
        %v3638 = vpop.xlane.xlu0 %3637
        %v3639 = vrcp.pop %v3629
        %v3640 = vmul.f32 1.0, %v3639
        %v3641 = vrcp.pop %v3632
        %v3642 = vmul.f32 1.0, %v3641
        %v3643 = vrcp.pop %v3635
        %v3644 = vmul.f32 1.0, %v3643
        %v3645 = vrcp.pop %v3638
        %v3646 = vmul.f32 1.0, %v3645
        %v3647 = vmul.f32 %v3620, %v3640
        %v3648 = vmul.f32 %v3622, %v3642
        %v3649 = vmul.f32 %v3624, %v3644
        %v3650 = vmul.f32 %v3626, %v3646
        %3651 = vrot.lane.b32.xlu0 %v2912, 48
        %v3652 = vpop.permute.xlu0 %3651
        %3653 = vrot.lane.b32.xlu0 %v2917, 48
        %v3654 = vpop.permute.xlu0 %3653
        %3655 = vrot.lane.b32.xlu0 %v2922, 48
        %v3656 = vpop.permute.xlu0 %3655
        %3657 = vrot.lane.b32.xlu0 %v2927, 48
        %v3658 = vpop.permute.xlu0 %3657
        %v3664 = vsel %vm335, %v3647, 0
        %v3667 = vsel %vm335, %v3648, 0
        %v3670 = vsel %vm335, %v3649, 0
        %v3673 = vsel %vm335, %v3650, 0
        %3675 = vmatprep.subr.mxu0 0.0
        %3676 = vmatpush1.msra.mxu0 %v3652
        %3677 = vmatprep.subr.mxu0 0.0
        %3678 = vmatpush1.msra.mxu0 %v3654
        %3679 = vmatprep.subr.mxu0 0.0
        %3680 = vmatpush1.msra.mxu0 %v3656
        %3681 = vmatprep.subr.mxu0 0.0
        %3682 = vmatpush1.msra.mxu0 %v3658
        %3683 = vmatprep.subr.mxu0 0.0
        %3684 = vmatpush1.msra.mxu0 0.0
        %3685 = vmatprep.subr.mxu0 0.0
        %3686 = vmatpush1.msra.mxu0 0.0
        %3687 = vmatprep.subr.mxu0 0.0
        %3688 = vmatpush1.msra.mxu0 0.0
        %3689 = vmatprep.subr.mxu0 0.0
        %3690 = vmatpush1.msra.mxu0 0.0
        %3691 = vmatprep.subr.mxu0 0.0
        %3692 = vmatpush1.msra.mxu0 0.0
        %3693 = vmatprep.subr.mxu0 0.0
        %3694 = vmatpush1.msra.mxu0 0.0
        %3695 = vmatprep.subr.mxu0 0.0
        %3696 = vmatpush1.msra.mxu0 0.0
        %3697 = vmatprep.subr.mxu0 0.0
        %3698 = vmatpush1.msra.mxu0 0.0
        %3699 = vmatprep.subr.mxu0 0.0
        %3700 = vmatpush1.msra.mxu0 0.0
        %3701 = vmatprep.subr.mxu0 0.0
        %3702 = vmatpush1.msra.mxu0 0.0
        %3703 = vmatprep.subr.mxu0 0.0
        %3704 = vmatpush1.msra.mxu0 0.0
        %3705 = vmatprep.subr.mxu0 0.0
        %3706 = vmatpush1.msra.mxu0 0.0
        %3707 = vmatprep.subr.mxu0 0.0
        %3708 = vmatpush1.msra.mxu0 0.0
        %3709 = vmatprep.subr.mxu0 0.0
        %3710 = vmatpush1.msra.mxu0 0.0
        %3711 = vmatprep.subr.mxu0 0.0
        %3712 = vmatpush1.msra.mxu0 0.0
        %3713 = vmatprep.subr.mxu0 0.0
        %3714 = vmatpush1.msra.mxu0 0.0
        %3715 = vmatprep.subr.mxu0 0.0
        %3716 = vmatpush1.msra.mxu0 0.0
        %3717 = vmatprep.subr.mxu0 0.0
        %3718 = vmatpush1.msra.mxu0 0.0
        %3719 = vmatprep.subr.mxu0 0.0
        %3720 = vmatpush1.msra.mxu0 0.0
        %3721 = vmatprep.subr.mxu0 0.0
        %3722 = vmatpush1.msra.mxu0 0.0
        %3723 = vmatprep.subr.mxu0 0.0
        %3724 = vmatpush1.msra.mxu0 0.0
        %3725 = vmatprep.subr.mxu0 0.0
        %3726 = vmatpush1.msra.mxu0 0.0
        %3727 = vmatprep.subr.mxu0 0.0
        %3728 = vmatpush1.msra.mxu0 0.0
        %3729 = vmatprep.subr.mxu0 0.0
        %3730 = vmatpush1.msra.mxu0 0.0
        %3731 = vmatprep.subr.mxu0 0.0
        %3732 = vmatpush1.msra.mxu0 0.0
        %3733 = vmatprep.subr.mxu0 0.0
        %3734 = vmatpush1.msra.mxu0 0.0
        %3735 = vmatprep.subr.mxu0 0.0
        %3736 = vmatpush1.msra.mxu0 0.0
        %3737 = vmatprep.subr.mxu0 0.0
        %3738 = vmatpush1.msra.mxu0 0.0
        %3739 = vmatprep.mubr.f32.mxu0 0.0
        %3740 = vmatmul.mubr.f32.gmra.mrb[0].mxu0 %v3664
        %v3741 = vpop.f32.mrb[0].mxu0
        %v3742 = vadd.f32 0.0, %v3741
        %v3743 = vpop.f32.mrb[0].mxu0
        %3744 = vmatprep.mubr.f32.mxu0 0.0
        %3745 = vmatmul.mubr.f32.gmra.mrb[0].mxu0 %v3667
        %v3746 = vpop.f32.mrb[0].mxu0
        %v3747 = vadd.f32 0.0, %v3746
        %v3748 = vpop.f32.mrb[0].mxu0
        %3749 = vmatprep.mubr.f32.mxu0 0.0
        %3750 = vmatmul.mubr.f32.gmra.mrb[0].mxu0 %v3670
        %v3751 = vpop.f32.mrb[0].mxu0
        %v3752 = vadd.f32 0.0, %v3751
        %v3753 = vpop.f32.mrb[0].mxu0
        %3754 = vmatprep.mubr.f32.mxu0 0.0
        %3755 = vmatmul.mubr.f32.gmra.mrb[0].mxu0 %v3673
        %v3756 = vpop.f32.mrb[0].mxu0
        %v3757 = vadd.f32 0.0, %v3756
        %v3758 = vpop.f32.mrb[0].mxu0
        %3759 = vdwg.mxu0
        %3760 = vrot.lane.b32.xlu0 %v2912, 104
        %v3761 = vpop.permute.xlu0 %3760
        %3762 = vrot.lane.b32.xlu0 %v2917, 104
        %v3763 = vpop.permute.xlu0 %3762
        %3764 = vrot.lane.b32.xlu0 %v2922, 104
        %v3765 = vpop.permute.xlu0 %3764
        %3766 = vrot.lane.b32.xlu0 %v2927, 104
        %v3767 = vpop.permute.xlu0 %3766
        %3768 = vrot.lane.b32.xlu0 %v2912, 72
        %v3769 = vpop.permute.xlu0 %3768
        %3770 = vrot.lane.b32.xlu0 %v2917, 72
        %v3771 = vpop.permute.xlu0 %3770
        %3772 = vrot.lane.b32.xlu0 %v2922, 72
        %v3773 = vpop.permute.xlu0 %3772
        %3774 = vrot.lane.b32.xlu0 %v2927, 72
        %v3775 = vpop.permute.xlu0 %3774
        %v3776 = vsel %vm1501, %v3761, 0
        %v3778 = vsel %vm1501, %v3763, 0
        %v3780 = vsel %vm1501, %v3765, 0
        %v3782 = vsel %vm1501, %v3767, 0
        %v3784 = vsel %vm1501, %v3769, 0
        %v3786 = vsel %vm1501, %v3771, 0
        %v3788 = vsel %vm1501, %v3773, 0
        %v3790 = vsel %vm1501, %v3775, 0
        %3792 = vmatprep.subr.mxu0 0.0
        %3793 = vmatpush1.xpose.msra.mxu0 %v3784
        %3794 = vmatprep.subr.mxu0 0.0
        %3795 = vmatpush1.xpose.msra.mxu0 %v3786
        %3796 = vmatprep.subr.mxu0 0.0
        %3797 = vmatpush1.xpose.msra.mxu0 %v3788
        %3798 = vmatprep.subr.mxu0 0.0
        %3799 = vmatpush1.xpose.msra.mxu0 %v3790
        %3800 = vmatprep.subr.mxu0 0.0
        %3801 = vmatpush1.xpose.msra.mxu0 0.0
        %3802 = vmatprep.subr.mxu0 0.0
        %3803 = vmatpush1.xpose.msra.mxu0 0.0
        %3804 = vmatprep.subr.mxu0 0.0
        %3805 = vmatpush1.xpose.msra.mxu0 0.0
        %3806 = vmatprep.subr.mxu0 0.0
        %3807 = vmatpush1.xpose.msra.mxu0 0.0
        %3808 = vmatprep.subr.mxu0 0.0
        %3809 = vmatpush1.xpose.msra.mxu0 0.0
        %3810 = vmatprep.subr.mxu0 0.0
        %3811 = vmatpush1.xpose.msra.mxu0 0.0
        %3812 = vmatprep.subr.mxu0 0.0
        %3813 = vmatpush1.xpose.msra.mxu0 0.0
        %3814 = vmatprep.subr.mxu0 0.0
        %3815 = vmatpush1.xpose.msra.mxu0 0.0
        %3816 = vmatprep.subr.mxu0 0.0
        %3817 = vmatpush1.xpose.msra.mxu0 0.0
        %3818 = vmatprep.subr.mxu0 0.0
        %3819 = vmatpush1.xpose.msra.mxu0 0.0
        %3820 = vmatprep.subr.mxu0 0.0
        %3821 = vmatpush1.xpose.msra.mxu0 0.0
        %3822 = vmatprep.subr.mxu0 0.0
        %3823 = vmatpush1.xpose.msra.mxu0 0.0
        %3824 = vmatprep.subr.mxu0 0.0
        %3825 = vmatpush1.xpose.msra.mxu0 0.0
        %3826 = vmatprep.subr.mxu0 0.0
        %3827 = vmatpush1.xpose.msra.mxu0 0.0
        %3828 = vmatprep.subr.mxu0 0.0
        %3829 = vmatpush1.xpose.msra.mxu0 0.0
        %3830 = vmatprep.subr.mxu0 0.0
        %3831 = vmatpush1.xpose.msra.mxu0 0.0
        %3832 = vmatprep.subr.mxu0 0.0
        %3833 = vmatpush1.xpose.msra.mxu0 0.0
        %3834 = vmatprep.subr.mxu0 0.0
        %3835 = vmatpush1.xpose.msra.mxu0 0.0
        %3836 = vmatprep.subr.mxu0 0.0
        %3837 = vmatpush1.xpose.msra.mxu0 0.0
        %3838 = vmatprep.subr.mxu0 0.0
        %3839 = vmatpush1.xpose.msra.mxu0 0.0
        %3840 = vmatprep.subr.mxu0 0.0
        %3841 = vmatpush1.xpose.msra.mxu0 0.0
        %3842 = vmatprep.subr.mxu0 0.0
        %3843 = vmatpush1.xpose.msra.mxu0 0.0
        %3844 = vmatprep.subr.mxu0 0.0
        %3845 = vmatpush1.xpose.msra.mxu0 0.0
        %3846 = vmatprep.subr.mxu0 0.0
        %3847 = vmatpush1.xpose.msra.mxu0 0.0
        %3848 = vmatprep.subr.mxu0 0.0
        %3849 = vmatpush1.xpose.msra.mxu0 0.0
        %3850 = vmatprep.subr.mxu0 0.0
        %3851 = vmatpush1.xpose.msra.mxu0 0.0
        %3852 = vmatprep.subr.mxu0 0.0
        %3853 = vmatpush1.xpose.msra.mxu0 0.0
        %3854 = vmatprep.subr.mxu0 0.0
        %3855 = vmatpush1.xpose.msra.mxu0 0.0
        %3856 = vmatprep.mubr.f32.mxu0 0.0
        %3857 = vmatmul.mubr.f32.gmra.mrb[0].mxu0 %v3776
        %v3858 = vpop.f32.mrb[0].mxu0
        %v3859 = vadd.f32 %v2943, %v3858
        %v3860 = vpop.f32.mrb[0].mxu0
        %3861 = vmatprep.mubr.f32.mxu0 0.0
        %3862 = vmatmul.mubr.f32.gmra.mrb[0].mxu0 %v3778
        %v3863 = vpop.f32.mrb[0].mxu0
        %v3864 = vadd.f32 %v2945, %v3863
        %v3865 = vpop.f32.mrb[0].mxu0
        %3866 = vmatprep.mubr.f32.mxu0 0.0
        %3867 = vmatmul.mubr.f32.gmra.mrb[0].mxu0 %v3780
        %v3868 = vpop.f32.mrb[0].mxu0
        %v3869 = vadd.f32 %v2947, %v3868
        %v3870 = vpop.f32.mrb[0].mxu0
        %3871 = vmatprep.mubr.f32.mxu0 0.0
        %3872 = vmatmul.mubr.f32.gmra.mrb[0].mxu0 %v3782
        %v3873 = vpop.f32.mrb[0].mxu0
        %v3874 = vadd.f32 %v2949, %v3873
        %v3875 = vpop.f32.mrb[0].mxu0
        %3876 = vdwg.mxu0
        %v3877 = vsel %vm335, %v3859, -inf
        %3878 = vmax.xlane.f32.xlu0 %v3877
        %v3879 = vpop.xlane.xlu0 %3878
        %v3880 = vsel %vm335, %v3864, -inf
        %3881 = vmax.xlane.f32.xlu0 %v3880
        %v3882 = vpop.xlane.xlu0 %3881
        %v3883 = vsel %vm335, %v3869, -inf
        %3884 = vmax.xlane.f32.xlu0 %v3883
        %v3885 = vpop.xlane.xlu0 %3884
        %v3886 = vsel %vm335, %v3874, -inf
        %3887 = vmax.xlane.f32.xlu0 %v3886
        %v3888 = vpop.xlane.xlu0 %3887
        %v3889 = vsub.f32 %v3859, %v3879
        %v3890 = vsub.f32 %v3864, %v3882
        %v3891 = vsub.f32 %v3869, %v3885
        %v3892 = vsub.f32 %v3874, %v3888
        %v3893 = vmul.f32 %v3889, 1.442695
        %v3894 = vpow.pop %v3893
        %v3895 = vmul.f32 %v3890, 1.442695
        %v3896 = vpow.pop %v3895
        %v3897 = vmul.f32 %v3891, 1.442695
        %v3898 = vpow.pop %v3897
        %v3899 = vmul.f32 %v3892, 1.442695
        %v3900 = vpow.pop %v3899
        %v3901 = vsel %vm335, %v3894, 0.0
        %3902 = vadd.xlane.f32.xlu0 %v3901
        %v3903 = vpop.xlane.xlu0 %3902
        %v3904 = vsel %vm335, %v3896, 0.0
        %3905 = vadd.xlane.f32.xlu0 %v3904
        %v3906 = vpop.xlane.xlu0 %3905
        %v3907 = vsel %vm335, %v3898, 0.0
        %3908 = vadd.xlane.f32.xlu0 %v3907
        %v3909 = vpop.xlane.xlu0 %3908
        %v3910 = vsel %vm335, %v3900, 0.0
        %3911 = vadd.xlane.f32.xlu0 %v3910
        %v3912 = vpop.xlane.xlu0 %3911
        %v3913 = vrcp.pop %v3903
        %v3914 = vmul.f32 1.0, %v3913
        %v3915 = vrcp.pop %v3906
        %v3916 = vmul.f32 1.0, %v3915
        %v3917 = vrcp.pop %v3909
        %v3918 = vmul.f32 1.0, %v3917
        %v3919 = vrcp.pop %v3912
        %v3920 = vmul.f32 1.0, %v3919
        %v3921 = vmul.f32 %v3894, %v3914
        %v3922 = vmul.f32 %v3896, %v3916
        %v3923 = vmul.f32 %v3898, %v3918
        %v3924 = vmul.f32 %v3900, %v3920
        %3925 = vrot.lane.b32.xlu0 %v2912, 40
        %v3926 = vpop.permute.xlu0 %3925
        %3927 = vrot.lane.b32.xlu0 %v2917, 40
        %v3928 = vpop.permute.xlu0 %3927
        %3929 = vrot.lane.b32.xlu0 %v2922, 40
        %v3930 = vpop.permute.xlu0 %3929
        %3931 = vrot.lane.b32.xlu0 %v2927, 40
        %v3932 = vpop.permute.xlu0 %3931
        %v3938 = vsel %vm335, %v3921, 0
        %v3941 = vsel %vm335, %v3922, 0
        %v3944 = vsel %vm335, %v3923, 0
        %v3947 = vsel %vm335, %v3924, 0
        %3949 = vmatprep.subr.mxu0 0.0
        %3950 = vmatpush1.msra.mxu0 %v3926
        %3951 = vmatprep.subr.mxu0 0.0
        %3952 = vmatpush1.msra.mxu0 %v3928
        %3953 = vmatprep.subr.mxu0 0.0
        %3954 = vmatpush1.msra.mxu0 %v3930
        %3955 = vmatprep.subr.mxu0 0.0
        %3956 = vmatpush1.msra.mxu0 %v3932
        %3957 = vmatprep.subr.mxu0 0.0
        %3958 = vmatpush1.msra.mxu0 0.0
        %3959 = vmatprep.subr.mxu0 0.0
        %3960 = vmatpush1.msra.mxu0 0.0
        %3961 = vmatprep.subr.mxu0 0.0
        %3962 = vmatpush1.msra.mxu0 0.0
        %3963 = vmatprep.subr.mxu0 0.0
        %3964 = vmatpush1.msra.mxu0 0.0
        %3965 = vmatprep.subr.mxu0 0.0
        %3966 = vmatpush1.msra.mxu0 0.0
        %3967 = vmatprep.subr.mxu0 0.0
        %3968 = vmatpush1.msra.mxu0 0.0
        %3969 = vmatprep.subr.mxu0 0.0
        %3970 = vmatpush1.msra.mxu0 0.0
        %3971 = vmatprep.subr.mxu0 0.0
        %3972 = vmatpush1.msra.mxu0 0.0
        %3973 = vmatprep.subr.mxu0 0.0
        %3974 = vmatpush1.msra.mxu0 0.0
        %3975 = vmatprep.subr.mxu0 0.0
        %3976 = vmatpush1.msra.mxu0 0.0
        %3977 = vmatprep.subr.mxu0 0.0
        %3978 = vmatpush1.msra.mxu0 0.0
        %3979 = vmatprep.subr.mxu0 0.0
        %3980 = vmatpush1.msra.mxu0 0.0
        %3981 = vmatprep.subr.mxu0 0.0
        %3982 = vmatpush1.msra.mxu0 0.0
        %3983 = vmatprep.subr.mxu0 0.0
        %3984 = vmatpush1.msra.mxu0 0.0
        %3985 = vmatprep.subr.mxu0 0.0
        %3986 = vmatpush1.msra.mxu0 0.0
        %3987 = vmatprep.subr.mxu0 0.0
        %3988 = vmatpush1.msra.mxu0 0.0
        %3989 = vmatprep.subr.mxu0 0.0
        %3990 = vmatpush1.msra.mxu0 0.0
        %3991 = vmatprep.subr.mxu0 0.0
        %3992 = vmatpush1.msra.mxu0 0.0
        %3993 = vmatprep.subr.mxu0 0.0
        %3994 = vmatpush1.msra.mxu0 0.0
        %3995 = vmatprep.subr.mxu0 0.0
        %3996 = vmatpush1.msra.mxu0 0.0
        %3997 = vmatprep.subr.mxu0 0.0
        %3998 = vmatpush1.msra.mxu0 0.0
        %3999 = vmatprep.subr.mxu0 0.0
        %4000 = vmatpush1.msra.mxu0 0.0
        %4001 = vmatprep.subr.mxu0 0.0
        %4002 = vmatpush1.msra.mxu0 0.0
        %4003 = vmatprep.subr.mxu0 0.0
        %4004 = vmatpush1.msra.mxu0 0.0
        %4005 = vmatprep.subr.mxu0 0.0
        %4006 = vmatpush1.msra.mxu0 0.0
        %4007 = vmatprep.subr.mxu0 0.0
        %4008 = vmatpush1.msra.mxu0 0.0
        %4009 = vmatprep.subr.mxu0 0.0
        %4010 = vmatpush1.msra.mxu0 0.0
        %4011 = vmatprep.subr.mxu0 0.0
        %4012 = vmatpush1.msra.mxu0 0.0
        %4013 = vmatprep.mubr.f32.mxu0 0.0
        %4014 = vmatmul.mubr.f32.gmra.mrb[0].mxu0 %v3938
        %v4015 = vpop.f32.mrb[0].mxu0
        %v4016 = vadd.f32 0.0, %v4015
        %v4017 = vpop.f32.mrb[0].mxu0
        %4018 = vmatprep.mubr.f32.mxu0 0.0
        %4019 = vmatmul.mubr.f32.gmra.mrb[0].mxu0 %v3941
        %v4020 = vpop.f32.mrb[0].mxu0
        %v4021 = vadd.f32 0.0, %v4020
        %v4022 = vpop.f32.mrb[0].mxu0
        %4023 = vmatprep.mubr.f32.mxu0 0.0
        %4024 = vmatmul.mubr.f32.gmra.mrb[0].mxu0 %v3944
        %v4025 = vpop.f32.mrb[0].mxu0
        %v4026 = vadd.f32 0.0, %v4025
        %v4027 = vpop.f32.mrb[0].mxu0
        %4028 = vmatprep.mubr.f32.mxu0 0.0
        %4029 = vmatmul.mubr.f32.gmra.mrb[0].mxu0 %v3947
        %v4030 = vpop.f32.mrb[0].mxu0
        %v4031 = vadd.f32 0.0, %v4030
        %v4032 = vpop.f32.mrb[0].mxu0
        %4033 = vdwg.mxu0
        %4038 = vrot.lane.b32.xlu0 %v3468, 8
        %v4039 = vpop.permute.xlu0 %4038
        %4040 = vrot.lane.b32.xlu0 %v3473, 8
        %v4041 = vpop.permute.xlu0 %4040
        %4042 = vrot.lane.b32.xlu0 %v3478, 8
        %v4043 = vpop.permute.xlu0 %4042
        %4044 = vrot.lane.b32.xlu0 %v3483, 8
        %v4045 = vpop.permute.xlu0 %4044
        %4054 = vrot.lane.b32.xlu0 %v3742, 16
        %v4055 = vpop.permute.xlu0 %4054
        %4056 = vrot.lane.b32.xlu0 %v3747, 16
        %v4057 = vpop.permute.xlu0 %4056
        %4058 = vrot.lane.b32.xlu0 %v3752, 16
        %v4059 = vpop.permute.xlu0 %4058
        %4060 = vrot.lane.b32.xlu0 %v3757, 16
        %v4061 = vpop.permute.xlu0 %4060
        %4070 = vrot.lane.b32.xlu0 %v4016, 24
        %v4071 = vpop.permute.xlu0 %4070
        %4072 = vrot.lane.b32.xlu0 %v4021, 24
        %v4073 = vpop.permute.xlu0 %4072
        %4074 = vrot.lane.b32.xlu0 %v4026, 24
        %v4075 = vpop.permute.xlu0 %4074
        %4076 = vrot.lane.b32.xlu0 %v4031, 24
        %v4077 = vpop.permute.xlu0 %4076
        %v4082 = vsel %vm1501, %v3194, %v4039
        %v4083 = vsel %vm1501, %v3199, %v4041
        %v4084 = vsel %vm1501, %v3204, %v4043
        %v4085 = vsel %vm1501, %v3209, %v4045
        %v4086 = vsel %vm2634, %v4082, %v4055
        %v4087 = vsel %vm2634, %v4083, %v4057
        %v4088 = vsel %vm2634, %v4084, %v4059
        %v4089 = vsel %vm2634, %v4085, %v4061
        %v4090 = vsel %vm2639, %v4086, %v4071
        %v4091 = vsel %vm2639, %v4087, %v4073
        %v4092 = vsel %vm2639, %v4088, %v4075
        %v4093 = vsel %vm2639, %v4089, %v4077
        %v4094 = vlaneseq
        %v4095 = vshrl.u32 %v4094, 7
        %v4096 = vsub.s32 0, %v4095
        %v4097 = vrot.slane %v302, %v4096
        %4102 = vrot.lane.b32.xlu0 %v315, 32
        %v4103 = vpop.permute.xlu0 %4102
        %4104 = vrot.lane.b32.xlu0 %v316, 32
        %v4105 = vpop.permute.xlu0 %4104
        %4106 = vrot.lane.b32.xlu0 %v317, 32
        %v4107 = vpop.permute.xlu0 %4106
        %4108 = vrot.lane.b32.xlu0 %v318, 32
        %v4109 = vpop.permute.xlu0 %4108
        %v4115 = vsel %vm335, %v4090, 0
        %v4118 = vsel %vm335, %v4091, 0
        %v4121 = vsel %vm335, %v4092, 0
        %v4124 = vsel %vm335, %v4093, 0
        %4126 = vmatprep.subr.mxu0 0.0
        %4127 = vmatpush1.msra.mxu0 %v4103
        %4128 = vmatprep.subr.mxu0 0.0
        %4129 = vmatpush1.msra.mxu0 %v4105
        %4130 = vmatprep.subr.mxu0 0.0
        %4131 = vmatpush1.msra.mxu0 %v4107
        %4132 = vmatprep.subr.mxu0 0.0
        %4133 = vmatpush1.msra.mxu0 %v4109
        %4134 = vmatprep.subr.mxu0 0.0
        %4135 = vmatpush1.msra.mxu0 0.0
        %4136 = vmatprep.subr.mxu0 0.0
        %4137 = vmatpush1.msra.mxu0 0.0
        %4138 = vmatprep.subr.mxu0 0.0
        %4139 = vmatpush1.msra.mxu0 0.0
        %4140 = vmatprep.subr.mxu0 0.0
        %4141 = vmatpush1.msra.mxu0 0.0
        %4142 = vmatprep.subr.mxu0 0.0
        %4143 = vmatpush1.msra.mxu0 0.0
        %4144 = vmatprep.subr.mxu0 0.0
        %4145 = vmatpush1.msra.mxu0 0.0
        %4146 = vmatprep.subr.mxu0 0.0
        %4147 = vmatpush1.msra.mxu0 0.0
        %4148 = vmatprep.subr.mxu0 0.0
        %4149 = vmatpush1.msra.mxu0 0.0
        %4150 = vmatprep.subr.mxu0 0.0
        %4151 = vmatpush1.msra.mxu0 0.0
        %4152 = vmatprep.subr.mxu0 0.0
        %4153 = vmatpush1.msra.mxu0 0.0
        %4154 = vmatprep.subr.mxu0 0.0
        %4155 = vmatpush1.msra.mxu0 0.0
        %4156 = vmatprep.subr.mxu0 0.0
        %4157 = vmatpush1.msra.mxu0 0.0
        %4158 = vmatprep.subr.mxu0 0.0
        %4159 = vmatpush1.msra.mxu0 0.0
        %4160 = vmatprep.subr.mxu0 0.0
        %4161 = vmatpush1.msra.mxu0 0.0
        %4162 = vmatprep.subr.mxu0 0.0
        %4163 = vmatpush1.msra.mxu0 0.0
        %4164 = vmatprep.subr.mxu0 0.0
        %4165 = vmatpush1.msra.mxu0 0.0
        %4166 = vmatprep.subr.mxu0 0.0
        %4167 = vmatpush1.msra.mxu0 0.0
        %4168 = vmatprep.subr.mxu0 0.0
        %4169 = vmatpush1.msra.mxu0 0.0
        %4170 = vmatprep.subr.mxu0 0.0
        %4171 = vmatpush1.msra.mxu0 0.0
        %4172 = vmatprep.subr.mxu0 0.0
        %4173 = vmatpush1.msra.mxu0 0.0
        %4174 = vmatprep.subr.mxu0 0.0
        %4175 = vmatpush1.msra.mxu0 0.0
        %4176 = vmatprep.subr.mxu0 0.0
        %4177 = vmatpush1.msra.mxu0 0.0
        %4178 = vmatprep.subr.mxu0 0.0
        %4179 = vmatpush1.msra.mxu0 0.0
        %4180 = vmatprep.subr.mxu0 0.0
        %4181 = vmatpush1.msra.mxu0 0.0
        %4182 = vmatprep.subr.mxu0 0.0
        %4183 = vmatpush1.msra.mxu0 0.0
        %4184 = vmatprep.subr.mxu0 0.0
        %4185 = vmatpush1.msra.mxu0 0.0
        %4186 = vmatprep.subr.mxu0 0.0
        %4187 = vmatpush1.msra.mxu0 0.0
        %4188 = vmatprep.subr.mxu0 0.0
        %4189 = vmatpush1.msra.mxu0 0.0
        %4190 = vmatprep.mubr.f32.mxu0 0.0
        %4191 = vmatmul.mubr.f32.gmra.mrb[0].mxu0 %v4115
        %v4192 = vpop.f32.mrb[0].mxu0
        %v4193 = vadd.f32 %v4097, %v4192
        %v4194 = vpop.f32.mrb[0].mxu0
        %4195 = vmatprep.mubr.f32.mxu0 0.0
        %4196 = vmatmul.mubr.f32.gmra.mrb[0].mxu0 %v4118
        %v4197 = vpop.f32.mrb[0].mxu0
        %v4198 = vadd.f32 %v4097, %v4197
        %v4199 = vpop.f32.mrb[0].mxu0
        %4200 = vmatprep.mubr.f32.mxu0 0.0
        %4201 = vmatmul.mubr.f32.gmra.mrb[0].mxu0 %v4121
        %v4202 = vpop.f32.mrb[0].mxu0
        %v4203 = vadd.f32 %v4097, %v4202
        %v4204 = vpop.f32.mrb[0].mxu0
        %4205 = vmatprep.mubr.f32.mxu0 0.0
        %4206 = vmatmul.mubr.f32.gmra.mrb[0].mxu0 %v4124
        %v4207 = vpop.f32.mrb[0].mxu0
        %v4208 = vadd.f32 %v4097, %v4207
        %v4209 = vpop.f32.mrb[0].mxu0
        %4210 = vdwg.mxu0
        %v4211 = vadd.f32 %v2829, %v4193
        %v4212 = vadd.f32 %v2830, %v4198
        %v4213 = vadd.f32 %v2831, %v4203
        %v4214 = vadd.f32 %v2832, %v4208
        %v4215 = vsel %vm335, %v4211, 0.0
        %4216 = vadd.xlane.f32.xlu0 %v4215
        %v4217 = vpop.xlane.xlu0 %4216
        %v4218 = vsel %vm335, %v4212, 0.0
        %4219 = vadd.xlane.f32.xlu0 %v4218
        %v4220 = vpop.xlane.xlu0 %4219
        %v4221 = vsel %vm335, %v4213, 0.0
        %4222 = vadd.xlane.f32.xlu0 %v4221
        %v4223 = vpop.xlane.xlu0 %4222
        %v4224 = vsel %vm335, %v4214, 0.0
        %4225 = vadd.xlane.f32.xlu0 %v4224
        %v4226 = vpop.xlane.xlu0 %4225
        %v4227 = vmul.f32 %v4217, %v348
        %v4228 = vmul.f32 %v4220, %v348
        %v4229 = vmul.f32 %v4223, %v348
        %v4230 = vmul.f32 %v4226, %v348
        %v4231 = vsub.f32 %v4211, %v4227
        %v4232 = vsub.f32 %v4212, %v4228
        %v4233 = vsub.f32 %v4213, %v4229
        %v4234 = vsub.f32 %v4214, %v4230
        %v4235 = vmul.f32 %v4231, %v4231
        %v4236 = vmul.f32 %v4232, %v4232
        %v4237 = vmul.f32 %v4233, %v4233
        %v4238 = vmul.f32 %v4234, %v4234
        %v4239 = vsel %vm335, %v4235, 0.0
        %4240 = vadd.xlane.f32.xlu0 %v4239
        %v4241 = vpop.xlane.xlu0 %4240
        %v4242 = vsel %vm335, %v4236, 0.0
        %4243 = vadd.xlane.f32.xlu0 %v4242
        %v4244 = vpop.xlane.xlu0 %4243
        %v4245 = vsel %vm335, %v4237, 0.0
        %4246 = vadd.xlane.f32.xlu0 %v4245
        %v4247 = vpop.xlane.xlu0 %4246
        %v4248 = vsel %vm335, %v4238, 0.0
        %4249 = vadd.xlane.f32.xlu0 %v4248
        %v4250 = vpop.xlane.xlu0 %4249
        %v4251 = vmul.f32 %v4241, %v348
        %v4252 = vmul.f32 %v4244, %v348
        %v4253 = vmul.f32 %v4247, %v348
        %v4254 = vmul.f32 %v4250, %v348
        %v4255 = vadd.f32 %v4251, 1e-05
        %v4256 = vadd.f32 %v4252, 1e-05
        %v4257 = vadd.f32 %v4253, 1e-05
        %v4258 = vadd.f32 %v4254, 1e-05
        %v4259 = vrsqrt.pop %v4255
        %v4260 = vrsqrt.pop %v4256
        %v4261 = vrsqrt.pop %v4257
        %v4262 = vrsqrt.pop %v4258
        %v4263 = vmul.f32 %v4231, %v4259
        %v4264 = vmul.f32 %v4232, %v4260
        %v4265 = vmul.f32 %v4233, %v4261
        %v4266 = vmul.f32 %v4234, %v4262
        %v4267 = vlaneseq
        %v4268 = vshrl.u32 %v4267, 7
        %v4269 = vsub.s32 0, %v4268
        %v4270 = vrot.slane %v303, %v4269
        %v4271 = vmul.f32 %v4263, %v4270
        %v4272 = vmul.f32 %v4264, %v4270
        %v4273 = vmul.f32 %v4265, %v4270
        %v4274 = vmul.f32 %v4266, %v4270
        %v4275 = vlaneseq
        %v4276 = vshrl.u32 %v4275, 7
        %v4277 = vsub.s32 0, %v4276
        %v4278 = vrot.slane %v304, %v4277
        %v4279 = vadd.f32 %v4271, %v4278
        %v4280 = vadd.f32 %v4272, %v4278
        %v4281 = vadd.f32 %v4273, %v4278
        %v4282 = vadd.f32 %v4274, %v4278
        %v4283 = vlaneseq
        %v4284 = vshrl.u32 %v4283, 7
        %v4285 = vsub.s32 0, %v4284
        %v4286 = vrot.slane %v306, %v4285
        %v4288 = vsel %vm335, %v4279, 0
        %v4291 = vsel %vm335, %v4280, 0
        %v4294 = vsel %vm335, %v4281, 0
        %v4297 = vsel %vm335, %v4282, 0
        %4299 = vmatprep.subr.mxu0 0.0
        %4300 = vmatpush1.msra.mxu0 %v319
        %4301 = vmatprep.subr.mxu0 0.0
        %4302 = vmatpush1.msra.mxu0 %v320
        %4303 = vmatprep.subr.mxu0 0.0
        %4304 = vmatpush1.msra.mxu0 %v321
        %4305 = vmatprep.subr.mxu0 0.0
        %4306 = vmatpush1.msra.mxu0 %v322
        %4307 = vmatprep.subr.mxu0 0.0
        %4308 = vmatpush1.msra.mxu0 0.0
        %4309 = vmatprep.subr.mxu0 0.0
        %4310 = vmatpush1.msra.mxu0 0.0
        %4311 = vmatprep.subr.mxu0 0.0
        %4312 = vmatpush1.msra.mxu0 0.0
        %4313 = vmatprep.subr.mxu0 0.0
        %4314 = vmatpush1.msra.mxu0 0.0
        %4315 = vmatprep.subr.mxu0 0.0
        %4316 = vmatpush1.msra.mxu0 0.0
        %4317 = vmatprep.subr.mxu0 0.0
        %4318 = vmatpush1.msra.mxu0 0.0
        %4319 = vmatprep.subr.mxu0 0.0
        %4320 = vmatpush1.msra.mxu0 0.0
        %4321 = vmatprep.subr.mxu0 0.0
        %4322 = vmatpush1.msra.mxu0 0.0
        %4323 = vmatprep.subr.mxu0 0.0
        %4324 = vmatpush1.msra.mxu0 0.0
        %4325 = vmatprep.subr.mxu0 0.0
        %4326 = vmatpush1.msra.mxu0 0.0
        %4327 = vmatprep.subr.mxu0 0.0
        %4328 = vmatpush1.msra.mxu0 0.0
        %4329 = vmatprep.subr.mxu0 0.0
        %4330 = vmatpush1.msra.mxu0 0.0
        %4331 = vmatprep.subr.mxu0 0.0
        %4332 = vmatpush1.msra.mxu0 0.0
        %4333 = vmatprep.subr.mxu0 0.0
        %4334 = vmatpush1.msra.mxu0 0.0
        %4335 = vmatprep.subr.mxu0 0.0
        %4336 = vmatpush1.msra.mxu0 0.0
        %4337 = vmatprep.subr.mxu0 0.0
        %4338 = vmatpush1.msra.mxu0 0.0
        %4339 = vmatprep.subr.mxu0 0.0
        %4340 = vmatpush1.msra.mxu0 0.0
        %4341 = vmatprep.subr.mxu0 0.0
        %4342 = vmatpush1.msra.mxu0 0.0
        %4343 = vmatprep.subr.mxu0 0.0
        %4344 = vmatpush1.msra.mxu0 0.0
        %4345 = vmatprep.subr.mxu0 0.0
        %4346 = vmatpush1.msra.mxu0 0.0
        %4347 = vmatprep.subr.mxu0 0.0
        %4348 = vmatpush1.msra.mxu0 0.0
        %4349 = vmatprep.subr.mxu0 0.0
        %4350 = vmatpush1.msra.mxu0 0.0
        %4351 = vmatprep.subr.mxu0 0.0
        %4352 = vmatpush1.msra.mxu0 0.0
        %4353 = vmatprep.subr.mxu0 0.0
        %4354 = vmatpush1.msra.mxu0 0.0
        %4355 = vmatprep.subr.mxu0 0.0
        %4356 = vmatpush1.msra.mxu0 0.0
        %4357 = vmatprep.subr.mxu0 0.0
        %4358 = vmatpush1.msra.mxu0 0.0
        %4359 = vmatprep.subr.mxu0 0.0
        %4360 = vmatpush1.msra.mxu0 0.0
        %4361 = vmatprep.subr.mxu0 0.0
        %4362 = vmatpush1.msra.mxu0 0.0
        %4363 = vmatprep.mubr.f32.mxu0 0.0
        %4364 = vmatmul.mubr.f32.gmra.mrb[0].mxu0 %v4288
        %v4365 = vpop.f32.mrb[0].mxu0
        %v4366 = vadd.f32 %v4286, %v4365
        %v4367 = vpop.f32.mrb[0].mxu0
        %4368 = vmatprep.mubr.f32.mxu0 0.0
        %4369 = vmatmul.mubr.f32.gmra.mrb[0].mxu0 %v4291
        %v4370 = vpop.f32.mrb[0].mxu0
        %v4371 = vadd.f32 %v4286, %v4370
        %v4372 = vpop.f32.mrb[0].mxu0
        %4373 = vmatprep.mubr.f32.mxu0 0.0
        %4374 = vmatmul.mubr.f32.gmra.mrb[0].mxu0 %v4294
        %v4375 = vpop.f32.mrb[0].mxu0
        %v4376 = vadd.f32 %v4286, %v4375
        %v4377 = vpop.f32.mrb[0].mxu0
        %4378 = vmatprep.mubr.f32.mxu0 0.0
        %4379 = vmatmul.mubr.f32.gmra.mrb[0].mxu0 %v4297
        %v4380 = vpop.f32.mrb[0].mxu0
        %v4381 = vadd.f32 %v4286, %v4380
        %v4382 = vpop.f32.mrb[0].mxu0
        %4383 = vdwg.mxu0
        %v4384 = vmul.f32 %v4366, 0.5
        %v4385 = vmul.f32 %v4371, 0.5
        %v4386 = vmul.f32 %v4376, 0.5
        %v4387 = vmul.f32 %v4381, 0.5
        %v4388 = vmul.f32 %v4366, 0.70710677
        %v4389 = vmul.f32 %v4371, 0.70710677
        %v4390 = vmul.f32 %v4376, 0.70710677
        %v4391 = vmul.f32 %v4381, 0.70710677
        %vm4392 = vcmp.ge.f32.partialorder %v4388, 0.0
        %vm4393 = vcmp.ge.f32.partialorder %v4389, 0.0
        %vm4394 = vcmp.ge.f32.partialorder %v4390, 0.0
        %vm4395 = vcmp.ge.f32.partialorder %v4391, 0.0
        %v4396 = vsel %vm4392, 1.0, -1.0
        %v4397 = vsel %vm4393, 1.0, -1.0
        %v4398 = vsel %vm4394, 1.0, -1.0
        %v4399 = vsel %vm4395, 1.0, -1.0
        %v4400 = vand.u32 2147483647, %v4388
        %v4401 = vand.u32 2147483647, %v4389
        %v4402 = vand.u32 2147483647, %v4390
        %v4403 = vand.u32 2147483647, %v4391
        %v4404 = vmul.f32 %v4400, 0.3275911
        %v4405 = vmul.f32 %v4401, 0.3275911
        %v4406 = vmul.f32 %v4402, 0.3275911
        %v4407 = vmul.f32 %v4403, 0.3275911
        %v4408 = vadd.f32 %v4404, 1.0
        %v4409 = vadd.f32 %v4405, 1.0
        %v4410 = vadd.f32 %v4406, 1.0
        %v4411 = vadd.f32 %v4407, 1.0
        %v4412 = vrcp.pop %v4408
        %v4413 = vmul.f32 1.0, %v4412
        %v4414 = vrcp.pop %v4409
        %v4415 = vmul.f32 1.0, %v4414
        %v4416 = vrcp.pop %v4410
        %v4417 = vmul.f32 1.0, %v4416
        %v4418 = vrcp.pop %v4411
        %v4419 = vmul.f32 1.0, %v4418
        %v4420 = vmul.f32 %v4413, 1.0614054
        %v4421 = vmul.f32 %v4415, 1.0614054
        %v4422 = vmul.f32 %v4417, 1.0614054
        %v4423 = vmul.f32 %v4419, 1.0614054
        %v4424 = vadd.f32 %v4420, -1.4531521
        %v4425 = vadd.f32 %v4421, -1.4531521
        %v4426 = vadd.f32 %v4422, -1.4531521
        %v4427 = vadd.f32 %v4423, -1.4531521
        %v4428 = vmul.f32 %v4424, %v4413
        %v4429 = vmul.f32 %v4425, %v4415
        %v4430 = vmul.f32 %v4426, %v4417
        %v4431 = vmul.f32 %v4427, %v4419
        %v4432 = vadd.f32 %v4428, 1.4214138
        %v4433 = vadd.f32 %v4429, 1.4214138
        %v4434 = vadd.f32 %v4430, 1.4214138
        %v4435 = vadd.f32 %v4431, 1.4214138
        %v4436 = vmul.f32 %v4432, %v4413
        %v4437 = vmul.f32 %v4433, %v4415
        %v4438 = vmul.f32 %v4434, %v4417
        %v4439 = vmul.f32 %v4435, %v4419
        %v4440 = vadd.f32 %v4436, -0.28449672
        %v4441 = vadd.f32 %v4437, -0.28449672
        %v4442 = vadd.f32 %v4438, -0.28449672
        %v4443 = vadd.f32 %v4439, -0.28449672
        %v4444 = vmul.f32 %v4440, %v4413
        %v4445 = vmul.f32 %v4441, %v4415
        %v4446 = vmul.f32 %v4442, %v4417
        %v4447 = vmul.f32 %v4443, %v4419
        %v4448 = vadd.f32 %v4444, 0.2548296
        %v4449 = vadd.f32 %v4445, 0.2548296
        %v4450 = vadd.f32 %v4446, 0.2548296
        %v4451 = vadd.f32 %v4447, 0.2548296
        %v4452 = vmul.f32 %v4448, %v4413
        %v4453 = vmul.f32 %v4449, %v4415
        %v4454 = vmul.f32 %v4450, %v4417
        %v4455 = vmul.f32 %v4451, %v4419
        %v4456 = vsub.f32 0.0, %v4400
        %v4457 = vsub.f32 0.0, %v4401
        %v4458 = vsub.f32 0.0, %v4402
        %v4459 = vsub.f32 0.0, %v4403
        %v4460 = vmul.f32 %v4456, %v4400
        %v4461 = vmul.f32 %v4457, %v4401
        %v4462 = vmul.f32 %v4458, %v4402
        %v4463 = vmul.f32 %v4459, %v4403
        %v4464 = vmul.f32 %v4460, 1.442695
        %v4465 = vpow.pop %v4464
        %v4466 = vmul.f32 %v4461, 1.442695
        %v4467 = vpow.pop %v4466
        %v4468 = vmul.f32 %v4462, 1.442695
        %v4469 = vpow.pop %v4468
        %v4470 = vmul.f32 %v4463, 1.442695
        %v4471 = vpow.pop %v4470
        %v4472 = vmul.f32 %v4452, %v4465
        %v4473 = vmul.f32 %v4453, %v4467
        %v4474 = vmul.f32 %v4454, %v4469
        %v4475 = vmul.f32 %v4455, %v4471
        %v4476 = vsub.f32 1.0, %v4472
        %v4477 = vsub.f32 1.0, %v4473
        %v4478 = vsub.f32 1.0, %v4474
        %v4479 = vsub.f32 1.0, %v4475
        %v4480 = vmul.f32 %v4396, %v4476
        %v4481 = vmul.f32 %v4397, %v4477
        %v4482 = vmul.f32 %v4398, %v4478
        %v4483 = vmul.f32 %v4399, %v4479
        %v4484 = vadd.f32 %v4480, 1.0
        %v4485 = vadd.f32 %v4481, 1.0
        %v4486 = vadd.f32 %v4482, 1.0
        %v4487 = vadd.f32 %v4483, 1.0
        %v4488 = vmul.f32 %v4384, %v4484
        %v4489 = vmul.f32 %v4385, %v4485
        %v4490 = vmul.f32 %v4386, %v4486
        %v4491 = vmul.f32 %v4387, %v4487
        %v4492 = vlaneseq
        %v4493 = vshrl.u32 %v4492, 7
        %v4494 = vsub.s32 0, %v4493
        %v4495 = vrot.slane %v305, %v4494
        %v4497 = vsel %vm1025, %v4488, 0
        %v4500 = vsel %vm1025, %v4489, 0
        %v4503 = vsel %vm1025, %v4490, 0
        %v4506 = vsel %vm1025, %v4491, 0
        %4508 = vmatprep.subr.mxu0 0.0
        %4509 = vmatpush1.msra.mxu0 %v323
        %4510 = vmatprep.subr.mxu0 0.0
        %4511 = vmatpush1.msra.mxu0 %v324
        %4512 = vmatprep.subr.mxu0 0.0
        %4513 = vmatpush1.msra.mxu0 %v325
        %4514 = vmatprep.subr.mxu0 0.0
        %4515 = vmatpush1.msra.mxu0 %v326
        %4516 = vmatprep.subr.mxu0 0.0
        %4517 = vmatpush1.msra.mxu0 %v327
        %4518 = vmatprep.subr.mxu0 0.0
        %4519 = vmatpush1.msra.mxu0 %v328
        %4520 = vmatprep.subr.mxu0 0.0
        %4521 = vmatpush1.msra.mxu0 %v329
        %4522 = vmatprep.subr.mxu0 0.0
        %4523 = vmatpush1.msra.mxu0 %v330
        %4524 = vmatprep.subr.mxu0 0.0
        %4525 = vmatpush1.msra.mxu0 0.0
        %4526 = vmatprep.subr.mxu0 0.0
        %4527 = vmatpush1.msra.mxu0 0.0
        %4528 = vmatprep.subr.mxu0 0.0
        %4529 = vmatpush1.msra.mxu0 0.0
        %4530 = vmatprep.subr.mxu0 0.0
        %4531 = vmatpush1.msra.mxu0 0.0
        %4532 = vmatprep.subr.mxu0 0.0
        %4533 = vmatpush1.msra.mxu0 0.0
        %4534 = vmatprep.subr.mxu0 0.0
        %4535 = vmatpush1.msra.mxu0 0.0
        %4536 = vmatprep.subr.mxu0 0.0
        %4537 = vmatpush1.msra.mxu0 0.0
        %4538 = vmatprep.subr.mxu0 0.0
        %4539 = vmatpush1.msra.mxu0 0.0
        %4540 = vmatprep.subr.mxu0 0.0
        %4541 = vmatpush1.msra.mxu0 0.0
        %4542 = vmatprep.subr.mxu0 0.0
        %4543 = vmatpush1.msra.mxu0 0.0
        %4544 = vmatprep.subr.mxu0 0.0
        %4545 = vmatpush1.msra.mxu0 0.0
        %4546 = vmatprep.subr.mxu0 0.0
        %4547 = vmatpush1.msra.mxu0 0.0
        %4548 = vmatprep.subr.mxu0 0.0
        %4549 = vmatpush1.msra.mxu0 0.0
        %4550 = vmatprep.subr.mxu0 0.0
        %4551 = vmatpush1.msra.mxu0 0.0
        %4552 = vmatprep.subr.mxu0 0.0
        %4553 = vmatpush1.msra.mxu0 0.0
        %4554 = vmatprep.subr.mxu0 0.0
        %4555 = vmatpush1.msra.mxu0 0.0
        %4556 = vmatprep.subr.mxu0 0.0
        %4557 = vmatpush1.msra.mxu0 0.0
        %4558 = vmatprep.subr.mxu0 0.0
        %4559 = vmatpush1.msra.mxu0 0.0
        %4560 = vmatprep.subr.mxu0 0.0
        %4561 = vmatpush1.msra.mxu0 0.0
        %4562 = vmatprep.subr.mxu0 0.0
        %4563 = vmatpush1.msra.mxu0 0.0
        %4564 = vmatprep.subr.mxu0 0.0
        %4565 = vmatpush1.msra.mxu0 0.0
        %4566 = vmatprep.subr.mxu0 0.0
        %4567 = vmatpush1.msra.mxu0 0.0
        %4568 = vmatprep.subr.mxu0 0.0
        %4569 = vmatpush1.msra.mxu0 0.0
        %4570 = vmatprep.subr.mxu0 0.0
        %4571 = vmatpush1.msra.mxu0 0.0
        %4572 = vmatprep.mubr.f32.mxu0 0.0
        %4573 = vmatmul.mubr.f32.gmra.mrb[0].mxu0 %v4497
        %v4574 = vpop.f32.mrb[0].mxu0
        %v4575 = vadd.f32 %v4495, %v4574
        %v4576 = vpop.f32.mrb[0].mxu0
        %4577 = vmatprep.mubr.f32.mxu0 0.0
        %4578 = vmatmul.mubr.f32.gmra.mrb[0].mxu0 %v4500
        %v4579 = vpop.f32.mrb[0].mxu0
        %v4580 = vadd.f32 %v4495, %v4579
        %v4581 = vpop.f32.mrb[0].mxu0
        %4582 = vmatprep.mubr.f32.mxu0 0.0
        %4583 = vmatmul.mubr.f32.gmra.mrb[0].mxu0 %v4503
        %v4584 = vpop.f32.mrb[0].mxu0
        %v4585 = vadd.f32 %v4495, %v4584
        %v4586 = vpop.f32.mrb[0].mxu0
        %4587 = vmatprep.mubr.f32.mxu0 0.0
        %4588 = vmatmul.mubr.f32.gmra.mrb[0].mxu0 %v4506
        %v4589 = vpop.f32.mrb[0].mxu0
        %v4590 = vadd.f32 %v4495, %v4589
        %v4591 = vpop.f32.mrb[0].mxu0
        %4592 = vdwg.mxu0
        %v4593 = vadd.f32 %v4211, %v4575
        %v4594 = vadd.f32 %v4212, %v4580
        %v4595 = vadd.f32 %v4213, %v4585
        %v4596 = vadd.f32 %v4214, %v4590
        %4597 = vst.msk [vmem:[%s274] sm:$0xff] %vm335, %v4593
        %4598 = vst.msk [vmem:[%s274 + $0x8] sm:$0xff] %vm335, %v4594
        %4599 = vst.msk [vmem:[%s274 + $0x10] sm:$0xff] %vm335, %v4595
        %4600 = vst.msk [vmem:[%s274 + $0x18] sm:$0xff] %vm335, %v4596
        %s4601 = sand.u32 %s165, 1
        %s4602 = scalar_lea.sflag [#allocation4], %s4601
        %s4603 = sand.u32 %s165, 1
        %s4604 = smul.addr %s4603, 32
        %s4605 = scalar_lea.vmem [#allocation5], %s4604
        // Predicated region
        $region49: #{tpu_custom_call.1} parent=43 // pred_check
          %p4606 = pneg %p175
        $region50: #{tpu_custom_call.1} parent=43 // pred_check_branch
          %4608 = sbr.rel (%p4606) target = $region52
        $region51: #{tpu_custom_call.1} parent=43 // pred_region
          %s4610 = ssub.s32 512, 512
          %4611 = vsyncadd %s4602, %s4610
          %s4612 = smul.addr %s21, 4
          %s4613 = smul.addr %s4612, 128
          %s4614 = scalar_lea.hbm %s6, %s4613
          %s4615 = sshll.u32 %s4605, 4
          %s4616 = int_to_ptr.vmem [resolvable:$true] %s4615
          %4621 = dma.vmem_to_hbm [thread:$0]  %s4616, 512, %s4614, %s4602, 128, 128, 8
        $region52: #{tpu_custom_call.1} parent=43 // pred_fallthru
          _
      $region44: #{tpu_custom_call.1} parent=5 // pred_fallthru
        _
      %p4622 = scmp.le.s32.totalorder 2, %s16
      // Predicated region
      $region53: #{tpu_custom_call.1} parent=5 // pred_check
        %p4623 = pneg %p4622
      $region54: #{tpu_custom_call.1} parent=5 // pred_check_branch
        %4625 = sbr.rel (%p4623) target = $region56
      $region55: #{tpu_custom_call.1} parent=5 // pred_region
        %s4626 = ssub.s32 %s16, 2
        // Predicated region
        $region57: #{tpu_custom_call.1} parent=55 // pred_check
          %p4627 = pneg %p181
        $region58: #{tpu_custom_call.1} parent=55 // pred_check_branch
          %4629 = sbr.rel (%p4627) target = $region60
        $region59: #{tpu_custom_call.1} parent=55 // pred_region
          %s4630 = sand.u32 %s166, 1
          %s4631 = scalar_lea.sflag [#allocation4], %s4630
          %s4632 = sand.u32 %s166, 1
          %s4633 = smul.addr %s4632, 32
          %s4634 = scalar_lea.vmem [#allocation5], %s4633
          %4635 = dma.done %s4631, 512
        $region60: #{tpu_custom_call.1} parent=55 // pred_fallthru
          _
      $region56: #{tpu_custom_call.1} parent=5 // pred_fallthru
        _
    $region6: #{tpu_custom_call.1} parent=1 // loop_footer
      %s20 = sadd.s32 1, %s16
    $region7: #{tpu_custom_call.1} parent=1 // loop_footer_branch
      %15 = sbr.rel target = $region3
    $region8: #{tpu_custom_call.1} parent=1 // loop_exit
      _
    %4636 = vsyncpa [#allocation3], 1
    %s4637 = scalar_lea.sflag [#allocation3], 1
    %4638 = vsyncpa %s4637, 1
    %4639 = vsyncpa [#allocation4], 1
    %s4640 = scalar_lea.sflag [#allocation4], 1
    %4641 = vsyncpa %s4640, 1

</llo_original>
